<compile_context>
chip_gen: v5e
topology: v5e:2x2
jax: 0.10.0
libtpu: 0.0.40
codegen_flags: <defaults>
</compile_context>

<pallas_src>
import jax
import jax.numpy as jnp
import numpy as np
from jax import lax
from jax.experimental import pallas as pl
from jax.experimental.pallas import tpu as pltpu

NUM_CLASSES = 10


def _round_up(x, m):
    return (x + m - 1) // m * m


# ---------------------------------------------------------------------------
# Fused kernel: conv1 -> relu -> pool -> conv2 -> relu -> pool -> fc1 -> relu
#               -> fc2 -> relu -> fc3          (softmax unused in forward)
# ---------------------------------------------------------------------------
def lenet_half_kernel(xi_ref, w1c_ref, b1l_ref, w2c_ref, b2l_ref,
                      fc1c_ref, fc1b_ref, fc2w_ref, fc2b_ref,
                      fc3w_ref, fc3b_ref, out_ref):
    tn = xi_ref.shape[0]

    # ---- conv1 (1->3, k5, VALID): ONE MXU matmul, kernel-H folded into K ----
    # xi rows = (n, oh) [28/sample], K = ki*32 + iw [160], lanes = co*28 + ow [84]
    y1 = jnp.dot(xi_ref[...].reshape(tn * 28, 160), w1c_ref[...],
                 preferred_element_type=jnp.float32)
    y1 = jnp.maximum(y1 + b1l_ref[...], 0.0)                    # (tn*28, 84) f32

    # ---- maxpool 2x2 on layer1: W-direction kept undecimated ----------------
    # (the even-lane selection is folded into the conv2 weight rows)
    # NOTE: the off-by-one slice max is VPU/copy work hidden under the MXU;
    # pltpu.roll would move it to the XLU but isn't needed for correctness.
    mw1 = jnp.maximum(y1[:, 0:83], y1[:, 1:84])                 # (tn*28, 83)
    mw1 = mw1.reshape(tn * 14, 2, 83)                           # pair rows (H)
    p1 = jnp.maximum(mw1[:, 0, :], mw1[:, 1, :])                # (tn*14, 83)
    p1 = p1.reshape(tn, 14, 83).astype(jnp.bfloat16)            # rows=(n, oh1)

    # ---- conv2 (3->8, k5): 5 MXU matmuls, K = ci*28 + 2*(ow+kj) [83] --------
    # rows = (n, oh2) [10/sample], lanes = co*10 + ow2 [80]
    y2 = jnp.dot(p1[:, 0:10, :].reshape(tn * 10, 83), w2c_ref[0],
                 preferred_element_type=jnp.float32)
    for ki in range(1, 5):
        y2 = y2 + jnp.dot(p1[:, ki:ki + 10, :].reshape(tn * 10, 83),
                          w2c_ref[ki], preferred_element_type=jnp.float32)
    y2 = jnp.maximum(y2 + b2l_ref[...], 0.0)                    # (tn*10, 80) f32

    # ---- maxpool 2x2 on layer2: undecimated, decimation folded into fc1 -----
    mw2 = jnp.maximum(y2[:, 0:79], y2[:, 1:80])                 # (tn*10, 79)
    mw2 = mw2.reshape(tn * 5, 2, 79)
    p2 = jnp.maximum(mw2[:, 0, :], mw2[:, 1, :])                # (tn*5, 79)
    p2 = p2.reshape(tn, 5, 79).astype(jnp.bfloat16)             # rows=(n, oh3)

    # ---- fc1: 5 matmuls of K=79 (flatten + even-lane fold), N padded to 128 -
    h1 = jnp.dot(p2[:, 0, :], fc1c_ref[0], preferred_element_type=jnp.float32)
    for h in range(1, 5):
        h1 = h1 + jnp.dot(p2[:, h, :], fc1c_ref[h],
                          preferred_element_type=jnp.float32)
    h1 = jnp.maximum(h1 + fc1b_ref[...], 0.0)                   # (tn, 128) f32

    # ---- fc2 / fc3 (lane-padded to 128) -------------------------------------
    h2 = jnp.maximum(
        jnp.dot(h1.astype(jnp.bfloat16), fc2w_ref[...],
                preferred_element_type=jnp.float32) + fc2b_ref[...], 0.0)
    out_ref[...] = jnp.dot(h2.astype(jnp.bfloat16), fc3w_ref[...],
                           preferred_element_type=jnp.float32) + fc3b_ref[...]


# ---------------------------------------------------------------------------
# Host-side parameter preparation (layout plumbing, done ONCE — hoist/cached)
# ---------------------------------------------------------------------------
def prepare_params(params):
    w1, b1, w2, b2, fc1_w, fc1_b, fc2_w, fc2_b, fc3_w, fc3_b = [
        np.asarray(p, np.float32) for p in params]

    # conv1 weight with kernel-H folded into the contraction: (160, 84)
    # row = ki*32 + (ow + kj), col = co*28 + ow.
    w1c = np.zeros((160, 84), np.float32)
    for ki in range(5):
        for co in range(3):
            for ow in range(28):
                for kj in range(5):
                    w1c[ki * 32 + ow + kj, co * 28 + ow] = w1[co, 0, ki, kj]
    b1l = np.repeat(b1, 28)[None, :]                       # (1, 84)

    # conv2 weight with input channels + pool1 even-lane decimation folded:
    # (5, 83, 80); row = ci*28 + 2*(ow + kj), col = co*10 + ow.
    w2c = np.zeros((5, 83, 80), np.float32)
    for ki in range(5):
        for co in range(8):
            for ci in range(3):
                for ow in range(10):
                    for kj in range(5):
                        w2c[ki, ci * 28 + 2 * (ow + kj), co * 10 + ow] = \
                            w2[co, ci, ki, kj]
    b2l = np.repeat(b2, 10)[None, :]                       # (1, 80)

    # fc1 regrouped per pooled row h with pool2 even-lane decimation folded:
    # (5, 79, 128); fc1c[h, co*10 + 2*w, o] = fc1_w[o, co*25 + h*5 + w]; pad 120->128.
    fc1c = np.zeros((5, 79, 128), np.float32)
    for h in range(5):
        for co in range(8):
            for w in range(5):
                fc1c[h, co * 10 + 2 * w, :120] = fc1_w[:, co * 25 + h * 5 + w]
    fc1b = np.zeros((1, 128), np.float32)
    fc1b[0, :120] = fc1_b

    fc2w = np.zeros((128, 128), np.float32)
    fc2w[:120, :84] = fc2_w.T
    fc2b = np.zeros((1, 128), np.float32)
    fc2b[0, :84] = fc2_b

    fc3w = np.zeros((128, 128), np.float32)
    fc3w[:84, :NUM_CLASSES] = fc3_w.T
    fc3b = np.zeros((1, 128), np.float32)
    fc3b[0, :NUM_CLASSES] = fc3_b

    bf16 = lambda a: jnp.asarray(a, jnp.bfloat16)
    f32 = lambda a: jnp.asarray(a, jnp.float32)
    # Order must match the kernel argument order after the input.
    return (bf16(w1c), f32(b1l), bf16(w2c), f32(b2l),
            bf16(fc1c), f32(fc1b), bf16(fc2w), f32(fc2b),
            bf16(fc3w), f32(fc3b))


# ---------------------------------------------------------------------------
# Wrapper: batch-tiled grid, pipelined BlockSpecs, parallel batch axis
# ---------------------------------------------------------------------------
def lenet_half_forward(x, prepped_params, *, batch_tile=256):
    n = x.shape[0]
    assert x.shape[1:] == (1, 32, 32), "LeNet_half expects (N, 1, 32, 32) input"

    x3 = jnp.asarray(x, jnp.float32).reshape(n, 32, 32)
    # im2col over kernel-H (wrapper-side layout plumbing): (n, 28, 160) bf16.
    xi = jnp.concatenate([x3[:, k:k + 28, :] for k in range(5)], axis=-1)
    xi = xi.astype(jnp.bfloat16)

    n_pad8 = _round_up(n, 8)
    tn = min(batch_tile, n_pad8)
    if n_pad8 // tn < 2 and n_pad8 >= 16:
        # v7x megacore: keep >=2 grid steps so both TensorCores get work.
        tn = _round_up((n_pad8 + 1) // 2, 8)
    n_pad = _round_up(n_pad8, tn)
    if n_pad != n:
        xi = jnp.pad(xi, ((0, n_pad - n), (0, 0), (0, 0)))

    def full_spec(shape):
        return pl.BlockSpec(shape, lambda i, _nd=len(shape): (0,) * _nd)

    in_specs = [pl.BlockSpec((tn, 28, 160), lambda i: (i, 0, 0))]
    in_specs += [full_spec(tuple(p.shape)) for p in prepped_params]

    out = pl.pallas_call(
        lenet_half_kernel,
        out_shape=jax.ShapeDtypeStruct((n_pad, 128), jnp.float32),
        grid=(n_pad // tn,),
        in_specs=in_specs,
        out_specs=pl.BlockSpec((tn, 128), lambda i: (i, 0)),
        compiler_params=pltpu.CompilerParams(
            dimension_semantics=("parallel",),
            vmem_limit_bytes=48 * 1024 * 1024),
    )(xi, *prepped_params)

    return out[:n, :NUM_CLASSES]


# ---------------------------------------------------------------------------
# Params + pure-JAX reference (same semantics as the PyTorch forward)
# ---------------------------------------------------------------------------
def init_params(key):
    ks = jax.random.split(key, 5)
    w1 = 0.1 * jax.random.normal(ks[0], (3, 1, 5, 5), jnp.float32)
    w2 = 0.1 * jax.random.normal(ks[1], (8, 3, 5, 5), jnp.float32)
    fc1_w = 0.1 * jax.random.normal(ks[2], (120, 200), jnp.float32)
    fc2_w = 0.1 * jax.random.normal(ks[3], (84, 120), jnp.float32)
    fc3_w = 0.1 * jax.random.normal(ks[4], (NUM_CLASSES, 84), jnp.float32)
    # The PyTorch module fills every bias with 0 in __init__.
    b1 = jnp.zeros((3,), jnp.float32)
    b2 = jnp.zeros((8,), jnp.float32)
    fc1_b = jnp.zeros((120,), jnp.float32)
    fc2_b = jnp.zeros((84,), jnp.float32)
    fc3_b = jnp.zeros((NUM_CLASSES,), jnp.float32)
    return (w1, b1, w2, b2, fc1_w, fc1_b, fc2_w, fc2_b, fc3_w, fc3_b)


def ref_forward(x, params):
    w1, b1, w2, b2, fc1_w, fc1_b, fc2_w, fc2_b, fc3_w, fc3_b = params
    dn = ('NCHW', 'OIHW', 'NCHW')
    y = lax.conv_general_dilated(x, w1, (1, 1), 'VALID', dimension_numbers=dn)
    y = jnp.maximum(y + b1.reshape(1, -1, 1, 1), 0.0)
    y = lax.reduce_window(y, -jnp.inf, lax.max, (1, 1, 2, 2), (1, 1, 2, 2), 'VALID')
    y = lax.conv_general_dilated(y, w2, (1, 1), 'VALID', dimension_numbers=dn)
    y = jnp.maximum(y + b2.reshape(1, -1, 1, 1), 0.0)
    y = lax.reduce_window(y, -jnp.inf, lax.max, (1, 1, 2, 2), (1, 1, 2, 2), 'VALID')
    flat = y.reshape(y.shape[0], -1)
    f1 = jnp.maximum(flat @ fc1_w.T + fc1_b, 0.0)
    f2 = jnp.maximum(f1 @ fc2_w.T + fc2_b, 0.0)
    return f2 @ fc3_w.T + fc3_b


if __name__ == "__main__":
    key = jax.random.PRNGKey(0)
    k_param, k_x = jax.random.split(key)
    params = init_params(k_param)
    prepped = prepare_params(params)   # built + uploaded once, reused per call
    # LeNet_half's flatten (8*5*5=200) implies a 32x32 single-channel input.
    x = jax.random.normal(k_x, (2, 1, 32, 32), jnp.float32)

    out = jax.block_until_ready(lenet_half_forward(x, prepped))
    ref = jax.block_until_ready(ref_forward(x, params))

    assert out.shape == (2, NUM_CLASSES)
    max_diff = float(jnp.max(jnp.abs(out - ref)))
    if not bool(jnp.allclose(out, ref, atol=2e-2, rtol=2e-2)):
        raise AssertionError(f"Pallas kernel mismatch vs reference, max|diff|={max_diff}")
    print("KERNEL_OK")
</pallas_src>

<mosaic_0001>
module attributes {stable_mosaic.version = 11 : i64} {
  func.func @lenet_half_kernel(%arg0: i32, %arg1: memref<8x28x160xbf16, #tpu.memory_space<vmem>>, %arg2: memref<160x84xbf16, #tpu.memory_space<vmem>>, %arg3: memref<1x84xf32, #tpu.memory_space<vmem>>, %arg4: memref<5x83x80xbf16, #tpu.memory_space<vmem>>, %arg5: memref<1x80xf32, #tpu.memory_space<vmem>>, %arg6: memref<5x79x128xbf16, #tpu.memory_space<vmem>>, %arg7: memref<1x128xf32, #tpu.memory_space<vmem>>, %arg8: memref<128x128xbf16, #tpu.memory_space<vmem>>, %arg9: memref<1x128xf32, #tpu.memory_space<vmem>>, %arg10: memref<128x128xbf16, #tpu.memory_space<vmem>>, %arg11: memref<1x128xf32, #tpu.memory_space<vmem>>, %arg12: memref<8x128xf32, #tpu.memory_space<vmem>>) attributes {dimension_semantics = [#tpu.dimension_semantics<parallel>], iteration_bounds = array<i64: 1>, scalar_prefetch = 0 : i64, scratch_operands = 0 : i64, tpu.core_type = #tpu.core_type<tc>, window_params = [{transform_indices = @transform_0, window_bounds = array<i64: 8, 28, 160>}, {pipeline_mode = #tpu.pipeline_mode<synchronous>, transform_indices = @transform_1, window_bounds = array<i64: 160, 84>}, {pipeline_mode = #tpu.pipeline_mode<synchronous>, transform_indices = @transform_2, window_bounds = array<i64: 1, 84>}, {pipeline_mode = #tpu.pipeline_mode<synchronous>, transform_indices = @transform_3, window_bounds = array<i64: 5, 83, 80>}, {pipeline_mode = #tpu.pipeline_mode<synchronous>, transform_indices = @transform_4, window_bounds = array<i64: 1, 80>}, {pipeline_mode = #tpu.pipeline_mode<synchronous>, transform_indices = @transform_5, window_bounds = array<i64: 5, 79, 128>}, {pipeline_mode = #tpu.pipeline_mode<synchronous>, transform_indices = @transform_6, window_bounds = array<i64: 1, 128>}, {pipeline_mode = #tpu.pipeline_mode<synchronous>, transform_indices = @transform_7, window_bounds = array<i64: 128, 128>}, {pipeline_mode = #tpu.pipeline_mode<synchronous>, transform_indices = @transform_8, window_bounds = array<i64: 1, 128>}, {pipeline_mode = #tpu.pipeline_mode<synchronous>, transform_indices = @transform_9, window_bounds = array<i64: 128, 128>}, {pipeline_mode = #tpu.pipeline_mode<synchronous>, transform_indices = @transform_10, window_bounds = array<i64: 1, 128>}, {transform_indices = @transform_11, window_bounds = array<i64: 8, 128>}]} {
    %c0 = arith.constant 0 : index
    %c0_0 = arith.constant 0 : index
    %c0_1 = arith.constant 0 : index
    %0 = vector.load %arg1[%c0, %c0_0, %c0_1] : memref<8x28x160xbf16, #tpu.memory_space<vmem>>, vector<8x28x160xbf16>
    %1 = vector.shape_cast %0 : vector<8x28x160xbf16> to vector<224x160xbf16>
    %c0_2 = arith.constant 0 : index
    %c0_3 = arith.constant 0 : index
    %2 = vector.load %arg2[%c0_2, %c0_3] : memref<160x84xbf16, #tpu.memory_space<vmem>>, vector<160x84xbf16>
    %cst = arith.constant dense<0.000000e+00> : vector<224x84xf32>
    %3 = tpu.matmul %1, %2, %cst {dimension_numbers = #tpu.dot_dimension_numbers<[1], [0], [0], [1], [0, 0, 1, 1], [], []>} : vector<224x160xbf16>, vector<160x84xbf16>, vector<224x84xf32> -> vector<224x84xf32>
    %c0_4 = arith.constant 0 : index
    %c0_5 = arith.constant 0 : index
    %4 = vector.load %arg3[%c0_4, %c0_5] : memref<1x84xf32, #tpu.memory_space<vmem>>, vector<1x84xf32>
    %5 = vector.broadcast %4 : vector<1x84xf32> to vector<224x84xf32>
    %6 = arith.addf %3, %5 : vector<224x84xf32>
    %cst_6 = arith.constant 0.000000e+00 : f32
    %7 = vector.broadcast %cst_6 : f32 to vector<224x84xf32>
    %8 = arith.maximumf %6, %7 : vector<224x84xf32>
    %9 = vector.extract_strided_slice %8 {offsets = [0, 0], sizes = [224, 83], strides = [1, 1]} : vector<224x84xf32> to vector<224x83xf32>
    %10 = vector.extract_strided_slice %8 {offsets = [0, 1], sizes = [224, 83], strides = [1, 1]} : vector<224x84xf32> to vector<224x83xf32>
    %11 = arith.maximumf %9, %10 : vector<224x83xf32>
    %12 = vector.shape_cast %11 : vector<224x83xf32> to vector<112x2x83xf32>
    %13 = vector.extract_strided_slice %12 {offsets = [0, 0, 0], sizes = [112, 1, 83], strides = [1, 1, 1]} : vector<112x2x83xf32> to vector<112x1x83xf32>
    %14 = vector.shape_cast %13 : vector<112x1x83xf32> to vector<112x83xf32>
    %15 = vector.extract_strided_slice %12 {offsets = [0, 1, 0], sizes = [112, 1, 83], strides = [1, 1, 1]} : vector<112x2x83xf32> to vector<112x1x83xf32>
    %16 = vector.shape_cast %15 : vector<112x1x83xf32> to vector<112x83xf32>
    %17 = arith.maximumf %14, %16 : vector<112x83xf32>
    %18 = vector.shape_cast %17 : vector<112x83xf32> to vector<8x14x83xf32>
    %19 = arith.truncf %18 : vector<8x14x83xf32> to vector<8x14x83xbf16>
    %20 = vector.extract_strided_slice %19 {offsets = [0, 0, 0], sizes = [8, 10, 83], strides = [1, 1, 1]} : vector<8x14x83xbf16> to vector<8x10x83xbf16>
    %21 = vector.shape_cast %20 : vector<8x10x83xbf16> to vector<80x83xbf16>
    %c0_7 = arith.constant 0 : index
    %c0_8 = arith.constant 0 : index
    %c0_9 = arith.constant 0 : index
    %22 = vector.load %arg4[%c0_7, %c0_8, %c0_9] : memref<5x83x80xbf16, #tpu.memory_space<vmem>>, vector<1x83x80xbf16>
    %23 = vector.shape_cast %22 : vector<1x83x80xbf16> to vector<83x80xbf16>
    %cst_10 = arith.constant dense<0.000000e+00> : vector<80x80xf32>
    %24 = tpu.matmul %21, %23, %cst_10 {dimension_numbers = #tpu.dot_dimension_numbers<[1], [0], [0], [1], [0, 0, 1, 1], [], []>} : vector<80x83xbf16>, vector<83x80xbf16>, vector<80x80xf32> -> vector<80x80xf32>
    %25 = vector.extract_strided_slice %19 {offsets = [0, 1, 0], sizes = [8, 10, 83], strides = [1, 1, 1]} : vector<8x14x83xbf16> to vector<8x10x83xbf16>
    %26 = vector.shape_cast %25 : vector<8x10x83xbf16> to vector<80x83xbf16>
    %c1 = arith.constant 1 : index
    %c0_11 = arith.constant 0 : index
    %c0_12 = arith.constant 0 : index
    %27 = vector.load %arg4[%c1, %c0_11, %c0_12] : memref<5x83x80xbf16, #tpu.memory_space<vmem>>, vector<1x83x80xbf16>
    %28 = vector.shape_cast %27 : vector<1x83x80xbf16> to vector<83x80xbf16>
    %cst_13 = arith.constant dense<0.000000e+00> : vector<80x80xf32>
    %29 = tpu.matmul %26, %28, %cst_13 {dimension_numbers = #tpu.dot_dimension_numbers<[1], [0], [0], [1], [0, 0, 1, 1], [], []>} : vector<80x83xbf16>, vector<83x80xbf16>, vector<80x80xf32> -> vector<80x80xf32>
    %30 = arith.addf %24, %29 : vector<80x80xf32>
    %31 = vector.extract_strided_slice %19 {offsets = [0, 2, 0], sizes = [8, 10, 83], strides = [1, 1, 1]} : vector<8x14x83xbf16> to vector<8x10x83xbf16>
    %32 = vector.shape_cast %31 : vector<8x10x83xbf16> to vector<80x83xbf16>
    %c2 = arith.constant 2 : index
    %c0_14 = arith.constant 0 : index
    %c0_15 = arith.constant 0 : index
    %33 = vector.load %arg4[%c2, %c0_14, %c0_15] : memref<5x83x80xbf16, #tpu.memory_space<vmem>>, vector<1x83x80xbf16>
    %34 = vector.shape_cast %33 : vector<1x83x80xbf16> to vector<83x80xbf16>
    %cst_16 = arith.constant dense<0.000000e+00> : vector<80x80xf32>
    %35 = tpu.matmul %32, %34, %cst_16 {dimension_numbers = #tpu.dot_dimension_numbers<[1], [0], [0], [1], [0, 0, 1, 1], [], []>} : vector<80x83xbf16>, vector<83x80xbf16>, vector<80x80xf32> -> vector<80x80xf32>
    %36 = arith.addf %30, %35 : vector<80x80xf32>
    %37 = vector.extract_strided_slice %19 {offsets = [0, 3, 0], sizes = [8, 10, 83], strides = [1, 1, 1]} : vector<8x14x83xbf16> to vector<8x10x83xbf16>
    %38 = vector.shape_cast %37 : vector<8x10x83xbf16> to vector<80x83xbf16>
    %c3 = arith.constant 3 : index
    %c0_17 = arith.constant 0 : index
    %c0_18 = arith.constant 0 : index
    %39 = vector.load %arg4[%c3, %c0_17, %c0_18] : memref<5x83x80xbf16, #tpu.memory_space<vmem>>, vector<1x83x80xbf16>
    %40 = vector.shape_cast %39 : vector<1x83x80xbf16> to vector<83x80xbf16>
    %cst_19 = arith.constant dense<0.000000e+00> : vector<80x80xf32>
    %41 = tpu.matmul %38, %40, %cst_19 {dimension_numbers = #tpu.dot_dimension_numbers<[1], [0], [0], [1], [0, 0, 1, 1], [], []>} : vector<80x83xbf16>, vector<83x80xbf16>, vector<80x80xf32> -> vector<80x80xf32>
    %42 = arith.addf %36, %41 : vector<80x80xf32>
    %43 = vector.extract_strided_slice %19 {offsets = [0, 4, 0], sizes = [8, 10, 83], strides = [1, 1, 1]} : vector<8x14x83xbf16> to vector<8x10x83xbf16>
    %44 = vector.shape_cast %43 : vector<8x10x83xbf16> to vector<80x83xbf16>
    %c4 = arith.constant 4 : index
    %c0_20 = arith.constant 0 : index
    %c0_21 = arith.constant 0 : index
    %45 = vector.load %arg4[%c4, %c0_20, %c0_21] : memref<5x83x80xbf16, #tpu.memory_space<vmem>>, vector<1x83x80xbf16>
    %46 = vector.shape_cast %45 : vector<1x83x80xbf16> to vector<83x80xbf16>
    %cst_22 = arith.constant dense<0.000000e+00> : vector<80x80xf32>
    %47 = tpu.matmul %44, %46, %cst_22 {dimension_numbers = #tpu.dot_dimension_numbers<[1], [0], [0], [1], [0, 0, 1, 1], [], []>} : vector<80x83xbf16>, vector<83x80xbf16>, vector<80x80xf32> -> vector<80x80xf32>
    %48 = arith.addf %42, %47 : vector<80x80xf32>
    %c0_23 = arith.constant 0 : index
    %c0_24 = arith.constant 0 : index
    %49 = vector.load %arg5[%c0_23, %c0_24] : memref<1x80xf32, #tpu.memory_space<vmem>>, vector<1x80xf32>
    %50 = vector.broadcast %49 : vector<1x80xf32> to vector<80x80xf32>
    %51 = arith.addf %48, %50 : vector<80x80xf32>
    %cst_25 = arith.constant 0.000000e+00 : f32
    %52 = vector.broadcast %cst_25 : f32 to vector<80x80xf32>
    %53 = arith.maximumf %51, %52 : vector<80x80xf32>
    %54 = vector.extract_strided_slice %53 {offsets = [0, 0], sizes = [80, 79], strides = [1, 1]} : vector<80x80xf32> to vector<80x79xf32>
    %55 = vector.extract_strided_slice %53 {offsets = [0, 1], sizes = [80, 79], strides = [1, 1]} : vector<80x80xf32> to vector<80x79xf32>
    %56 = arith.maximumf %54, %55 : vector<80x79xf32>
    %57 = vector.shape_cast %56 : vector<80x79xf32> to vector<40x2x79xf32>
    %58 = vector.extract_strided_slice %57 {offsets = [0, 0, 0], sizes = [40, 1, 79], strides = [1, 1, 1]} : vector<40x2x79xf32> to vector<40x1x79xf32>
    %59 = vector.shape_cast %58 : vector<40x1x79xf32> to vector<40x79xf32>
    %60 = vector.extract_strided_slice %57 {offsets = [0, 1, 0], sizes = [40, 1, 79], strides = [1, 1, 1]} : vector<40x2x79xf32> to vector<40x1x79xf32>
    %61 = vector.shape_cast %60 : vector<40x1x79xf32> to vector<40x79xf32>
    %62 = arith.maximumf %59, %61 : vector<40x79xf32>
    %63 = vector.shape_cast %62 : vector<40x79xf32> to vector<8x5x79xf32>
    %64 = arith.truncf %63 : vector<8x5x79xf32> to vector<8x5x79xbf16>
    %65 = vector.extract_strided_slice %64 {offsets = [0, 0, 0], sizes = [8, 1, 79], strides = [1, 1, 1]} : vector<8x5x79xbf16> to vector<8x1x79xbf16>
    %66 = vector.shape_cast %65 : vector<8x1x79xbf16> to vector<8x79xbf16>
    %c0_26 = arith.constant 0 : index
    %c0_27 = arith.constant 0 : index
    %c0_28 = arith.constant 0 : index
    %67 = vector.load %arg6[%c0_26, %c0_27, %c0_28] : memref<5x79x128xbf16, #tpu.memory_space<vmem>>, vector<1x79x128xbf16>
    %68 = vector.shape_cast %67 : vector<1x79x128xbf16> to vector<79x128xbf16>
    %cst_29 = arith.constant dense<0.000000e+00> : vector<8x128xf32>
    %69 = tpu.matmul %66, %68, %cst_29 {dimension_numbers = #tpu.dot_dimension_numbers<[1], [0], [0], [1], [0, 0, 1, 1], [], []>} : vector<8x79xbf16>, vector<79x128xbf16>, vector<8x128xf32> -> vector<8x128xf32>
    %70 = vector.extract_strided_slice %64 {offsets = [0, 1, 0], sizes = [8, 1, 79], strides = [1, 1, 1]} : vector<8x5x79xbf16> to vector<8x1x79xbf16>
    %71 = vector.shape_cast %70 : vector<8x1x79xbf16> to vector<8x79xbf16>
    %c1_30 = arith.constant 1 : index
    %c0_31 = arith.constant 0 : index
    %c0_32 = arith.constant 0 : index
    %72 = vector.load %arg6[%c1_30, %c0_31, %c0_32] : memref<5x79x128xbf16, #tpu.memory_space<vmem>>, vector<1x79x128xbf16>
    %73 = vector.shape_cast %72 : vector<1x79x128xbf16> to vector<79x128xbf16>
    %cst_33 = arith.constant dense<0.000000e+00> : vector<8x128xf32>
    %74 = tpu.matmul %71, %73, %cst_33 {dimension_numbers = #tpu.dot_dimension_numbers<[1], [0], [0], [1], [0, 0, 1, 1], [], []>} : vector<8x79xbf16>, vector<79x128xbf16>, vector<8x128xf32> -> vector<8x128xf32>
    %75 = arith.addf %69, %74 : vector<8x128xf32>
    %76 = vector.extract_strided_slice %64 {offsets = [0, 2, 0], sizes = [8, 1, 79], strides = [1, 1, 1]} : vector<8x5x79xbf16> to vector<8x1x79xbf16>
    %77 = vector.shape_cast %76 : vector<8x1x79xbf16> to vector<8x79xbf16>
    %c2_34 = arith.constant 2 : index
    %c0_35 = arith.constant 0 : index
    %c0_36 = arith.constant 0 : index
    %78 = vector.load %arg6[%c2_34, %c0_35, %c0_36] : memref<5x79x128xbf16, #tpu.memory_space<vmem>>, vector<1x79x128xbf16>
    %79 = vector.shape_cast %78 : vector<1x79x128xbf16> to vector<79x128xbf16>
    %cst_37 = arith.constant dense<0.000000e+00> : vector<8x128xf32>
    %80 = tpu.matmul %77, %79, %cst_37 {dimension_numbers = #tpu.dot_dimension_numbers<[1], [0], [0], [1], [0, 0, 1, 1], [], []>} : vector<8x79xbf16>, vector<79x128xbf16>, vector<8x128xf32> -> vector<8x128xf32>
    %81 = arith.addf %75, %80 : vector<8x128xf32>
    %82 = vector.extract_strided_slice %64 {offsets = [0, 3, 0], sizes = [8, 1, 79], strides = [1, 1, 1]} : vector<8x5x79xbf16> to vector<8x1x79xbf16>
    %83 = vector.shape_cast %82 : vector<8x1x79xbf16> to vector<8x79xbf16>
    %c3_38 = arith.constant 3 : index
    %c0_39 = arith.constant 0 : index
    %c0_40 = arith.constant 0 : index
    %84 = vector.load %arg6[%c3_38, %c0_39, %c0_40] : memref<5x79x128xbf16, #tpu.memory_space<vmem>>, vector<1x79x128xbf16>
    %85 = vector.shape_cast %84 : vector<1x79x128xbf16> to vector<79x128xbf16>
    %cst_41 = arith.constant dense<0.000000e+00> : vector<8x128xf32>
    %86 = tpu.matmul %83, %85, %cst_41 {dimension_numbers = #tpu.dot_dimension_numbers<[1], [0], [0], [1], [0, 0, 1, 1], [], []>} : vector<8x79xbf16>, vector<79x128xbf16>, vector<8x128xf32> -> vector<8x128xf32>
    %87 = arith.addf %81, %86 : vector<8x128xf32>
    %88 = vector.extract_strided_slice %64 {offsets = [0, 4, 0], sizes = [8, 1, 79], strides = [1, 1, 1]} : vector<8x5x79xbf16> to vector<8x1x79xbf16>
    %89 = vector.shape_cast %88 : vector<8x1x79xbf16> to vector<8x79xbf16>
    %c4_42 = arith.constant 4 : index
    %c0_43 = arith.constant 0 : index
    %c0_44 = arith.constant 0 : index
    %90 = vector.load %arg6[%c4_42, %c0_43, %c0_44] : memref<5x79x128xbf16, #tpu.memory_space<vmem>>, vector<1x79x128xbf16>
    %91 = vector.shape_cast %90 : vector<1x79x128xbf16> to vector<79x128xbf16>
    %cst_45 = arith.constant dense<0.000000e+00> : vector<8x128xf32>
    %92 = tpu.matmul %89, %91, %cst_45 {dimension_numbers = #tpu.dot_dimension_numbers<[1], [0], [0], [1], [0, 0, 1, 1], [], []>} : vector<8x79xbf16>, vector<79x128xbf16>, vector<8x128xf32> -> vector<8x128xf32>
    %93 = arith.addf %87, %92 : vector<8x128xf32>
    %c0_46 = arith.constant 0 : index
    %c0_47 = arith.constant 0 : index
    %94 = vector.load %arg7[%c0_46, %c0_47] : memref<1x128xf32, #tpu.memory_space<vmem>>, vector<1x128xf32>
    %95 = vector.broadcast %94 : vector<1x128xf32> to vector<8x128xf32>
    %96 = arith.addf %93, %95 : vector<8x128xf32>
    %cst_48 = arith.constant 0.000000e+00 : f32
    %97 = vector.broadcast %cst_48 : f32 to vector<8x128xf32>
    %98 = arith.maximumf %96, %97 : vector<8x128xf32>
    %99 = arith.truncf %98 : vector<8x128xf32> to vector<8x128xbf16>
    %c0_49 = arith.constant 0 : index
    %c0_50 = arith.constant 0 : index
    %100 = vector.load %arg8[%c0_49, %c0_50] : memref<128x128xbf16, #tpu.memory_space<vmem>>, vector<128x128xbf16>
    %cst_51 = arith.constant dense<0.000000e+00> : vector<8x128xf32>
    %101 = tpu.matmul %99, %100, %cst_51 {dimension_numbers = #tpu.dot_dimension_numbers<[1], [0], [0], [1], [0, 0, 1, 1], [], []>} : vector<8x128xbf16>, vector<128x128xbf16>, vector<8x128xf32> -> vector<8x128xf32>
    %c0_52 = arith.constant 0 : index
    %c0_53 = arith.constant 0 : index
    %102 = vector.load %arg9[%c0_52, %c0_53] : memref<1x128xf32, #tpu.memory_space<vmem>>, vector<1x128xf32>
    %103 = vector.broadcast %102 : vector<1x128xf32> to vector<8x128xf32>
    %104 = arith.addf %101, %103 : vector<8x128xf32>
    %cst_54 = arith.constant 0.000000e+00 : f32
    %105 = vector.broadcast %cst_54 : f32 to vector<8x128xf32>
    %106 = arith.maximumf %104, %105 : vector<8x128xf32>
    %107 = arith.truncf %106 : vector<8x128xf32> to vector<8x128xbf16>
    %c0_55 = arith.constant 0 : index
    %c0_56 = arith.constant 0 : index
    %108 = vector.load %arg10[%c0_55, %c0_56] : memref<128x128xbf16, #tpu.memory_space<vmem>>, vector<128x128xbf16>
    %cst_57 = arith.constant dense<0.000000e+00> : vector<8x128xf32>
    %109 = tpu.matmul %107, %108, %cst_57 {dimension_numbers = #tpu.dot_dimension_numbers<[1], [0], [0], [1], [0, 0, 1, 1], [], []>} : vector<8x128xbf16>, vector<128x128xbf16>, vector<8x128xf32> -> vector<8x128xf32>
    %c0_58 = arith.constant 0 : index
    %c0_59 = arith.constant 0 : index
    %110 = vector.load %arg11[%c0_58, %c0_59] : memref<1x128xf32, #tpu.memory_space<vmem>>, vector<1x128xf32>
    %111 = vector.broadcast %110 : vector<1x128xf32> to vector<8x128xf32>
    %112 = arith.addf %109, %111 : vector<8x128xf32>
    %c0_60 = arith.constant 0 : index
    %c0_61 = arith.constant 0 : index
    %113 = vector.load %arg12[%c0_60, %c0_61] : memref<8x128xf32, #tpu.memory_space<vmem>>, vector<8x128xf32>
    tpu.vector_store %arg12[%c0_60, %c0_61], %112 {strides = array<i32>} : memref<8x128xf32, #tpu.memory_space<vmem>>, vector<8x128xf32>,
    return
  }
  func.func @transform_0(%arg0: i32) -> (i32, i32, i32) {
    %c0_i32 = arith.constant 0 : i32
    %c0_i32_0 = arith.constant 0 : i32
    %c0_i32_1 = arith.constant 0 : i32
    return %arg0, %c0_i32, %c0_i32_0 : i32, i32, i32
  }
  func.func @transform_1(%arg0: i32) -> (i32, i32) {
    %c0_i32 = arith.constant 0 : i32
    %c0_i32_0 = arith.constant 0 : i32
    %c0_i32_1 = arith.constant 0 : i32
    return %c0_i32, %c0_i32_0 : i32, i32
  }
  func.func @transform_2(%arg0: i32) -> (i32, i32) {
    %c0_i32 = arith.constant 0 : i32
    %c0_i32_0 = arith.constant 0 : i32
    %c0_i32_1 = arith.constant 0 : i32
    return %c0_i32, %c0_i32_0 : i32, i32
  }
  func.func @transform_3(%arg0: i32) -> (i32, i32, i32) {
    %c0_i32 = arith.constant 0 : i32
    %c0_i32_0 = arith.constant 0 : i32
    %c0_i32_1 = arith.constant 0 : i32
    %c0_i32_2 = arith.constant 0 : i32
    return %c0_i32, %c0_i32_0, %c0_i32_1 : i32, i32, i32
  }
  func.func @transform_4(%arg0: i32) -> (i32, i32) {
    %c0_i32 = arith.constant 0 : i32
    %c0_i32_0 = arith.constant 0 : i32
    %c0_i32_1 = arith.constant 0 : i32
    return %c0_i32, %c0_i32_0 : i32, i32
  }
  func.func @transform_5(%arg0: i32) -> (i32, i32, i32) {
    %c0_i32 = arith.constant 0 : i32
    %c0_i32_0 = arith.constant 0 : i32
    %c0_i32_1 = arith.constant 0 : i32
    %c0_i32_2 = arith.constant 0 : i32
    return %c0_i32, %c0_i32_0, %c0_i32_1 : i32, i32, i32
  }
  func.func @transform_6(%arg0: i32) -> (i32, i32) {
    %c0_i32 = arith.constant 0 : i32
    %c0_i32_0 = arith.constant 0 : i32
    %c0_i32_1 = arith.constant 0 : i32
    return %c0_i32, %c0_i32_0 : i32, i32
  }
  func.func @transform_7(%arg0: i32) -> (i32, i32) {
    %c0_i32 = arith.constant 0 : i32
    %c0_i32_0 = arith.constant 0 : i32
    %c0_i32_1 = arith.constant 0 : i32
    return %c0_i32, %c0_i32_0 : i32, i32
  }
  func.func @transform_8(%arg0: i32) -> (i32, i32) {
    %c0_i32 = arith.constant 0 : i32
    %c0_i32_0 = arith.constant 0 : i32
    %c0_i32_1 = arith.constant 0 : i32
    return %c0_i32, %c0_i32_0 : i32, i32
  }
  func.func @transform_9(%arg0: i32) -> (i32, i32) {
    %c0_i32 = arith.constant 0 : i32
    %c0_i32_0 = arith.constant 0 : i32
    %c0_i32_1 = arith.constant 0 : i32
    return %c0_i32, %c0_i32_0 : i32, i32
  }
  func.func @transform_10(%arg0: i32) -> (i32, i32) {
    %c0_i32 = arith.constant 0 : i32
    %c0_i32_0 = arith.constant 0 : i32
    %c0_i32_1 = arith.constant 0 : i32
    return %c0_i32, %c0_i32_0 : i32, i32
  }
  func.func @transform_11(%arg0: i32) -> (i32, i32) {
    %c0_i32 = arith.constant 0 : i32
    %c0_i32_0 = arith.constant 0 : i32
    return %arg0, %c0_i32 : i32, i32
  }
}

</mosaic_0001>

<llo_original>
// kernel: tpu_custom_call.1
$region0: #{tpu_custom_call.1}
  #allocation0 [shape = 'u32[]', space=smem, size = 0x4, offset = 0x4, fixed_abs, tag = 'smem constant byte address 0x4 - core index']
  #allocation1 [shape = 'u32[72,128]{1,0:T(1,128)}', space=vmem, size = 0x9000, scoped, tag = 'internal scratch']
  %s0 = inlined_call_operand.vmem [shape: bf16[8,28,160], index: 0, kind: input, shape index: {}]
  %s1 = inlined_call_operand.vmem [shape: bf16[160,84], index: 1, kind: input, shape index: {}]
  %s2 = inlined_call_operand.vmem [shape: f32[1,84], index: 2, kind: input, shape index: {}]
  %s3 = inlined_call_operand.vmem [shape: bf16[5,83,80], index: 3, kind: input, shape index: {}]
  %s4 = inlined_call_operand.vmem [shape: f32[1,80], index: 4, kind: input, shape index: {}]
  %s5 = inlined_call_operand.vmem [shape: bf16[5,79,128], index: 5, kind: input, shape index: {}]
  %s6 = inlined_call_operand.vmem [shape: f32[1,128], index: 6, kind: input, shape index: {}]
  %s7 = inlined_call_operand.vmem [shape: bf16[128,128], index: 7, kind: input, shape index: {}]
  %s8 = inlined_call_operand.vmem [shape: f32[1,128], index: 8, kind: input, shape index: {}]
  %s9 = inlined_call_operand.vmem [shape: bf16[128,128], index: 9, kind: input, shape index: {}]
  %s10 = inlined_call_operand.vmem [shape: f32[1,128], index: 10, kind: input, shape index: {}]
  %s11 = inlined_call_operand.hbm [shape: f32[8,128], index: 11, kind: output, shape index: {}]
  %s12 = sld [smem:[#allocation0]]
  $region54: #{tpu_custom_call.1} parent=0
    _
  %s14 = ssub.s32 1, %s12
  %s15 = scalar_select 0, %s14, %s12
  $region1: #{tpu_custom_call.1} parent=0
    #allocation2 [shape = 'u8[4096]{0}', space=vmem, size = 0x1000, scoped, tag = 'output window, operand 0, single buffered']
    #allocation3 [shape = 's32[1]{0}', space=sflag, size = 0x4, scoped, tag = 'scoped memory for tpu_custom_call.1']
    %16 = vsyncpa [#allocation3], 0
    // Predicated region
    $region2: #{tpu_custom_call.1} parent=1 // pred_check
      _
    $region3: #{tpu_custom_call.1} parent=1 // pred_check_branch
      %18 = sbr.rel (0) target = $region5
    $region4: #{tpu_custom_call.1} parent=1 // pred_region
      _
    $region5: #{tpu_custom_call.1} parent=1 // pred_fallthru
      _
    // Predicated region
    $region6: #{tpu_custom_call.1} parent=1 // pred_check
      _
    $region7: #{tpu_custom_call.1} parent=1 // pred_check_branch
      %20 = sbr.rel (0) target = $region9
    $region8: #{tpu_custom_call.1} parent=1 // pred_region
      _
    $region9: #{tpu_custom_call.1} parent=1 // pred_fallthru
      _
    // Predicated region
    $region10: #{tpu_custom_call.1} parent=1 // pred_check
      _
    $region11: #{tpu_custom_call.1} parent=1 // pred_check_branch
      %22 = sbr.rel (0) target = $region13
    $region12: #{tpu_custom_call.1} parent=1 // pred_region
      _
    $region13: #{tpu_custom_call.1} parent=1 // pred_fallthru
      _
    // Predicated region
    $region14: #{tpu_custom_call.1} parent=1 // pred_check
      _
    $region15: #{tpu_custom_call.1} parent=1 // pred_check_branch
      %24 = sbr.rel (0) target = $region17
    $region16: #{tpu_custom_call.1} parent=1 // pred_region
      _
    $region17: #{tpu_custom_call.1} parent=1 // pred_fallthru
      _
    // Predicated region
    $region18: #{tpu_custom_call.1} parent=1 // pred_check
      _
    $region19: #{tpu_custom_call.1} parent=1 // pred_check_branch
      %26 = sbr.rel (0) target = $region21
    $region20: #{tpu_custom_call.1} parent=1 // pred_region
      _
    $region21: #{tpu_custom_call.1} parent=1 // pred_fallthru
      _
    // Predicated region
    $region22: #{tpu_custom_call.1} parent=1 // pred_check
      _
    $region23: #{tpu_custom_call.1} parent=1 // pred_check_branch
      %28 = sbr.rel (0) target = $region25
    $region24: #{tpu_custom_call.1} parent=1 // pred_region
      _
    $region25: #{tpu_custom_call.1} parent=1 // pred_fallthru
      _
    // Predicated region
    $region26: #{tpu_custom_call.1} parent=1 // pred_check
      _
    $region27: #{tpu_custom_call.1} parent=1 // pred_check_branch
      %30 = sbr.rel (0) target = $region29
    $region28: #{tpu_custom_call.1} parent=1 // pred_region
      _
    $region29: #{tpu_custom_call.1} parent=1 // pred_fallthru
      _
    // Predicated region
    $region30: #{tpu_custom_call.1} parent=1 // pred_check
      _
    $region31: #{tpu_custom_call.1} parent=1 // pred_check_branch
      %32 = sbr.rel (0) target = $region33
    $region32: #{tpu_custom_call.1} parent=1 // pred_region
      _
    $region33: #{tpu_custom_call.1} parent=1 // pred_fallthru
      _
    // Predicated region
    $region34: #{tpu_custom_call.1} parent=1 // pred_check
      _
    $region35: #{tpu_custom_call.1} parent=1 // pred_check_branch
      %34 = sbr.rel (0) target = $region37
    $region36: #{tpu_custom_call.1} parent=1 // pred_region
      _
    $region37: #{tpu_custom_call.1} parent=1 // pred_fallthru
      _
    // Predicated region
    $region38: #{tpu_custom_call.1} parent=1 // pred_check
      _
    $region39: #{tpu_custom_call.1} parent=1 // pred_check_branch
      %36 = sbr.rel (0) target = $region41
    $region40: #{tpu_custom_call.1} parent=1 // pred_region
      _
    $region41: #{tpu_custom_call.1} parent=1 // pred_fallthru
      _
    // Predicated region
    $region42: #{tpu_custom_call.1} parent=1 // pred_check
      _
    $region43: #{tpu_custom_call.1} parent=1 // pred_check_branch
      %38 = sbr.rel (0) target = $region45
    $region44: #{tpu_custom_call.1} parent=1 // pred_region
      _
    $region45: #{tpu_custom_call.1} parent=1 // pred_fallthru
      _
    %v40 = vld [vmem:[%s0] sm:$0xff]
    %v41 = vld [vmem:[%s0 + $0x8] sm:$0xff]
    %v42 = vld [vmem:[%s0 + $0x10] sm:$0xff]
    %v43 = vld [vmem:[%s0 + $0x18] sm:$0x33]
    %v44 = vld [vmem:[%s0 + $0x20] sm:$0xff]
    %v45 = vld [vmem:[%s0 + $0x28] sm:$0xff]
    %v46 = vld [vmem:[%s0 + $0x30] sm:$0xff]
    %v47 = vld [vmem:[%s0 + $0x38] sm:$0x33]
    %v48 = vld [vmem:[%s0 + $0x40] sm:$0xff]
    %v49 = vld [vmem:[%s0 + $0x48] sm:$0xff]
    %v50 = vld [vmem:[%s0 + $0x50] sm:$0xff]
    %v51 = vld [vmem:[%s0 + $0x58] sm:$0x33]
    %v52 = vld [vmem:[%s0 + $0x60] sm:$0xff]
    %v53 = vld [vmem:[%s0 + $0x68] sm:$0xff]
    %v54 = vld [vmem:[%s0 + $0x70] sm:$0xff]
    %v55 = vld [vmem:[%s0 + $0x78] sm:$0x33]
    %v56 = vld [vmem:[%s0 + $0x80] sm:$0xff]
    %v57 = vld [vmem:[%s0 + $0x88] sm:$0xff]
    %v58 = vld [vmem:[%s0 + $0x90] sm:$0xff]
    %v59 = vld [vmem:[%s0 + $0x98] sm:$0x33]
    %v60 = vld [vmem:[%s0 + $0xa0] sm:$0xff]
    %v61 = vld [vmem:[%s0 + $0xa8] sm:$0xff]
    %v62 = vld [vmem:[%s0 + $0xb0] sm:$0xff]
    %v63 = vld [vmem:[%s0 + $0xb8] sm:$0x33]
    %v64 = vld [vmem:[%s0 + $0xc0] sm:$0xff]
    %v65 = vld [vmem:[%s0 + $0xc8] sm:$0xff]
    %v66 = vld [vmem:[%s0 + $0xd0] sm:$0xff]
    %v67 = vld [vmem:[%s0 + $0xd8] sm:$0x33]
    %v68 = vld [vmem:[%s0 + $0xe0] sm:$0xff]
    %v69 = vld [vmem:[%s0 + $0xe8] sm:$0xff]
    %v70 = vld [vmem:[%s0 + $0xf0] sm:$0xff]
    %v71 = vld [vmem:[%s0 + $0xf8] sm:$0x33]
    %v104 = vrot.slane %v40, 2
    %v105 = vrot.slane %v41, 2
    %v106 = vrot.slane %v42, 2
    %v107 = vrot.slane %v43, 2
    %v108 = vrot.slane %v44, 2
    %v109 = vrot.slane %v45, 2
    %v110 = vrot.slane %v46, 2
    %v111 = vrot.slane %v47, 2
    %v112 = vrot.slane %v48, 2
    %v113 = vrot.slane %v49, 2
    %v114 = vrot.slane %v50, 2
    %v115 = vrot.slane %v51, 2
    %v116 = vrot.slane %v52, 2
    %v117 = vrot.slane %v53, 2
    %v118 = vrot.slane %v54, 2
    %v119 = vrot.slane %v55, 2
    %v120 = vrot.slane %v56, 2
    %v121 = vrot.slane %v57, 2
    %v122 = vrot.slane %v58, 2
    %v123 = vrot.slane %v59, 2
    %v124 = vrot.slane %v60, 2
    %v125 = vrot.slane %v61, 2
    %v126 = vrot.slane %v62, 2
    %v127 = vrot.slane %v63, 2
    %v128 = vrot.slane %v64, 2
    %v129 = vrot.slane %v65, 2
    %v130 = vrot.slane %v66, 2
    %v131 = vrot.slane %v67, 2
    %v132 = vrot.slane %v68, 2
    %v133 = vrot.slane %v69, 2
    %v134 = vrot.slane %v70, 2
    %v135 = vrot.slane %v71, 2
    %vm136 = vcmask 1041408
    %v139 = vsel %vm136, %v40, %v104
    %vm140 = vcmask 1043458
    %v141 = vsel %vm140, %v40, %v104
    %v143 = vrot.slane %v141, 2
    %v146 = vsel %vm136, %v41, %v105
    %v147 = vsel %vm140, %v41, %v105
    %v149 = vrot.slane %v147, 2
    %v152 = vsel %vm136, %v42, %v106
    %v153 = vsel %vm140, %v42, %v106
    %v155 = vrot.slane %v153, 2
    %v158 = vsel %vm136, %v43, %v107
    %v161 = vsel %vm136, %v44, %v108
    %v162 = vsel %vm140, %v44, %v108
    %v164 = vrot.slane %v162, 2
    %v167 = vsel %vm136, %v45, %v109
    %v168 = vsel %vm140, %v45, %v109
    %v170 = vrot.slane %v168, 2
    %v173 = vsel %vm136, %v46, %v110
    %v174 = vsel %vm140, %v46, %v110
    %v176 = vrot.slane %v174, 2
    %v179 = vsel %vm136, %v47, %v111
    %v182 = vsel %vm136, %v48, %v112
    %v183 = vsel %vm140, %v48, %v112
    %v185 = vrot.slane %v183, 2
    %v188 = vsel %vm136, %v49, %v113
    %v189 = vsel %vm140, %v49, %v113
    %v191 = vrot.slane %v189, 2
    %v194 = vsel %vm136, %v50, %v114
    %v195 = vsel %vm140, %v50, %v114
    %v197 = vrot.slane %v195, 2
    %v200 = vsel %vm136, %v51, %v115
    %v203 = vsel %vm136, %v52, %v116
    %v204 = vsel %vm140, %v52, %v116
    %v206 = vrot.slane %v204, 2
    %v209 = vsel %vm136, %v53, %v117
    %v210 = vsel %vm140, %v53, %v117
    %v212 = vrot.slane %v210, 2
    %v215 = vsel %vm136, %v54, %v118
    %v216 = vsel %vm140, %v54, %v118
    %v218 = vrot.slane %v216, 2
    %v221 = vsel %vm136, %v55, %v119
    %v224 = vsel %vm136, %v56, %v120
    %v225 = vsel %vm140, %v56, %v120
    %v227 = vrot.slane %v225, 2
    %v230 = vsel %vm136, %v57, %v121
    %v231 = vsel %vm140, %v57, %v121
    %v233 = vrot.slane %v231, 2
    %v236 = vsel %vm136, %v58, %v122
    %v237 = vsel %vm140, %v58, %v122
    %v239 = vrot.slane %v237, 2
    %v242 = vsel %vm136, %v59, %v123
    %v245 = vsel %vm136, %v60, %v124
    %v246 = vsel %vm140, %v60, %v124
    %v248 = vrot.slane %v246, 2
    %v251 = vsel %vm136, %v61, %v125
    %v252 = vsel %vm140, %v61, %v125
    %v254 = vrot.slane %v252, 2
    %v257 = vsel %vm136, %v62, %v126
    %v258 = vsel %vm140, %v62, %v126
    %v260 = vrot.slane %v258, 2
    %v263 = vsel %vm136, %v63, %v127
    %v266 = vsel %vm136, %v64, %v128
    %v267 = vsel %vm140, %v64, %v128
    %v269 = vrot.slane %v267, 2
    %v272 = vsel %vm136, %v65, %v129
    %v273 = vsel %vm140, %v65, %v129
    %v275 = vrot.slane %v273, 2
    %v278 = vsel %vm136, %v66, %v130
    %v279 = vsel %vm140, %v66, %v130
    %v281 = vrot.slane %v279, 2
    %v284 = vsel %vm136, %v67, %v131
    %v287 = vsel %vm136, %v68, %v132
    %v288 = vsel %vm140, %v68, %v132
    %v290 = vrot.slane %v288, 2
    %v293 = vsel %vm136, %v69, %v133
    %v294 = vsel %vm140, %v69, %v133
    %v296 = vrot.slane %v294, 2
    %v299 = vsel %vm136, %v70, %v134
    %v300 = vsel %vm140, %v70, %v134
    %v302 = vrot.slane %v300, 2
    %v305 = vsel %vm136, %v71, %v135
    %v306 = vld [vmem:[%s1] sm:$0xf]
    %v307 = vld [vmem:[%s1 + $0x4] sm:$0xf]
    %v308 = vld [vmem:[%s1 + $0x8] sm:$0xf]
    %v309 = vld [vmem:[%s1 + $0xc] sm:$0xf]
    %v310 = vld [vmem:[%s1 + $0x10] sm:$0xf]
    %v311 = vld [vmem:[%s1 + $0x14] sm:$0xf]
    %v312 = vld [vmem:[%s1 + $0x18] sm:$0xf]
    %v313 = vld [vmem:[%s1 + $0x1c] sm:$0xf]
    %v314 = vld [vmem:[%s1 + $0x20] sm:$0xf]
    %v315 = vld [vmem:[%s1 + $0x24] sm:$0xf]
    %v316 = vld [vmem:[%s1 + $0x28] sm:$0xf]
    %v317 = vld [vmem:[%s1 + $0x2c] sm:$0xf]
    %v318 = vld [vmem:[%s1 + $0x30] sm:$0xf]
    %v319 = vld [vmem:[%s1 + $0x34] sm:$0xf]
    %v320 = vld [vmem:[%s1 + $0x38] sm:$0xf]
    %v321 = vld [vmem:[%s1 + $0x3c] sm:$0xf]
    %v322 = vld [vmem:[%s1 + $0x40] sm:$0xf]
    %v323 = vld [vmem:[%s1 + $0x44] sm:$0xf]
    %v324 = vld [vmem:[%s1 + $0x48] sm:$0xf]
    %v325 = vld [vmem:[%s1 + $0x4c] sm:$0xf]
    %v326 = vld [vmem:[%s2] sm:$0x1]
    %v328 = vperm.slane %v326, 0
    %330 = vst [vmem:[#allocation1] ss:$4 sm:$0xff] %v139
    %s332 = scalar_lea.vmem [#allocation1], 1
    %333 = vst [vmem:[%s332] ss:$4 sm:$0xff] %v143
    %s334 = scalar_lea.vmem [#allocation1], 2
    %335 = vst [vmem:[%s334] ss:$4 sm:$0xff] %v146
    %s337 = scalar_lea.vmem [#allocation1], 3
    %338 = vst [vmem:[%s337] ss:$4 sm:$0xff] %v149
    %s339 = scalar_lea.vmem [#allocation1], 32
    %340 = vst [vmem:[%s339] ss:$4 sm:$0xff] %v152
    %s342 = scalar_lea.vmem [#allocation1], 33
    %343 = vst [vmem:[%s342] ss:$4 sm:$0xff] %v155
    %s344 = scalar_lea.vmem [#allocation1], 34
    %345 = vst [vmem:[%s344] ss:$4 sm:$0xff] %v158
    %s346 = scalar_lea.vmem [#allocation1], 35
    %347 = vst [vmem:[%s346] ss:$4 sm:$0xff] %v161
    %v348 = vld.sshfl [vmem:[#allocation1] sm:$0xff pattern:$0x73625140]
    %v349 = vld.sshfl [vmem:[#allocation1 + $0x8] sm:$0xff pattern:$0x73625140]
    %v350 = vld.sshfl [vmem:[#allocation1 + $0x20] sm:$0xff pattern:$0x73625140]
    %v351 = vld.sshfl [vmem:[#allocation1 + $0x28] sm:$0xff pattern:$0x73625140]
    %353 = vst [vmem:[#allocation1] ss:$4 sm:$0xff] %v164
    %354 = vst [vmem:[%s332] ss:$4 sm:$0xff] %v167
    %356 = vst [vmem:[%s334] ss:$4 sm:$0xff] %v170
    %357 = vst [vmem:[%s337] ss:$4 sm:$0xff] %v173
    %359 = vst [vmem:[%s339] ss:$4 sm:$0xff] %v176
    %360 = vst [vmem:[%s342] ss:$4 sm:$0xff] %v179
    %361 = vst [vmem:[%s344] ss:$4 sm:$0xff] %v182
    %363 = vst [vmem:[%s346] ss:$4 sm:$0xff] %v185
    %v364 = vld.sshfl [vmem:[#allocation1] sm:$0xff pattern:$0x73625140]
    %v365 = vld.sshfl [vmem:[#allocation1 + $0x8] sm:$0xff pattern:$0x73625140]
    %v366 = vld.sshfl [vmem:[#allocation1 + $0x20] sm:$0xff pattern:$0x73625140]
    %v367 = vld.sshfl [vmem:[#allocation1 + $0x28] sm:$0xff pattern:$0x73625140]
    %368 = vst [vmem:[#allocation1] ss:$4 sm:$0xff] %v188
    %370 = vst [vmem:[%s332] ss:$4 sm:$0xff] %v191
    %371 = vst [vmem:[%s334] ss:$4 sm:$0xff] %v194
    %373 = vst [vmem:[%s337] ss:$4 sm:$0xff] %v197
    %374 = vst [vmem:[%s339] ss:$4 sm:$0xff] %v200
    %375 = vst [vmem:[%s342] ss:$4 sm:$0xff] %v203
    %377 = vst [vmem:[%s344] ss:$4 sm:$0xff] %v206
    %378 = vst [vmem:[%s346] ss:$4 sm:$0xff] %v209
    %v379 = vld.sshfl [vmem:[#allocation1] sm:$0xff pattern:$0x73625140]
    %v380 = vld.sshfl [vmem:[#allocation1 + $0x8] sm:$0xff pattern:$0x73625140]
    %v381 = vld.sshfl [vmem:[#allocation1 + $0x20] sm:$0xff pattern:$0x73625140]
    %v382 = vld.sshfl [vmem:[#allocation1 + $0x28] sm:$0xff pattern:$0x73625140]
    %384 = vst [vmem:[#allocation1] ss:$4 sm:$0xff] %v212
    %385 = vst [vmem:[%s332] ss:$4 sm:$0xff] %v215
    %387 = vst [vmem:[%s334] ss:$4 sm:$0xff] %v218
    %388 = vst [vmem:[%s337] ss:$4 sm:$0xff] %v221
    %389 = vst [vmem:[%s339] ss:$4 sm:$0xff] %v224
    %391 = vst [vmem:[%s342] ss:$4 sm:$0xff] %v227
    %392 = vst [vmem:[%s344] ss:$4 sm:$0xff] %v230
    %394 = vst [vmem:[%s346] ss:$4 sm:$0xff] %v233
    %v395 = vld.sshfl [vmem:[#allocation1] sm:$0xff pattern:$0x73625140]
    %v396 = vld.sshfl [vmem:[#allocation1 + $0x8] sm:$0xff pattern:$0x73625140]
    %v397 = vld.sshfl [vmem:[#allocation1 + $0x20] sm:$0xff pattern:$0x73625140]
    %v398 = vld.sshfl [vmem:[#allocation1 + $0x28] sm:$0xff pattern:$0x73625140]
    %399 = vst [vmem:[#allocation1] ss:$4 sm:$0xff] %v236
    %401 = vst [vmem:[%s332] ss:$4 sm:$0xff] %v239
    %402 = vst [vmem:[%s334] ss:$4 sm:$0xff] %v242
    %403 = vst [vmem:[%s337] ss:$4 sm:$0xff] %v245
    %405 = vst [vmem:[%s339] ss:$4 sm:$0xff] %v248
    %406 = vst [vmem:[%s342] ss:$4 sm:$0xff] %v251
    %408 = vst [vmem:[%s344] ss:$4 sm:$0xff] %v254
    %409 = vst [vmem:[%s346] ss:$4 sm:$0xff] %v257
    %v410 = vld.sshfl [vmem:[#allocation1] sm:$0xff pattern:$0x73625140]
    %v411 = vld.sshfl [vmem:[#allocation1 + $0x8] sm:$0xff pattern:$0x73625140]
    %v412 = vld.sshfl [vmem:[#allocation1 + $0x20] sm:$0xff pattern:$0x73625140]
    %v413 = vld.sshfl [vmem:[#allocation1 + $0x28] sm:$0xff pattern:$0x73625140]
    %415 = vst [vmem:[#allocation1] ss:$4 sm:$0xff] %v260
    %416 = vst [vmem:[%s332] ss:$4 sm:$0xff] %v263
    %417 = vst [vmem:[%s334] ss:$4 sm:$0xff] %v266
    %419 = vst [vmem:[%s337] ss:$4 sm:$0xff] %v269
    %420 = vst [vmem:[%s339] ss:$4 sm:$0xff] %v272
    %422 = vst [vmem:[%s342] ss:$4 sm:$0xff] %v275
    %423 = vst [vmem:[%s344] ss:$4 sm:$0xff] %v278
    %425 = vst [vmem:[%s346] ss:$4 sm:$0xff] %v281
    %v426 = vld.sshfl [vmem:[#allocation1] sm:$0xff pattern:$0x73625140]
    %v427 = vld.sshfl [vmem:[#allocation1 + $0x8] sm:$0xff pattern:$0x73625140]
    %v428 = vld.sshfl [vmem:[#allocation1 + $0x20] sm:$0xff pattern:$0x73625140]
    %v429 = vld.sshfl [vmem:[#allocation1 + $0x28] sm:$0xff pattern:$0x73625140]
    %430 = vst [vmem:[#allocation1] ss:$4 sm:$0xff] %v284
    %431 = vst [vmem:[%s332] ss:$4 sm:$0xff] %v287
    %433 = vst [vmem:[%s334] ss:$4 sm:$0xff] %v290
    %434 = vst [vmem:[%s337] ss:$4 sm:$0xff] %v293
    %436 = vst [vmem:[%s339] ss:$4 sm:$0xff] %v296
    %437 = vst [vmem:[%s342] ss:$4 sm:$0xff] %v299
    %439 = vst [vmem:[%s344] ss:$4 sm:$0xff] %v302
    %440 = vst [vmem:[%s346] ss:$4 sm:$0xff] %v305
    %v441 = vld.sshfl [vmem:[#allocation1] sm:$0xff pattern:$0x73625140]
    %v442 = vld.sshfl [vmem:[#allocation1 + $0x8] sm:$0xff pattern:$0x73625140]
    %v443 = vld.sshfl [vmem:[#allocation1 + $0x20] sm:$0xff pattern:$0x73625140]
    %v444 = vld.sshfl [vmem:[#allocation1 + $0x28] sm:$0xff pattern:$0x73625140]
    %v479 = vunpack.c.l.b16 %v306
    %v480 = vunpack.c.l.b16 %v307
    %v481 = vunpack.c.l.b16 %v308
    %v482 = vunpack.c.l.b16 %v309
    %v483 = vunpack.c.l.b16 %v310
    %v484 = vunpack.c.l.b16 %v311
    %v485 = vunpack.c.l.b16 %v312
    %v486 = vunpack.c.l.b16 %v313
    %v487 = vunpack.c.l.b16 %v314
    %v488 = vunpack.c.l.b16 %v315
    %v489 = vunpack.c.l.b16 %v316
    %v490 = vunpack.c.l.b16 %v317
    %v491 = vunpack.c.l.b16 %v318
    %v492 = vunpack.c.l.b16 %v319
    %v493 = vunpack.c.l.b16 %v320
    %v494 = vunpack.c.l.b16 %v321
    %v495 = vunpack.c.l.b16 %v322
    %v496 = vunpack.c.l.b16 %v323
    %v497 = vunpack.c.l.b16 %v324
    %v498 = vunpack.c.l.b16 %v325
    %v499 = vpack.c.b16 %v480, %v479
    %v500 = vpack.c.b16 %v482, %v481
    %v501 = vpack.c.b16 %v484, %v483
    %v502 = vpack.c.b16 %v486, %v485
    %v503 = vpack.c.b16 %v488, %v487
    %v504 = vpack.c.b16 %v490, %v489
    %v505 = vpack.c.b16 %v492, %v491
    %v506 = vpack.c.b16 %v494, %v493
    %v507 = vpack.c.b16 %v496, %v495
    %v508 = vpack.c.b16 %v498, %v497
    %vm519 = vcmask 261120
    %v520 = vsel %vm519, %v349, 0
    %v522 = vsel %vm519, %v351, 0
    %v524 = vsel %vm519, %v365, 0
    %v526 = vsel %vm519, %v367, 0
    %v528 = vsel %vm519, %v380, 0
    %v530 = vsel %vm519, %v382, 0
    %v532 = vsel %vm519, %v396, 0
    %v534 = vsel %vm519, %v398, 0
    %v536 = vsel %vm519, %v411, 0
    %v538 = vsel %vm519, %v413, 0
    %v540 = vsel %vm519, %v427, 0
    %v542 = vsel %vm519, %v429, 0
    %v544 = vsel %vm519, %v442, 0
    %v546 = vsel %vm519, %v444, 0
    %548 = vmatpush.bf16.msra.mxu0 %v506
    %549 = vmatpush.bf16.msra.mxu0 %v505
    %550 = vmatpush.bf16.msra.mxu0 %v504
    %551 = vmatpush.bf16.msra.mxu0 %v503
    %552 = vmatpush.bf16.msra.mxu0 %v502
    %553 = vmatpush.bf16.msra.mxu0 %v501
    %554 = vmatpush.bf16.msra.mxu0 %v500
    %555 = vmatpush.bf16.msra.mxu0 %v499
    %556 = vmatmul.bf16.gmra.mxu0 %v348
    %v557 = vpop.f32.mrf.mxu0
    %v558 = vadd.f32 %v328, %v557
    %v559 = vpop.f32.mrf.mxu0
    %v560 = vadd.f32 %v328, %v559
    %561 = vmatmul.bf16.gmra.mxu0 %v350
    %v562 = vpop.f32.mrf.mxu0
    %v563 = vadd.f32 %v328, %v562
    %v564 = vpop.f32.mrf.mxu0
    %v565 = vadd.f32 %v328, %v564
    %566 = vmatmul.bf16.gmra.mxu0 %v364
    %v567 = vpop.f32.mrf.mxu0
    %v568 = vadd.f32 %v328, %v567
    %v569 = vpop.f32.mrf.mxu0
    %v570 = vadd.f32 %v328, %v569
    %571 = vmatmul.bf16.gmra.mxu0 %v366
    %v572 = vpop.f32.mrf.mxu0
    %v573 = vadd.f32 %v328, %v572
    %v574 = vpop.f32.mrf.mxu0
    %v575 = vadd.f32 %v328, %v574
    %576 = vmatmul.bf16.gmra.mxu0 %v379
    %v577 = vpop.f32.mrf.mxu0
    %v578 = vadd.f32 %v328, %v577
    %v579 = vpop.f32.mrf.mxu0
    %v580 = vadd.f32 %v328, %v579
    %581 = vmatmul.bf16.gmra.mxu0 %v381
    %v582 = vpop.f32.mrf.mxu0
    %v583 = vadd.f32 %v328, %v582
    %v584 = vpop.f32.mrf.mxu0
    %v585 = vadd.f32 %v328, %v584
    %586 = vmatmul.bf16.gmra.mxu0 %v395
    %v587 = vpop.f32.mrf.mxu0
    %v588 = vadd.f32 %v328, %v587
    %v589 = vpop.f32.mrf.mxu0
    %v590 = vadd.f32 %v328, %v589
    %591 = vmatmul.bf16.gmra.mxu0 %v397
    %v592 = vpop.f32.mrf.mxu0
    %v593 = vadd.f32 %v328, %v592
    %v594 = vpop.f32.mrf.mxu0
    %v595 = vadd.f32 %v328, %v594
    %596 = vmatmul.bf16.gmra.mxu0 %v410
    %v597 = vpop.f32.mrf.mxu0
    %v598 = vadd.f32 %v328, %v597
    %v599 = vpop.f32.mrf.mxu0
    %v600 = vadd.f32 %v328, %v599
    %601 = vmatmul.bf16.gmra.mxu0 %v412
    %v602 = vpop.f32.mrf.mxu0
    %v603 = vadd.f32 %v328, %v602
    %v604 = vpop.f32.mrf.mxu0
    %v605 = vadd.f32 %v328, %v604
    %606 = vmatmul.bf16.gmra.mxu0 %v426
    %v607 = vpop.f32.mrf.mxu0
    %v608 = vadd.f32 %v328, %v607
    %v609 = vpop.f32.mrf.mxu0
    %v610 = vadd.f32 %v328, %v609
    %611 = vmatmul.bf16.gmra.mxu0 %v428
    %v612 = vpop.f32.mrf.mxu0
    %v613 = vadd.f32 %v328, %v612
    %v614 = vpop.f32.mrf.mxu0
    %v615 = vadd.f32 %v328, %v614
    %616 = vmatmul.bf16.gmra.mxu0 %v441
    %v617 = vpop.f32.mrf.mxu0
    %v618 = vadd.f32 %v328, %v617
    %v619 = vpop.f32.mrf.mxu0
    %v620 = vadd.f32 %v328, %v619
    %621 = vmatmul.bf16.gmra.mxu0 %v443
    %v622 = vpop.f32.mrf.mxu0
    %v623 = vadd.f32 %v328, %v622
    %v624 = vpop.f32.mrf.mxu0
    %v625 = vadd.f32 %v328, %v624
    %626 = vdwg.mxu0
    %627 = vmatpush.bf16.msra.mxu0 0
    %628 = vmatpush.bf16.msra.mxu0 0
    %629 = vmatpush.bf16.msra.mxu0 0
    %630 = vmatpush.bf16.msra.mxu0 0
    %631 = vmatpush.bf16.msra.mxu0 0
    %632 = vmatpush.bf16.msra.mxu0 0
    %633 = vmatpush.bf16.msra.mxu0 %v508
    %634 = vmatpush.bf16.msra.mxu0 %v507
    %635 = vmatmul.bf16.gmra.mxu0 %v520
    %v636 = vpop.f32.mrf.mxu0
    %v637 = vadd.f32 %v558, %v636
    %v638 = vpop.f32.mrf.mxu0
    %v639 = vadd.f32 %v560, %v638
    %640 = vmatmul.bf16.gmra.mxu0 %v522
    %v641 = vpop.f32.mrf.mxu0
    %v642 = vadd.f32 %v563, %v641
    %v643 = vpop.f32.mrf.mxu0
    %v644 = vadd.f32 %v565, %v643
    %645 = vmatmul.bf16.gmra.mxu0 %v524
    %v646 = vpop.f32.mrf.mxu0
    %v647 = vadd.f32 %v568, %v646
    %v648 = vpop.f32.mrf.mxu0
    %v649 = vadd.f32 %v570, %v648
    %650 = vmatmul.bf16.gmra.mxu0 %v526
    %v651 = vpop.f32.mrf.mxu0
    %v652 = vadd.f32 %v573, %v651
    %v653 = vpop.f32.mrf.mxu0
    %v654 = vadd.f32 %v575, %v653
    %655 = vmatmul.bf16.gmra.mxu0 %v528
    %v656 = vpop.f32.mrf.mxu0
    %v657 = vadd.f32 %v578, %v656
    %v658 = vpop.f32.mrf.mxu0
    %v659 = vadd.f32 %v580, %v658
    %660 = vmatmul.bf16.gmra.mxu0 %v530
    %v661 = vpop.f32.mrf.mxu0
    %v662 = vadd.f32 %v583, %v661
    %v663 = vpop.f32.mrf.mxu0
    %v664 = vadd.f32 %v585, %v663
    %665 = vmatmul.bf16.gmra.mxu0 %v532
    %v666 = vpop.f32.mrf.mxu0
    %v667 = vadd.f32 %v588, %v666
    %v668 = vpop.f32.mrf.mxu0
    %v669 = vadd.f32 %v590, %v668
    %670 = vmatmul.bf16.gmra.mxu0 %v534
    %v671 = vpop.f32.mrf.mxu0
    %v672 = vadd.f32 %v593, %v671
    %v673 = vpop.f32.mrf.mxu0
    %v674 = vadd.f32 %v595, %v673
    %675 = vmatmul.bf16.gmra.mxu0 %v536
    %v676 = vpop.f32.mrf.mxu0
    %v677 = vadd.f32 %v598, %v676
    %v678 = vpop.f32.mrf.mxu0
    %v679 = vadd.f32 %v600, %v678
    %680 = vmatmul.bf16.gmra.mxu0 %v538
    %v681 = vpop.f32.mrf.mxu0
    %v682 = vadd.f32 %v603, %v681
    %v683 = vpop.f32.mrf.mxu0
    %v684 = vadd.f32 %v605, %v683
    %685 = vmatmul.bf16.gmra.mxu0 %v540
    %v686 = vpop.f32.mrf.mxu0
    %v687 = vadd.f32 %v608, %v686
    %v688 = vpop.f32.mrf.mxu0
    %v689 = vadd.f32 %v610, %v688
    %690 = vmatmul.bf16.gmra.mxu0 %v542
    %v691 = vpop.f32.mrf.mxu0
    %v692 = vadd.f32 %v613, %v691
    %v693 = vpop.f32.mrf.mxu0
    %v694 = vadd.f32 %v615, %v693
    %695 = vmatmul.bf16.gmra.mxu0 %v544
    %v696 = vpop.f32.mrf.mxu0
    %v697 = vadd.f32 %v618, %v696
    %v698 = vpop.f32.mrf.mxu0
    %v699 = vadd.f32 %v620, %v698
    %700 = vmatmul.bf16.gmra.mxu0 %v546
    %v701 = vpop.f32.mrf.mxu0
    %v702 = vadd.f32 %v623, %v701
    %v703 = vpop.f32.mrf.mxu0
    %v704 = vadd.f32 %v625, %v703
    %705 = vdwg.mxu0
    %v706 = vmax.f32 %v637, 0.0
    %v707 = vmax.f32 %v639, 0.0
    %v708 = vmax.f32 %v642, 0.0
    %v709 = vmax.f32 %v644, 0.0
    %v710 = vmax.f32 %v647, 0.0
    %v711 = vmax.f32 %v649, 0.0
    %v712 = vmax.f32 %v652, 0.0
    %v713 = vmax.f32 %v654, 0.0
    %v714 = vmax.f32 %v657, 0.0
    %v715 = vmax.f32 %v659, 0.0
    %v716 = vmax.f32 %v662, 0.0
    %v717 = vmax.f32 %v664, 0.0
    %v718 = vmax.f32 %v667, 0.0
    %v719 = vmax.f32 %v669, 0.0
    %v720 = vmax.f32 %v672, 0.0
    %v721 = vmax.f32 %v674, 0.0
    %v722 = vmax.f32 %v677, 0.0
    %v723 = vmax.f32 %v679, 0.0
    %v724 = vmax.f32 %v682, 0.0
    %v725 = vmax.f32 %v684, 0.0
    %v726 = vmax.f32 %v687, 0.0
    %v727 = vmax.f32 %v689, 0.0
    %v728 = vmax.f32 %v692, 0.0
    %v729 = vmax.f32 %v694, 0.0
    %v730 = vmax.f32 %v697, 0.0
    %v731 = vmax.f32 %v699, 0.0
    %v732 = vmax.f32 %v702, 0.0
    %v733 = vmax.f32 %v704, 0.0
    %762 = vrot.lane.b32.xlu0 %v706, 127
    %v763 = vpop.permute.xlu0 %762
    %764 = vrot.lane.b32.xlu0 %v707, 127
    %v765 = vpop.permute.xlu0 %764
    %766 = vrot.lane.b32.xlu0 %v708, 127
    %v767 = vpop.permute.xlu0 %766
    %768 = vrot.lane.b32.xlu0 %v709, 127
    %v769 = vpop.permute.xlu0 %768
    %770 = vrot.lane.b32.xlu0 %v710, 127
    %v771 = vpop.permute.xlu0 %770
    %772 = vrot.lane.b32.xlu0 %v711, 127
    %v773 = vpop.permute.xlu0 %772
    %774 = vrot.lane.b32.xlu0 %v712, 127
    %v775 = vpop.permute.xlu0 %774
    %776 = vrot.lane.b32.xlu0 %v713, 127
    %v777 = vpop.permute.xlu0 %776
    %778 = vrot.lane.b32.xlu0 %v714, 127
    %v779 = vpop.permute.xlu0 %778
    %780 = vrot.lane.b32.xlu0 %v715, 127
    %v781 = vpop.permute.xlu0 %780
    %782 = vrot.lane.b32.xlu0 %v716, 127
    %v783 = vpop.permute.xlu0 %782
    %784 = vrot.lane.b32.xlu0 %v717, 127
    %v785 = vpop.permute.xlu0 %784
    %786 = vrot.lane.b32.xlu0 %v718, 127
    %v787 = vpop.permute.xlu0 %786
    %788 = vrot.lane.b32.xlu0 %v719, 127
    %v789 = vpop.permute.xlu0 %788
    %790 = vrot.lane.b32.xlu0 %v720, 127
    %v791 = vpop.permute.xlu0 %790
    %792 = vrot.lane.b32.xlu0 %v721, 127
    %v793 = vpop.permute.xlu0 %792
    %794 = vrot.lane.b32.xlu0 %v722, 127
    %v795 = vpop.permute.xlu0 %794
    %796 = vrot.lane.b32.xlu0 %v723, 127
    %v797 = vpop.permute.xlu0 %796
    %798 = vrot.lane.b32.xlu0 %v724, 127
    %v799 = vpop.permute.xlu0 %798
    %800 = vrot.lane.b32.xlu0 %v725, 127
    %v801 = vpop.permute.xlu0 %800
    %802 = vrot.lane.b32.xlu0 %v726, 127
    %v803 = vpop.permute.xlu0 %802
    %804 = vrot.lane.b32.xlu0 %v727, 127
    %v805 = vpop.permute.xlu0 %804
    %806 = vrot.lane.b32.xlu0 %v728, 127
    %v807 = vpop.permute.xlu0 %806
    %808 = vrot.lane.b32.xlu0 %v729, 127
    %v809 = vpop.permute.xlu0 %808
    %810 = vrot.lane.b32.xlu0 %v730, 127
    %v811 = vpop.permute.xlu0 %810
    %812 = vrot.lane.b32.xlu0 %v731, 127
    %v813 = vpop.permute.xlu0 %812
    %814 = vrot.lane.b32.xlu0 %v732, 127
    %v815 = vpop.permute.xlu0 %814
    %816 = vrot.lane.b32.xlu0 %v733, 127
    %v817 = vpop.permute.xlu0 %816
    %v846 = vmax.f32 %v706, %v763
    %v847 = vmax.f32 %v707, %v765
    %v848 = vmax.f32 %v708, %v767
    %v849 = vmax.f32 %v709, %v769
    %v850 = vmax.f32 %v710, %v771
    %v851 = vmax.f32 %v711, %v773
    %v852 = vmax.f32 %v712, %v775
    %v853 = vmax.f32 %v713, %v777
    %v854 = vmax.f32 %v714, %v779
    %v855 = vmax.f32 %v715, %v781
    %v856 = vmax.f32 %v716, %v783
    %v857 = vmax.f32 %v717, %v785
    %v858 = vmax.f32 %v718, %v787
    %v859 = vmax.f32 %v719, %v789
    %v860 = vmax.f32 %v720, %v791
    %v861 = vmax.f32 %v721, %v793
    %v862 = vmax.f32 %v722, %v795
    %v863 = vmax.f32 %v723, %v797
    %v864 = vmax.f32 %v724, %v799
    %v865 = vmax.f32 %v725, %v801
    %v866 = vmax.f32 %v726, %v803
    %v867 = vmax.f32 %v727, %v805
    %v868 = vmax.f32 %v728, %v807
    %v869 = vmax.f32 %v729, %v809
    %v870 = vmax.f32 %v730, %v811
    %v871 = vmax.f32 %v731, %v813
    %v872 = vmax.f32 %v732, %v815
    %v873 = vmax.f32 %v733, %v817
    %v902 = vrot.slane %v846, 2
    %v903 = vrot.slane %v846, 4
    %v904 = vrot.slane %v846, 6
    %v905 = vrot.slane %v847, 2
    %v906 = vrot.slane %v847, 4
    %v907 = vrot.slane %v847, 6
    %v908 = vrot.slane %v848, 2
    %v909 = vrot.slane %v848, 4
    %v910 = vrot.slane %v848, 6
    %v911 = vrot.slane %v849, 2
    %v912 = vrot.slane %v849, 4
    %v913 = vrot.slane %v849, 6
    %v914 = vrot.slane %v850, 2
    %v915 = vrot.slane %v850, 4
    %v916 = vrot.slane %v850, 6
    %v917 = vrot.slane %v851, 2
    %v918 = vrot.slane %v851, 4
    %v919 = vrot.slane %v851, 6
    %v920 = vrot.slane %v852, 2
    %v921 = vrot.slane %v852, 4
    %v922 = vrot.slane %v852, 6
    %v923 = vrot.slane %v853, 2
    %v924 = vrot.slane %v853, 4
    %v925 = vrot.slane %v853, 6
    %v926 = vrot.slane %v854, 2
    %v927 = vrot.slane %v854, 4
    %v928 = vrot.slane %v854, 6
    %v929 = vrot.slane %v855, 2
    %v930 = vrot.slane %v855, 4
    %v931 = vrot.slane %v855, 6
    %v932 = vrot.slane %v856, 2
    %v933 = vrot.slane %v856, 4
    %v934 = vrot.slane %v856, 6
    %v935 = vrot.slane %v857, 2
    %v936 = vrot.slane %v857, 4
    %v937 = vrot.slane %v857, 6
    %v938 = vrot.slane %v858, 2
    %v939 = vrot.slane %v858, 4
    %v940 = vrot.slane %v858, 6
    %v941 = vrot.slane %v859, 2
    %v942 = vrot.slane %v859, 4
    %v943 = vrot.slane %v859, 6
    %v944 = vrot.slane %v860, 2
    %v945 = vrot.slane %v860, 4
    %v946 = vrot.slane %v860, 6
    %v947 = vrot.slane %v861, 2
    %v948 = vrot.slane %v861, 4
    %v949 = vrot.slane %v861, 6
    %v950 = vrot.slane %v862, 2
    %v951 = vrot.slane %v862, 4
    %v952 = vrot.slane %v862, 6
    %v953 = vrot.slane %v863, 2
    %v954 = vrot.slane %v863, 4
    %v955 = vrot.slane %v863, 6
    %v956 = vrot.slane %v864, 2
    %v957 = vrot.slane %v864, 4
    %v958 = vrot.slane %v864, 6
    %v959 = vrot.slane %v865, 2
    %v960 = vrot.slane %v865, 4
    %v961 = vrot.slane %v865, 6
    %v962 = vrot.slane %v866, 2
    %v963 = vrot.slane %v866, 4
    %v964 = vrot.slane %v866, 6
    %v965 = vrot.slane %v867, 2
    %v966 = vrot.slane %v867, 4
    %v967 = vrot.slane %v867, 6
    %v968 = vrot.slane %v868, 2
    %v969 = vrot.slane %v868, 4
    %v970 = vrot.slane %v868, 6
    %v971 = vrot.slane %v869, 2
    %v972 = vrot.slane %v869, 4
    %v973 = vrot.slane %v869, 6
    %v974 = vrot.slane %v870, 2
    %v975 = vrot.slane %v870, 4
    %v976 = vrot.slane %v870, 6
    %v977 = vrot.slane %v871, 2
    %v978 = vrot.slane %v871, 4
    %v979 = vrot.slane %v871, 6
    %v980 = vrot.slane %v872, 2
    %v981 = vrot.slane %v872, 4
    %v982 = vrot.slane %v872, 6
    %v983 = vrot.slane %v873, 2
    %v984 = vrot.slane %v873, 4
    %v985 = vrot.slane %v873, 6
    %v1070 = vrot.slane %v846, 7
    %v1071 = vrot.slane %v1070, 2
    %v1072 = vrot.slane %v902, 7
    %v1073 = vrot.slane %v1072, 2
    %v1074 = vrot.slane %v903, 7
    %v1075 = vrot.slane %v1074, 2
    %v1076 = vrot.slane %v904, 7
    %v1077 = vrot.slane %v1076, 2
    %v1078 = vrot.slane %v847, 7
    %v1079 = vrot.slane %v1078, 2
    %v1080 = vrot.slane %v905, 7
    %v1081 = vrot.slane %v1080, 2
    %v1082 = vrot.slane %v906, 7
    %v1083 = vrot.slane %v1082, 2
    %v1084 = vrot.slane %v907, 7
    %v1085 = vrot.slane %v1084, 2
    %v1086 = vrot.slane %v848, 7
    %v1087 = vrot.slane %v1086, 2
    %v1088 = vrot.slane %v908, 7
    %v1089 = vrot.slane %v1088, 2
    %v1090 = vrot.slane %v909, 7
    %v1091 = vrot.slane %v1090, 2
    %v1092 = vrot.slane %v910, 7
    %v1093 = vrot.slane %v1092, 2
    %v1094 = vrot.slane %v849, 7
    %v1095 = vrot.slane %v1094, 2
    %v1096 = vrot.slane %v911, 7
    %v1097 = vrot.slane %v1096, 2
    %v1098 = vrot.slane %v912, 7
    %v1099 = vrot.slane %v1098, 2
    %v1100 = vrot.slane %v913, 7
    %v1101 = vrot.slane %v1100, 2
    %v1102 = vrot.slane %v850, 7
    %v1103 = vrot.slane %v1102, 2
    %v1104 = vrot.slane %v914, 7
    %v1105 = vrot.slane %v1104, 2
    %v1106 = vrot.slane %v915, 7
    %v1107 = vrot.slane %v1106, 2
    %v1108 = vrot.slane %v916, 7
    %v1109 = vrot.slane %v1108, 2
    %v1110 = vrot.slane %v851, 7
    %v1111 = vrot.slane %v1110, 2
    %v1112 = vrot.slane %v917, 7
    %v1113 = vrot.slane %v1112, 2
    %v1114 = vrot.slane %v918, 7
    %v1115 = vrot.slane %v1114, 2
    %v1116 = vrot.slane %v919, 7
    %v1117 = vrot.slane %v1116, 2
    %v1118 = vrot.slane %v852, 7
    %v1119 = vrot.slane %v1118, 2
    %v1120 = vrot.slane %v920, 7
    %v1121 = vrot.slane %v1120, 2
    %v1122 = vrot.slane %v921, 7
    %v1123 = vrot.slane %v1122, 2
    %v1124 = vrot.slane %v922, 7
    %v1125 = vrot.slane %v1124, 2
    %v1126 = vrot.slane %v853, 7
    %v1127 = vrot.slane %v1126, 2
    %v1128 = vrot.slane %v923, 7
    %v1129 = vrot.slane %v1128, 2
    %v1130 = vrot.slane %v924, 7
    %v1131 = vrot.slane %v1130, 2
    %v1132 = vrot.slane %v925, 7
    %v1133 = vrot.slane %v1132, 2
    %v1134 = vrot.slane %v854, 7
    %v1135 = vrot.slane %v1134, 2
    %v1136 = vrot.slane %v926, 7
    %v1137 = vrot.slane %v1136, 2
    %v1138 = vrot.slane %v927, 7
    %v1139 = vrot.slane %v1138, 2
    %v1140 = vrot.slane %v928, 7
    %v1141 = vrot.slane %v1140, 2
    %v1142 = vrot.slane %v855, 7
    %v1143 = vrot.slane %v1142, 2
    %v1144 = vrot.slane %v929, 7
    %v1145 = vrot.slane %v1144, 2
    %v1146 = vrot.slane %v930, 7
    %v1147 = vrot.slane %v1146, 2
    %v1148 = vrot.slane %v931, 7
    %v1149 = vrot.slane %v1148, 2
    %v1150 = vrot.slane %v856, 7
    %v1151 = vrot.slane %v1150, 2
    %v1152 = vrot.slane %v932, 7
    %v1153 = vrot.slane %v1152, 2
    %v1154 = vrot.slane %v933, 7
    %v1155 = vrot.slane %v1154, 2
    %v1156 = vrot.slane %v934, 7
    %v1157 = vrot.slane %v1156, 2
    %v1158 = vrot.slane %v857, 7
    %v1159 = vrot.slane %v1158, 2
    %v1160 = vrot.slane %v935, 7
    %v1161 = vrot.slane %v1160, 2
    %v1162 = vrot.slane %v936, 7
    %v1163 = vrot.slane %v1162, 2
    %v1164 = vrot.slane %v937, 7
    %v1165 = vrot.slane %v1164, 2
    %v1166 = vrot.slane %v858, 7
    %v1167 = vrot.slane %v1166, 2
    %v1168 = vrot.slane %v938, 7
    %v1169 = vrot.slane %v1168, 2
    %v1170 = vrot.slane %v939, 7
    %v1171 = vrot.slane %v1170, 2
    %v1172 = vrot.slane %v940, 7
    %v1173 = vrot.slane %v1172, 2
    %v1174 = vrot.slane %v859, 7
    %v1175 = vrot.slane %v1174, 2
    %v1176 = vrot.slane %v941, 7
    %v1177 = vrot.slane %v1176, 2
    %v1178 = vrot.slane %v942, 7
    %v1179 = vrot.slane %v1178, 2
    %v1180 = vrot.slane %v943, 7
    %v1181 = vrot.slane %v1180, 2
    %v1182 = vrot.slane %v860, 7
    %v1183 = vrot.slane %v1182, 2
    %v1184 = vrot.slane %v944, 7
    %v1185 = vrot.slane %v1184, 2
    %v1186 = vrot.slane %v945, 7
    %v1187 = vrot.slane %v1186, 2
    %v1188 = vrot.slane %v946, 7
    %v1189 = vrot.slane %v1188, 2
    %v1190 = vrot.slane %v861, 7
    %v1191 = vrot.slane %v1190, 2
    %v1192 = vrot.slane %v947, 7
    %v1193 = vrot.slane %v1192, 2
    %v1194 = vrot.slane %v948, 7
    %v1195 = vrot.slane %v1194, 2
    %v1196 = vrot.slane %v949, 7
    %v1197 = vrot.slane %v1196, 2
    %v1198 = vrot.slane %v862, 7
    %v1199 = vrot.slane %v1198, 2
    %v1200 = vrot.slane %v950, 7
    %v1201 = vrot.slane %v1200, 2
    %v1202 = vrot.slane %v951, 7
    %v1203 = vrot.slane %v1202, 2
    %v1204 = vrot.slane %v952, 7
    %v1205 = vrot.slane %v1204, 2
    %v1206 = vrot.slane %v863, 7
    %v1207 = vrot.slane %v1206, 2
    %v1208 = vrot.slane %v953, 7
    %v1209 = vrot.slane %v1208, 2
    %v1210 = vrot.slane %v954, 7
    %v1211 = vrot.slane %v1210, 2
    %v1212 = vrot.slane %v955, 7
    %v1213 = vrot.slane %v1212, 2
    %v1214 = vrot.slane %v864, 7
    %v1215 = vrot.slane %v1214, 2
    %v1216 = vrot.slane %v956, 7
    %v1217 = vrot.slane %v1216, 2
    %v1218 = vrot.slane %v957, 7
    %v1219 = vrot.slane %v1218, 2
    %v1220 = vrot.slane %v958, 7
    %v1221 = vrot.slane %v1220, 2
    %v1222 = vrot.slane %v865, 7
    %v1223 = vrot.slane %v1222, 2
    %v1224 = vrot.slane %v959, 7
    %v1225 = vrot.slane %v1224, 2
    %v1226 = vrot.slane %v960, 7
    %v1227 = vrot.slane %v1226, 2
    %v1228 = vrot.slane %v961, 7
    %v1229 = vrot.slane %v1228, 2
    %v1230 = vrot.slane %v866, 7
    %v1231 = vrot.slane %v1230, 2
    %v1232 = vrot.slane %v962, 7
    %v1233 = vrot.slane %v1232, 2
    %v1234 = vrot.slane %v963, 7
    %v1235 = vrot.slane %v1234, 2
    %v1236 = vrot.slane %v964, 7
    %v1237 = vrot.slane %v1236, 2
    %v1238 = vrot.slane %v867, 7
    %v1239 = vrot.slane %v1238, 2
    %v1240 = vrot.slane %v965, 7
    %v1241 = vrot.slane %v1240, 2
    %v1242 = vrot.slane %v966, 7
    %v1243 = vrot.slane %v1242, 2
    %v1244 = vrot.slane %v967, 7
    %v1245 = vrot.slane %v1244, 2
    %v1246 = vrot.slane %v868, 7
    %v1247 = vrot.slane %v1246, 2
    %v1248 = vrot.slane %v968, 7
    %v1249 = vrot.slane %v1248, 2
    %v1250 = vrot.slane %v969, 7
    %v1251 = vrot.slane %v1250, 2
    %v1252 = vrot.slane %v970, 7
    %v1253 = vrot.slane %v1252, 2
    %v1254 = vrot.slane %v869, 7
    %v1255 = vrot.slane %v1254, 2
    %v1256 = vrot.slane %v971, 7
    %v1257 = vrot.slane %v1256, 2
    %v1258 = vrot.slane %v972, 7
    %v1259 = vrot.slane %v1258, 2
    %v1260 = vrot.slane %v973, 7
    %v1261 = vrot.slane %v1260, 2
    %v1262 = vrot.slane %v870, 7
    %v1263 = vrot.slane %v1262, 2
    %v1264 = vrot.slane %v974, 7
    %v1265 = vrot.slane %v1264, 2
    %v1266 = vrot.slane %v975, 7
    %v1267 = vrot.slane %v1266, 2
    %v1268 = vrot.slane %v976, 7
    %v1269 = vrot.slane %v1268, 2
    %v1270 = vrot.slane %v871, 7
    %v1271 = vrot.slane %v1270, 2
    %v1272 = vrot.slane %v977, 7
    %v1273 = vrot.slane %v1272, 2
    %v1274 = vrot.slane %v978, 7
    %v1275 = vrot.slane %v1274, 2
    %v1276 = vrot.slane %v979, 7
    %v1277 = vrot.slane %v1276, 2
    %v1278 = vrot.slane %v872, 7
    %v1279 = vrot.slane %v1278, 2
    %v1280 = vrot.slane %v980, 7
    %v1281 = vrot.slane %v1280, 2
    %v1282 = vrot.slane %v981, 7
    %v1283 = vrot.slane %v1282, 2
    %v1284 = vrot.slane %v982, 7
    %v1285 = vrot.slane %v1284, 2
    %v1286 = vrot.slane %v873, 7
    %v1287 = vrot.slane %v1286, 2
    %v1288 = vrot.slane %v983, 7
    %v1289 = vrot.slane %v1288, 2
    %v1290 = vrot.slane %v984, 7
    %v1291 = vrot.slane %v1290, 2
    %v1292 = vrot.slane %v985, 7
    %v1293 = vrot.slane %v1292, 2
    %v1406 = vmax.f32 %v846, %v1071
    %v1407 = vmax.f32 %v902, %v1073
    %v1408 = vmax.f32 %v903, %v1075
    %v1409 = vmax.f32 %v904, %v1077
    %v1410 = vmax.f32 %v847, %v1079
    %v1411 = vmax.f32 %v905, %v1081
    %v1412 = vmax.f32 %v906, %v1083
    %v1413 = vmax.f32 %v907, %v1085
    %v1414 = vmax.f32 %v848, %v1087
    %v1415 = vmax.f32 %v908, %v1089
    %v1416 = vmax.f32 %v909, %v1091
    %v1417 = vmax.f32 %v910, %v1093
    %v1418 = vmax.f32 %v849, %v1095
    %v1419 = vmax.f32 %v911, %v1097
    %v1420 = vmax.f32 %v912, %v1099
    %v1421 = vmax.f32 %v913, %v1101
    %v1422 = vmax.f32 %v850, %v1103
    %v1423 = vmax.f32 %v914, %v1105
    %v1424 = vmax.f32 %v915, %v1107
    %v1425 = vmax.f32 %v916, %v1109
    %v1426 = vmax.f32 %v851, %v1111
    %v1427 = vmax.f32 %v917, %v1113
    %v1428 = vmax.f32 %v918, %v1115
    %v1429 = vmax.f32 %v919, %v1117
    %v1430 = vmax.f32 %v852, %v1119
    %v1431 = vmax.f32 %v920, %v1121
    %v1432 = vmax.f32 %v921, %v1123
    %v1433 = vmax.f32 %v922, %v1125
    %v1434 = vmax.f32 %v853, %v1127
    %v1435 = vmax.f32 %v923, %v1129
    %v1436 = vmax.f32 %v924, %v1131
    %v1437 = vmax.f32 %v925, %v1133
    %v1438 = vmax.f32 %v854, %v1135
    %v1439 = vmax.f32 %v926, %v1137
    %v1440 = vmax.f32 %v927, %v1139
    %v1441 = vmax.f32 %v928, %v1141
    %v1442 = vmax.f32 %v855, %v1143
    %v1443 = vmax.f32 %v929, %v1145
    %v1444 = vmax.f32 %v930, %v1147
    %v1445 = vmax.f32 %v931, %v1149
    %v1446 = vmax.f32 %v856, %v1151
    %v1447 = vmax.f32 %v932, %v1153
    %v1448 = vmax.f32 %v933, %v1155
    %v1449 = vmax.f32 %v934, %v1157
    %v1450 = vmax.f32 %v857, %v1159
    %v1451 = vmax.f32 %v935, %v1161
    %v1452 = vmax.f32 %v936, %v1163
    %v1453 = vmax.f32 %v937, %v1165
    %v1454 = vmax.f32 %v858, %v1167
    %v1455 = vmax.f32 %v938, %v1169
    %v1456 = vmax.f32 %v939, %v1171
    %v1457 = vmax.f32 %v940, %v1173
    %v1458 = vmax.f32 %v859, %v1175
    %v1459 = vmax.f32 %v941, %v1177
    %v1460 = vmax.f32 %v942, %v1179
    %v1461 = vmax.f32 %v943, %v1181
    %v1462 = vmax.f32 %v860, %v1183
    %v1463 = vmax.f32 %v944, %v1185
    %v1464 = vmax.f32 %v945, %v1187
    %v1465 = vmax.f32 %v946, %v1189
    %v1466 = vmax.f32 %v861, %v1191
    %v1467 = vmax.f32 %v947, %v1193
    %v1468 = vmax.f32 %v948, %v1195
    %v1469 = vmax.f32 %v949, %v1197
    %v1470 = vmax.f32 %v862, %v1199
    %v1471 = vmax.f32 %v950, %v1201
    %v1472 = vmax.f32 %v951, %v1203
    %v1473 = vmax.f32 %v952, %v1205
    %v1474 = vmax.f32 %v863, %v1207
    %v1475 = vmax.f32 %v953, %v1209
    %v1476 = vmax.f32 %v954, %v1211
    %v1477 = vmax.f32 %v955, %v1213
    %v1478 = vmax.f32 %v864, %v1215
    %v1479 = vmax.f32 %v956, %v1217
    %v1480 = vmax.f32 %v957, %v1219
    %v1481 = vmax.f32 %v958, %v1221
    %v1482 = vmax.f32 %v865, %v1223
    %v1483 = vmax.f32 %v959, %v1225
    %v1484 = vmax.f32 %v960, %v1227
    %v1485 = vmax.f32 %v961, %v1229
    %v1486 = vmax.f32 %v866, %v1231
    %v1487 = vmax.f32 %v962, %v1233
    %v1488 = vmax.f32 %v963, %v1235
    %v1489 = vmax.f32 %v964, %v1237
    %v1490 = vmax.f32 %v867, %v1239
    %v1491 = vmax.f32 %v965, %v1241
    %v1492 = vmax.f32 %v966, %v1243
    %v1493 = vmax.f32 %v967, %v1245
    %v1494 = vmax.f32 %v868, %v1247
    %v1495 = vmax.f32 %v968, %v1249
    %v1496 = vmax.f32 %v969, %v1251
    %v1497 = vmax.f32 %v970, %v1253
    %v1498 = vmax.f32 %v869, %v1255
    %v1499 = vmax.f32 %v971, %v1257
    %v1500 = vmax.f32 %v972, %v1259
    %v1501 = vmax.f32 %v973, %v1261
    %v1502 = vmax.f32 %v870, %v1263
    %v1503 = vmax.f32 %v974, %v1265
    %v1504 = vmax.f32 %v975, %v1267
    %v1505 = vmax.f32 %v976, %v1269
    %v1506 = vmax.f32 %v871, %v1271
    %v1507 = vmax.f32 %v977, %v1273
    %v1508 = vmax.f32 %v978, %v1275
    %v1509 = vmax.f32 %v979, %v1277
    %v1510 = vmax.f32 %v872, %v1279
    %v1511 = vmax.f32 %v980, %v1281
    %v1512 = vmax.f32 %v981, %v1283
    %v1513 = vmax.f32 %v982, %v1285
    %v1514 = vmax.f32 %v873, %v1287
    %v1515 = vmax.f32 %v983, %v1289
    %v1516 = vmax.f32 %v984, %v1291
    %v1517 = vmax.f32 %v985, %v1293
    %v1518 = vpack.c.bf16 %v1406, %v1406
    %v1519 = vpack.c.bf16 %v1407, %v1407
    %v1520 = vpack.c.bf16 %v1408, %v1408
    %v1521 = vpack.c.bf16 %v1409, %v1409
    %v1522 = vpack.c.bf16 %v1410, %v1410
    %v1523 = vpack.c.bf16 %v1411, %v1411
    %v1524 = vpack.c.bf16 %v1412, %v1412
    %v1525 = vpack.c.bf16 %v1413, %v1413
    %v1526 = vpack.c.bf16 %v1414, %v1414
    %v1527 = vpack.c.bf16 %v1415, %v1415
    %v1528 = vpack.c.bf16 %v1416, %v1416
    %v1529 = vpack.c.bf16 %v1417, %v1417
    %v1530 = vpack.c.bf16 %v1418, %v1418
    %v1531 = vpack.c.bf16 %v1419, %v1419
    %v1532 = vpack.c.bf16 %v1420, %v1420
    %v1533 = vpack.c.bf16 %v1421, %v1421
    %v1534 = vpack.c.bf16 %v1422, %v1422
    %v1535 = vpack.c.bf16 %v1423, %v1423
    %v1536 = vpack.c.bf16 %v1424, %v1424
    %v1537 = vpack.c.bf16 %v1425, %v1425
    %v1538 = vpack.c.bf16 %v1426, %v1426
    %v1539 = vpack.c.bf16 %v1427, %v1427
    %v1540 = vpack.c.bf16 %v1428, %v1428
    %v1541 = vpack.c.bf16 %v1429, %v1429
    %v1542 = vpack.c.bf16 %v1430, %v1430
    %v1543 = vpack.c.bf16 %v1431, %v1431
    %v1544 = vpack.c.bf16 %v1432, %v1432
    %v1545 = vpack.c.bf16 %v1433, %v1433
    %v1546 = vpack.c.bf16 %v1434, %v1434
    %v1547 = vpack.c.bf16 %v1435, %v1435
    %v1548 = vpack.c.bf16 %v1436, %v1436
    %v1549 = vpack.c.bf16 %v1437, %v1437
    %v1550 = vpack.c.bf16 %v1438, %v1438
    %v1551 = vpack.c.bf16 %v1439, %v1439
    %v1552 = vpack.c.bf16 %v1440, %v1440
    %v1553 = vpack.c.bf16 %v1441, %v1441
    %v1554 = vpack.c.bf16 %v1442, %v1442
    %v1555 = vpack.c.bf16 %v1443, %v1443
    %v1556 = vpack.c.bf16 %v1444, %v1444
    %v1557 = vpack.c.bf16 %v1445, %v1445
    %v1558 = vpack.c.bf16 %v1446, %v1446
    %v1559 = vpack.c.bf16 %v1447, %v1447
    %v1560 = vpack.c.bf16 %v1448, %v1448
    %v1561 = vpack.c.bf16 %v1449, %v1449
    %v1562 = vpack.c.bf16 %v1450, %v1450
    %v1563 = vpack.c.bf16 %v1451, %v1451
    %v1564 = vpack.c.bf16 %v1452, %v1452
    %v1565 = vpack.c.bf16 %v1453, %v1453
    %v1566 = vpack.c.bf16 %v1454, %v1454
    %v1567 = vpack.c.bf16 %v1455, %v1455
    %v1568 = vpack.c.bf16 %v1456, %v1456
    %v1569 = vpack.c.bf16 %v1457, %v1457
    %v1570 = vpack.c.bf16 %v1458, %v1458
    %v1571 = vpack.c.bf16 %v1459, %v1459
    %v1572 = vpack.c.bf16 %v1460, %v1460
    %v1573 = vpack.c.bf16 %v1461, %v1461
    %v1574 = vpack.c.bf16 %v1462, %v1462
    %v1575 = vpack.c.bf16 %v1463, %v1463
    %v1576 = vpack.c.bf16 %v1464, %v1464
    %v1577 = vpack.c.bf16 %v1465, %v1465
    %v1578 = vpack.c.bf16 %v1466, %v1466
    %v1579 = vpack.c.bf16 %v1467, %v1467
    %v1580 = vpack.c.bf16 %v1468, %v1468
    %v1581 = vpack.c.bf16 %v1469, %v1469
    %v1582 = vpack.c.bf16 %v1470, %v1470
    %v1583 = vpack.c.bf16 %v1471, %v1471
    %v1584 = vpack.c.bf16 %v1472, %v1472
    %v1585 = vpack.c.bf16 %v1473, %v1473
    %v1586 = vpack.c.bf16 %v1474, %v1474
    %v1587 = vpack.c.bf16 %v1475, %v1475
    %v1588 = vpack.c.bf16 %v1476, %v1476
    %v1589 = vpack.c.bf16 %v1477, %v1477
    %v1590 = vpack.c.bf16 %v1478, %v1478
    %v1591 = vpack.c.bf16 %v1479, %v1479
    %v1592 = vpack.c.bf16 %v1480, %v1480
    %v1593 = vpack.c.bf16 %v1481, %v1481
    %v1594 = vpack.c.bf16 %v1482, %v1482
    %v1595 = vpack.c.bf16 %v1483, %v1483
    %v1596 = vpack.c.bf16 %v1484, %v1484
    %v1597 = vpack.c.bf16 %v1485, %v1485
    %v1598 = vpack.c.bf16 %v1486, %v1486
    %v1599 = vpack.c.bf16 %v1487, %v1487
    %v1600 = vpack.c.bf16 %v1488, %v1488
    %v1601 = vpack.c.bf16 %v1489, %v1489
    %v1602 = vpack.c.bf16 %v1490, %v1490
    %v1603 = vpack.c.bf16 %v1491, %v1491
    %v1604 = vpack.c.bf16 %v1492, %v1492
    %v1605 = vpack.c.bf16 %v1493, %v1493
    %v1606 = vpack.c.bf16 %v1494, %v1494
    %v1607 = vpack.c.bf16 %v1495, %v1495
    %v1608 = vpack.c.bf16 %v1496, %v1496
    %v1609 = vpack.c.bf16 %v1497, %v1497
    %v1610 = vpack.c.bf16 %v1498, %v1498
    %v1611 = vpack.c.bf16 %v1499, %v1499
    %v1612 = vpack.c.bf16 %v1500, %v1500
    %v1613 = vpack.c.bf16 %v1501, %v1501
    %v1614 = vpack.c.bf16 %v1502, %v1502
    %v1615 = vpack.c.bf16 %v1503, %v1503
    %v1616 = vpack.c.bf16 %v1504, %v1504
    %v1617 = vpack.c.bf16 %v1505, %v1505
    %v1618 = vpack.c.bf16 %v1506, %v1506
    %v1619 = vpack.c.bf16 %v1507, %v1507
    %v1620 = vpack.c.bf16 %v1508, %v1508
    %v1621 = vpack.c.bf16 %v1509, %v1509
    %v1622 = vpack.c.bf16 %v1510, %v1510
    %v1623 = vpack.c.bf16 %v1511, %v1511
    %v1624 = vpack.c.bf16 %v1512, %v1512
    %v1625 = vpack.c.bf16 %v1513, %v1513
    %v1626 = vpack.c.bf16 %v1514, %v1514
    %v1627 = vpack.c.bf16 %v1515, %v1515
    %v1628 = vpack.c.bf16 %v1516, %v1516
    %v1629 = vpack.c.bf16 %v1517, %v1517
    %v1630 = vld [vmem:[%s3] sm:$0xf]
    %v1631 = vld [vmem:[%s3 + $0x4] sm:$0xf]
    %v1632 = vld [vmem:[%s3 + $0x8] sm:$0xf]
    %v1633 = vld [vmem:[%s3 + $0xc] sm:$0xf]
    %v1634 = vld [vmem:[%s3 + $0x10] sm:$0xf]
    %v1635 = vld [vmem:[%s3 + $0x14] sm:$0xf]
    %v1636 = vld [vmem:[%s3 + $0x18] sm:$0xf]
    %v1637 = vld [vmem:[%s3 + $0x1c] sm:$0xf]
    %v1638 = vld [vmem:[%s3 + $0x20] sm:$0xf]
    %v1639 = vld [vmem:[%s3 + $0x24] sm:$0xf]
    %v1640 = vld [vmem:[%s3 + $0x28] sm:$0x3]
    %s1641 = scalar_lea.vmem %s3, 44
    %v1642 = vld [vmem:[%s1641] sm:$0xf]
    %v1643 = vld [vmem:[%s1641 + $0x4] sm:$0xf]
    %v1644 = vld [vmem:[%s1641 + $0x8] sm:$0xf]
    %v1645 = vld [vmem:[%s1641 + $0xc] sm:$0xf]
    %v1646 = vld [vmem:[%s1641 + $0x10] sm:$0xf]
    %v1647 = vld [vmem:[%s1641 + $0x14] sm:$0xf]
    %v1648 = vld [vmem:[%s1641 + $0x18] sm:$0xf]
    %v1649 = vld [vmem:[%s1641 + $0x1c] sm:$0xf]
    %v1650 = vld [vmem:[%s1641 + $0x20] sm:$0xf]
    %v1651 = vld [vmem:[%s1641 + $0x24] sm:$0xf]
    %v1652 = vld [vmem:[%s1641 + $0x28] sm:$0x3]
    %v1733 = vunpack.c.l.b16 %v1519
    %v1734 = vunpack.c.l.b16 %v1520
    %v1735 = vunpack.c.l.b16 %v1521
    %v1736 = vunpack.c.l.b16 %v1522
    %v1737 = vunpack.c.l.b16 %v1523
    %v1738 = vunpack.c.l.b16 %v1524
    %v1739 = vunpack.c.l.b16 %v1525
    %v1740 = vunpack.c.l.b16 %v1526
    %v1741 = vunpack.c.l.b16 %v1527
    %v1742 = vunpack.c.l.b16 %v1528
    %v1743 = vunpack.c.l.b16 %v1533
    %v1744 = vunpack.c.l.b16 %v1534
    %v1745 = vunpack.c.l.b16 %v1535
    %v1746 = vunpack.c.l.b16 %v1536
    %v1747 = vunpack.c.l.b16 %v1537
    %v1748 = vunpack.c.l.b16 %v1538
    %v1749 = vunpack.c.l.b16 %v1539
    %v1750 = vunpack.c.l.b16 %v1540
    %v1751 = vunpack.c.l.b16 %v1541
    %v1752 = vunpack.c.l.b16 %v1542
    %v1753 = vunpack.c.l.b16 %v1547
    %v1754 = vunpack.c.l.b16 %v1548
    %v1755 = vunpack.c.l.b16 %v1549
    %v1756 = vunpack.c.l.b16 %v1550
    %v1757 = vunpack.c.l.b16 %v1551
    %v1758 = vunpack.c.l.b16 %v1552
    %v1759 = vunpack.c.l.b16 %v1553
    %v1760 = vunpack.c.l.b16 %v1554
    %v1761 = vunpack.c.l.b16 %v1555
    %v1762 = vunpack.c.l.b16 %v1556
    %v1763 = vunpack.c.l.b16 %v1561
    %v1764 = vunpack.c.l.b16 %v1562
    %v1765 = vunpack.c.l.b16 %v1563
    %v1766 = vunpack.c.l.b16 %v1564
    %v1767 = vunpack.c.l.b16 %v1565
    %v1768 = vunpack.c.l.b16 %v1566
    %v1769 = vunpack.c.l.b16 %v1567
    %v1770 = vunpack.c.l.b16 %v1568
    %v1771 = vunpack.c.l.b16 %v1569
    %v1772 = vunpack.c.l.b16 %v1570
    %v1773 = vunpack.c.l.b16 %v1575
    %v1774 = vunpack.c.l.b16 %v1576
    %v1775 = vunpack.c.l.b16 %v1577
    %v1776 = vunpack.c.l.b16 %v1578
    %v1777 = vunpack.c.l.b16 %v1579
    %v1778 = vunpack.c.l.b16 %v1580
    %v1779 = vunpack.c.l.b16 %v1581
    %v1780 = vunpack.c.l.b16 %v1582
    %v1781 = vunpack.c.l.b16 %v1583
    %v1782 = vunpack.c.l.b16 %v1584
    %v1783 = vunpack.c.l.b16 %v1589
    %v1784 = vunpack.c.l.b16 %v1590
    %v1785 = vunpack.c.l.b16 %v1591
    %v1786 = vunpack.c.l.b16 %v1592
    %v1787 = vunpack.c.l.b16 %v1593
    %v1788 = vunpack.c.l.b16 %v1594
    %v1789 = vunpack.c.l.b16 %v1595
    %v1790 = vunpack.c.l.b16 %v1596
    %v1791 = vunpack.c.l.b16 %v1597
    %v1792 = vunpack.c.l.b16 %v1598
    %v1793 = vunpack.c.l.b16 %v1603
    %v1794 = vunpack.c.l.b16 %v1604
    %v1795 = vunpack.c.l.b16 %v1605
    %v1796 = vunpack.c.l.b16 %v1606
    %v1797 = vunpack.c.l.b16 %v1607
    %v1798 = vunpack.c.l.b16 %v1608
    %v1799 = vunpack.c.l.b16 %v1609
    %v1800 = vunpack.c.l.b16 %v1610
    %v1801 = vunpack.c.l.b16 %v1611
    %v1802 = vunpack.c.l.b16 %v1612
    %v1803 = vunpack.c.l.b16 %v1617
    %v1804 = vunpack.c.l.b16 %v1618
    %v1805 = vunpack.c.l.b16 %v1619
    %v1806 = vunpack.c.l.b16 %v1620
    %v1807 = vunpack.c.l.b16 %v1621
    %v1808 = vunpack.c.l.b16 %v1622
    %v1809 = vunpack.c.l.b16 %v1623
    %v1810 = vunpack.c.l.b16 %v1624
    %v1811 = vunpack.c.l.b16 %v1625
    %v1812 = vunpack.c.l.b16 %v1626
    %v1813 = vpack.c.b16 %v1733, %v1733
    %v1814 = vpack.c.b16 %v1734, %v1734
    %v1815 = vpack.c.b16 %v1735, %v1735
    %v1816 = vpack.c.b16 %v1736, %v1736
    %v1817 = vpack.c.b16 %v1737, %v1737
    %v1818 = vpack.c.b16 %v1738, %v1738
    %v1819 = vpack.c.b16 %v1739, %v1739
    %v1820 = vpack.c.b16 %v1740, %v1740
    %v1821 = vpack.c.b16 %v1741, %v1741
    %v1822 = vpack.c.b16 %v1742, %v1742
    %v1823 = vpack.c.b16 %v1743, %v1743
    %v1824 = vpack.c.b16 %v1744, %v1744
    %v1825 = vpack.c.b16 %v1745, %v1745
    %v1826 = vpack.c.b16 %v1746, %v1746
    %v1827 = vpack.c.b16 %v1747, %v1747
    %v1828 = vpack.c.b16 %v1748, %v1748
    %v1829 = vpack.c.b16 %v1749, %v1749
    %v1830 = vpack.c.b16 %v1750, %v1750
    %v1831 = vpack.c.b16 %v1751, %v1751
    %v1832 = vpack.c.b16 %v1752, %v1752
    %v1833 = vpack.c.b16 %v1753, %v1753
    %v1834 = vpack.c.b16 %v1754, %v1754
    %v1835 = vpack.c.b16 %v1755, %v1755
    %v1836 = vpack.c.b16 %v1756, %v1756
    %v1837 = vpack.c.b16 %v1757, %v1757
    %v1838 = vpack.c.b16 %v1758, %v1758
    %v1839 = vpack.c.b16 %v1759, %v1759
    %v1840 = vpack.c.b16 %v1760, %v1760
    %v1841 = vpack.c.b16 %v1761, %v1761
    %v1842 = vpack.c.b16 %v1762, %v1762
    %v1843 = vpack.c.b16 %v1763, %v1763
    %v1844 = vpack.c.b16 %v1764, %v1764
    %v1845 = vpack.c.b16 %v1765, %v1765
    %v1846 = vpack.c.b16 %v1766, %v1766
    %v1847 = vpack.c.b16 %v1767, %v1767
    %v1848 = vpack.c.b16 %v1768, %v1768
    %v1849 = vpack.c.b16 %v1769, %v1769
    %v1850 = vpack.c.b16 %v1770, %v1770
    %v1851 = vpack.c.b16 %v1771, %v1771
    %v1852 = vpack.c.b16 %v1772, %v1772
    %v1853 = vpack.c.b16 %v1773, %v1773
    %v1854 = vpack.c.b16 %v1774, %v1774
    %v1855 = vpack.c.b16 %v1775, %v1775
    %v1856 = vpack.c.b16 %v1776, %v1776
    %v1857 = vpack.c.b16 %v1777, %v1777
    %v1858 = vpack.c.b16 %v1778, %v1778
    %v1859 = vpack.c.b16 %v1779, %v1779
    %v1860 = vpack.c.b16 %v1780, %v1780
    %v1861 = vpack.c.b16 %v1781, %v1781
    %v1862 = vpack.c.b16 %v1782, %v1782
    %v1863 = vpack.c.b16 %v1783, %v1783
    %v1864 = vpack.c.b16 %v1784, %v1784
    %v1865 = vpack.c.b16 %v1785, %v1785
    %v1866 = vpack.c.b16 %v1786, %v1786
    %v1867 = vpack.c.b16 %v1787, %v1787
    %v1868 = vpack.c.b16 %v1788, %v1788
    %v1869 = vpack.c.b16 %v1789, %v1789
    %v1870 = vpack.c.b16 %v1790, %v1790
    %v1871 = vpack.c.b16 %v1791, %v1791
    %v1872 = vpack.c.b16 %v1792, %v1792
    %v1873 = vpack.c.b16 %v1793, %v1793
    %v1874 = vpack.c.b16 %v1794, %v1794
    %v1875 = vpack.c.b16 %v1795, %v1795
    %v1876 = vpack.c.b16 %v1796, %v1796
    %v1877 = vpack.c.b16 %v1797, %v1797
    %v1878 = vpack.c.b16 %v1798, %v1798
    %v1879 = vpack.c.b16 %v1799, %v1799
    %v1880 = vpack.c.b16 %v1800, %v1800
    %v1881 = vpack.c.b16 %v1801, %v1801
    %v1882 = vpack.c.b16 %v1802, %v1802
    %v1883 = vpack.c.b16 %v1803, %v1803
    %v1884 = vpack.c.b16 %v1804, %v1804
    %v1885 = vpack.c.b16 %v1805, %v1805
    %v1886 = vpack.c.b16 %v1806, %v1806
    %v1887 = vpack.c.b16 %v1807, %v1807
    %v1888 = vpack.c.b16 %v1808, %v1808
    %v1889 = vpack.c.b16 %v1809, %v1809
    %v1890 = vpack.c.b16 %v1810, %v1810
    %v1891 = vpack.c.b16 %v1811, %v1811
    %v1892 = vpack.c.b16 %v1812, %v1812
    %v1893 = vunpack.c.l.b16 %v1813
    %v1894 = vunpack.c.l.b16 %v1814
    %v1895 = vunpack.c.l.b16 %v1815
    %v1896 = vunpack.c.l.b16 %v1816
    %v1897 = vunpack.c.l.b16 %v1817
    %v1898 = vunpack.c.l.b16 %v1818
    %v1899 = vunpack.c.l.b16 %v1819
    %v1900 = vunpack.c.l.b16 %v1820
    %v1901 = vunpack.c.l.b16 %v1821
    %v1902 = vunpack.c.l.b16 %v1822
    %v1903 = vunpack.c.l.b16 %v1823
    %v1904 = vunpack.c.l.b16 %v1824
    %v1905 = vunpack.c.l.b16 %v1825
    %v1906 = vunpack.c.l.b16 %v1826
    %v1907 = vunpack.c.l.b16 %v1827
    %v1908 = vunpack.c.l.b16 %v1828
    %v1909 = vunpack.c.l.b16 %v1829
    %v1910 = vunpack.c.l.b16 %v1830
    %v1911 = vunpack.c.l.b16 %v1831
    %v1912 = vunpack.c.l.b16 %v1832
    %v1913 = vunpack.c.l.b16 %v1833
    %v1914 = vunpack.c.l.b16 %v1834
    %v1915 = vunpack.c.l.b16 %v1835
    %v1916 = vunpack.c.l.b16 %v1836
    %v1917 = vunpack.c.l.b16 %v1837
    %v1918 = vunpack.c.l.b16 %v1838
    %v1919 = vunpack.c.l.b16 %v1839
    %v1920 = vunpack.c.l.b16 %v1840
    %v1921 = vunpack.c.l.b16 %v1841
    %v1922 = vunpack.c.l.b16 %v1842
    %v1923 = vunpack.c.l.b16 %v1843
    %v1924 = vunpack.c.l.b16 %v1844
    %v1925 = vunpack.c.l.b16 %v1845
    %v1926 = vunpack.c.l.b16 %v1846
    %v1927 = vunpack.c.l.b16 %v1847
    %v1928 = vunpack.c.l.b16 %v1848
    %v1929 = vunpack.c.l.b16 %v1849
    %v1930 = vunpack.c.l.b16 %v1850
    %v1931 = vunpack.c.l.b16 %v1851
    %v1932 = vunpack.c.l.b16 %v1852
    %v1933 = vunpack.c.l.b16 %v1853
    %v1934 = vunpack.c.l.b16 %v1854
    %v1935 = vunpack.c.l.b16 %v1855
    %v1936 = vunpack.c.l.b16 %v1856
    %v1937 = vunpack.c.l.b16 %v1857
    %v1938 = vunpack.c.l.b16 %v1858
    %v1939 = vunpack.c.l.b16 %v1859
    %v1940 = vunpack.c.l.b16 %v1860
    %v1941 = vunpack.c.l.b16 %v1861
    %v1942 = vunpack.c.l.b16 %v1862
    %v1943 = vunpack.c.l.b16 %v1863
    %v1944 = vunpack.c.l.b16 %v1864
    %v1945 = vunpack.c.l.b16 %v1865
    %v1946 = vunpack.c.l.b16 %v1866
    %v1947 = vunpack.c.l.b16 %v1867
    %v1948 = vunpack.c.l.b16 %v1868
    %v1949 = vunpack.c.l.b16 %v1869
    %v1950 = vunpack.c.l.b16 %v1870
    %v1951 = vunpack.c.l.b16 %v1871
    %v1952 = vunpack.c.l.b16 %v1872
    %v1953 = vunpack.c.l.b16 %v1873
    %v1954 = vunpack.c.l.b16 %v1874
    %v1955 = vunpack.c.l.b16 %v1875
    %v1956 = vunpack.c.l.b16 %v1876
    %v1957 = vunpack.c.l.b16 %v1877
    %v1958 = vunpack.c.l.b16 %v1878
    %v1959 = vunpack.c.l.b16 %v1879
    %v1960 = vunpack.c.l.b16 %v1880
    %v1961 = vunpack.c.l.b16 %v1881
    %v1962 = vunpack.c.l.b16 %v1882
    %v1963 = vunpack.c.l.b16 %v1883
    %v1964 = vunpack.c.l.b16 %v1884
    %v1965 = vunpack.c.l.b16 %v1885
    %v1966 = vunpack.c.l.b16 %v1886
    %v1967 = vunpack.c.l.b16 %v1887
    %v1968 = vunpack.c.l.b16 %v1888
    %v1969 = vunpack.c.l.b16 %v1889
    %v1970 = vunpack.c.l.b16 %v1890
    %v1971 = vunpack.c.l.b16 %v1891
    %v1972 = vunpack.c.l.b16 %v1892
    %v1973 = vrot.slane %v1894, 7
    %vm1974 = vcmask 1041409
    %v1975 = vsel %vm1974, %v1973, %v1893
    %v1976 = vrot.slane %v1895, 6
    %vm1977 = vcmask 1042434
    %v1978 = vsel %vm1977, %v1976, %v1975
    %v1979 = vrot.slane %v1896, 5
    %vm1980 = vcmask 1043459
    %v1981 = vsel %vm1980, %v1979, %v1978
    %v1982 = vrot.slane %v1897, 4
    %vm1983 = vcmask 1044484
    %v1984 = vsel %vm1983, %v1982, %v1981
    %v1985 = vrot.slane %v1898, 3
    %vm1986 = vcmask 1045509
    %v1987 = vsel %vm1986, %v1985, %v1984
    %v1988 = vrot.slane %v1899, 2
    %vm1989 = vcmask 1046534
    %v1990 = vsel %vm1989, %v1988, %v1987
    %v1991 = vrot.slane %v1900, 1
    %vm1992 = vcmask 1047559
    %v1993 = vsel %vm1992, %v1991, %v1990
    %v1994 = vrot.slane %v1902, 7
    %v1995 = vsel %vm1974, %v1994, %v1901
    %v1996 = vrot.slane %v1903, 6
    %v1997 = vsel %vm1977, %v1996, %v1995
    %v1998 = vrot.slane %v1904, 5
    %v1999 = vsel %vm1980, %v1998, %v1997
    %v2000 = vrot.slane %v1905, 4
    %v2001 = vsel %vm1983, %v2000, %v1999
    %v2002 = vrot.slane %v1906, 3
    %v2003 = vsel %vm1986, %v2002, %v2001
    %v2004 = vrot.slane %v1907, 2
    %v2005 = vsel %vm1989, %v2004, %v2003
    %v2006 = vrot.slane %v1908, 1
    %v2007 = vsel %vm1992, %v2006, %v2005
    %v2008 = vrot.slane %v1910, 7
    %v2009 = vsel %vm1974, %v2008, %v1909
    %v2010 = vrot.slane %v1911, 6
    %v2011 = vsel %vm1977, %v2010, %v2009
    %v2012 = vrot.slane %v1912, 5
    %v2013 = vsel %vm1980, %v2012, %v2011
    %v2014 = vrot.slane %v1913, 4
    %v2015 = vsel %vm1983, %v2014, %v2013
    %v2016 = vrot.slane %v1914, 3
    %v2017 = vsel %vm1986, %v2016, %v2015
    %v2018 = vrot.slane %v1915, 2
    %v2019 = vsel %vm1989, %v2018, %v2017
    %v2020 = vrot.slane %v1916, 1
    %v2021 = vsel %vm1992, %v2020, %v2019
    %v2022 = vrot.slane %v1918, 7
    %v2023 = vsel %vm1974, %v2022, %v1917
    %v2024 = vrot.slane %v1919, 6
    %v2025 = vsel %vm1977, %v2024, %v2023
    %v2026 = vrot.slane %v1920, 5
    %v2027 = vsel %vm1980, %v2026, %v2025
    %v2028 = vrot.slane %v1921, 4
    %v2029 = vsel %vm1983, %v2028, %v2027
    %v2030 = vrot.slane %v1922, 3
    %v2031 = vsel %vm1986, %v2030, %v2029
    %v2032 = vrot.slane %v1923, 2
    %v2033 = vsel %vm1989, %v2032, %v2031
    %v2034 = vrot.slane %v1924, 1
    %v2035 = vsel %vm1992, %v2034, %v2033
    %v2036 = vrot.slane %v1926, 7
    %v2037 = vsel %vm1974, %v2036, %v1925
    %v2038 = vrot.slane %v1927, 6
    %v2039 = vsel %vm1977, %v2038, %v2037
    %v2040 = vrot.slane %v1928, 5
    %v2041 = vsel %vm1980, %v2040, %v2039
    %v2042 = vrot.slane %v1929, 4
    %v2043 = vsel %vm1983, %v2042, %v2041
    %v2044 = vrot.slane %v1930, 3
    %v2045 = vsel %vm1986, %v2044, %v2043
    %v2046 = vrot.slane %v1931, 2
    %v2047 = vsel %vm1989, %v2046, %v2045
    %v2048 = vrot.slane %v1932, 1
    %v2049 = vsel %vm1992, %v2048, %v2047
    %v2050 = vrot.slane %v1934, 7
    %v2051 = vsel %vm1974, %v2050, %v1933
    %v2052 = vrot.slane %v1935, 6
    %v2053 = vsel %vm1977, %v2052, %v2051
    %v2054 = vrot.slane %v1936, 5
    %v2055 = vsel %vm1980, %v2054, %v2053
    %v2056 = vrot.slane %v1937, 4
    %v2057 = vsel %vm1983, %v2056, %v2055
    %v2058 = vrot.slane %v1938, 3
    %v2059 = vsel %vm1986, %v2058, %v2057
    %v2060 = vrot.slane %v1939, 2
    %v2061 = vsel %vm1989, %v2060, %v2059
    %v2062 = vrot.slane %v1940, 1
    %v2063 = vsel %vm1992, %v2062, %v2061
    %v2064 = vrot.slane %v1942, 7
    %v2065 = vsel %vm1974, %v2064, %v1941
    %v2066 = vrot.slane %v1943, 6
    %v2067 = vsel %vm1977, %v2066, %v2065
    %v2068 = vrot.slane %v1944, 5
    %v2069 = vsel %vm1980, %v2068, %v2067
    %v2070 = vrot.slane %v1945, 4
    %v2071 = vsel %vm1983, %v2070, %v2069
    %v2072 = vrot.slane %v1946, 3
    %v2073 = vsel %vm1986, %v2072, %v2071
    %v2074 = vrot.slane %v1947, 2
    %v2075 = vsel %vm1989, %v2074, %v2073
    %v2076 = vrot.slane %v1948, 1
    %v2077 = vsel %vm1992, %v2076, %v2075
    %v2078 = vrot.slane %v1950, 7
    %v2079 = vsel %vm1974, %v2078, %v1949
    %v2080 = vrot.slane %v1951, 6
    %v2081 = vsel %vm1977, %v2080, %v2079
    %v2082 = vrot.slane %v1952, 5
    %v2083 = vsel %vm1980, %v2082, %v2081
    %v2084 = vrot.slane %v1953, 4
    %v2085 = vsel %vm1983, %v2084, %v2083
    %v2086 = vrot.slane %v1954, 3
    %v2087 = vsel %vm1986, %v2086, %v2085
    %v2088 = vrot.slane %v1955, 2
    %v2089 = vsel %vm1989, %v2088, %v2087
    %v2090 = vrot.slane %v1956, 1
    %v2091 = vsel %vm1992, %v2090, %v2089
    %v2092 = vrot.slane %v1958, 7
    %v2093 = vsel %vm1974, %v2092, %v1957
    %v2094 = vrot.slane %v1959, 6
    %v2095 = vsel %vm1977, %v2094, %v2093
    %v2096 = vrot.slane %v1960, 5
    %v2097 = vsel %vm1980, %v2096, %v2095
    %v2098 = vrot.slane %v1961, 4
    %v2099 = vsel %vm1983, %v2098, %v2097
    %v2100 = vrot.slane %v1962, 3
    %v2101 = vsel %vm1986, %v2100, %v2099
    %v2102 = vrot.slane %v1963, 2
    %v2103 = vsel %vm1989, %v2102, %v2101
    %v2104 = vrot.slane %v1964, 1
    %v2105 = vsel %vm1992, %v2104, %v2103
    %v2106 = vrot.slane %v1966, 7
    %v2107 = vsel %vm1974, %v2106, %v1965
    %v2108 = vrot.slane %v1967, 6
    %v2109 = vsel %vm1977, %v2108, %v2107
    %v2110 = vrot.slane %v1968, 5
    %v2111 = vsel %vm1980, %v2110, %v2109
    %v2112 = vrot.slane %v1969, 4
    %v2113 = vsel %vm1983, %v2112, %v2111
    %v2114 = vrot.slane %v1970, 3
    %v2115 = vsel %vm1986, %v2114, %v2113
    %v2116 = vrot.slane %v1971, 2
    %v2117 = vsel %vm1989, %v2116, %v2115
    %v2118 = vrot.slane %v1972, 1
    %v2119 = vsel %vm1992, %v2118, %v2117
    %v2120 = vpack.c.b16 %v2007, %v1993
    %v2121 = vpack.c.b16 %v2035, %v2021
    %v2122 = vpack.c.b16 %v2063, %v2049
    %v2123 = vpack.c.b16 %v2091, %v2077
    %v2124 = vpack.c.b16 %v2119, %v2105
    %v2136 = vunpack.c.l.b16 %v1642
    %v2137 = vunpack.c.l.b16 %v1643
    %v2138 = vunpack.c.l.b16 %v1644
    %v2139 = vunpack.c.l.b16 %v1645
    %v2140 = vunpack.c.l.b16 %v1646
    %v2141 = vunpack.c.l.b16 %v1647
    %v2142 = vunpack.c.l.b16 %v1648
    %v2143 = vunpack.c.l.b16 %v1649
    %v2144 = vunpack.c.l.b16 %v1650
    %v2145 = vunpack.c.l.b16 %v1651
    %v2146 = vunpack.c.l.b16 %v1652
    %v2147 = vpack.c.b16 %v2137, %v2136
    %v2148 = vpack.c.b16 %v2139, %v2138
    %v2149 = vpack.c.b16 %v2141, %v2140
    %v2150 = vpack.c.b16 %v2143, %v2142
    %v2151 = vpack.c.b16 %v2145, %v2144
    %v2152 = vpack.c.b16 %v2146, %v2146
    %vm2158 = vcmask 678912
    %v2160 = vsel %vm2158, %v2120, 0
    %v2163 = vsel %vm2158, %v2121, 0
    %v2166 = vsel %vm2158, %v2122, 0
    %v2169 = vsel %vm2158, %v2123, 0
    %v2172 = vsel %vm2158, %v2124, 0
    %vm2174 = vcmask 1040384
    %v2175 = vsel %vm2174, 4294967295, 65535
    %v2176 = vsel %vm136, %v2175, 0
    %v2178 = vand.u32 %v2152, %v2176
    %2180 = vmatpush.bf16.msra.mxu0 0
    %2181 = vmatpush.bf16.msra.mxu0 0
    %2182 = vmatpush.bf16.msra.mxu0 %v2178
    %2183 = vmatpush.bf16.msra.mxu0 %v2151
    %2184 = vmatpush.bf16.msra.mxu0 %v2150
    %2185 = vmatpush.bf16.msra.mxu0 %v2149
    %2186 = vmatpush.bf16.msra.mxu0 %v2148
    %2187 = vmatpush.bf16.msra.mxu0 %v2147
    %2188 = vmatmul.bf16.gmra.mxu0 %v2160
    %v2189 = vpop.f32.mrf.mxu0
    %v2190 = vadd.f32 0.0, %v2189
    %v2191 = vpop.f32.mrf.mxu0
    %v2192 = vadd.f32 0.0, %v2191
    %2193 = vmatmul.bf16.gmra.mxu0 %v2163
    %v2194 = vpop.f32.mrf.mxu0
    %v2195 = vadd.f32 0.0, %v2194
    %v2196 = vpop.f32.mrf.mxu0
    %v2197 = vadd.f32 0.0, %v2196
    %2198 = vmatmul.bf16.gmra.mxu0 %v2166
    %v2199 = vpop.f32.mrf.mxu0
    %v2200 = vadd.f32 0.0, %v2199
    %v2201 = vpop.f32.mrf.mxu0
    %v2202 = vadd.f32 0.0, %v2201
    %2203 = vmatmul.bf16.gmra.mxu0 %v2169
    %v2204 = vpop.f32.mrf.mxu0
    %v2205 = vadd.f32 0.0, %v2204
    %v2206 = vpop.f32.mrf.mxu0
    %v2207 = vadd.f32 0.0, %v2206
    %2208 = vmatmul.bf16.gmra.mxu0 %v2172
    %v2209 = vpop.f32.mrf.mxu0
    %v2210 = vadd.f32 0.0, %v2209
    %v2211 = vpop.f32.mrf.mxu0
    %v2212 = vadd.f32 0.0, %v2211
    %2213 = vdwg.mxu0
    %v2222 = vunpack.c.l.b16 %v1518
    %v2223 = vunpack.c.l.b16 %v1532
    %v2224 = vunpack.c.l.b16 %v1546
    %v2225 = vunpack.c.l.b16 %v1560
    %v2226 = vunpack.c.l.b16 %v1574
    %v2227 = vunpack.c.l.b16 %v1588
    %v2228 = vunpack.c.l.b16 %v1602
    %v2229 = vunpack.c.l.b16 %v1616
    %v2230 = vpack.c.b16 %v2222, %v2222
    %v2231 = vpack.c.b16 %v2223, %v2223
    %v2232 = vpack.c.b16 %v2224, %v2224
    %v2233 = vpack.c.b16 %v2225, %v2225
    %v2234 = vpack.c.b16 %v2226, %v2226
    %v2235 = vpack.c.b16 %v2227, %v2227
    %v2236 = vpack.c.b16 %v2228, %v2228
    %v2237 = vpack.c.b16 %v2229, %v2229
    %v2238 = vunpack.c.l.b16 %v2230
    %v2239 = vunpack.c.l.b16 %v2231
    %v2240 = vunpack.c.l.b16 %v2232
    %v2241 = vunpack.c.l.b16 %v2233
    %v2242 = vunpack.c.l.b16 %v2234
    %v2243 = vunpack.c.l.b16 %v2235
    %v2244 = vunpack.c.l.b16 %v2236
    %v2245 = vunpack.c.l.b16 %v2237
    %v2246 = vrot.slane %v1893, 7
    %v2247 = vsel %vm1974, %v2246, %v2238
    %v2248 = vrot.slane %v1894, 6
    %v2249 = vsel %vm1977, %v2248, %v2247
    %v2250 = vrot.slane %v1895, 5
    %v2251 = vsel %vm1980, %v2250, %v2249
    %v2252 = vrot.slane %v1896, 4
    %v2253 = vsel %vm1983, %v2252, %v2251
    %v2254 = vrot.slane %v1897, 3
    %v2255 = vsel %vm1986, %v2254, %v2253
    %v2256 = vrot.slane %v1898, 2
    %v2257 = vsel %vm1989, %v2256, %v2255
    %v2258 = vrot.slane %v1899, 1
    %v2259 = vsel %vm1992, %v2258, %v2257
    %v2260 = vrot.slane %v1901, 7
    %v2261 = vsel %vm1974, %v2260, %v1900
    %v2262 = vrot.slane %v2239, 6
    %v2263 = vsel %vm1977, %v2262, %v2261
    %v2264 = vrot.slane %v1903, 5
    %v2265 = vsel %vm1980, %v2264, %v2263
    %v2266 = vrot.slane %v1904, 4
    %v2267 = vsel %vm1983, %v2266, %v2265
    %v2268 = vrot.slane %v1905, 3
    %v2269 = vsel %vm1986, %v2268, %v2267
    %v2270 = vrot.slane %v1906, 2
    %v2271 = vsel %vm1989, %v2270, %v2269
    %v2272 = vrot.slane %v1907, 1
    %v2273 = vsel %vm1992, %v2272, %v2271
    %v2274 = vrot.slane %v1909, 7
    %v2275 = vsel %vm1974, %v2274, %v1908
    %v2276 = vrot.slane %v1910, 6
    %v2277 = vsel %vm1977, %v2276, %v2275
    %v2278 = vrot.slane %v1911, 5
    %v2279 = vsel %vm1980, %v2278, %v2277
    %v2280 = vrot.slane %v2240, 4
    %v2281 = vsel %vm1983, %v2280, %v2279
    %v2282 = vrot.slane %v1913, 3
    %v2283 = vsel %vm1986, %v2282, %v2281
    %v2284 = vrot.slane %v1914, 2
    %v2285 = vsel %vm1989, %v2284, %v2283
    %v2286 = vrot.slane %v1915, 1
    %v2287 = vsel %vm1992, %v2286, %v2285
    %v2288 = vrot.slane %v1917, 7
    %v2289 = vsel %vm1974, %v2288, %v1916
    %v2290 = vrot.slane %v1918, 6
    %v2291 = vsel %vm1977, %v2290, %v2289
    %v2292 = vrot.slane %v1919, 5
    %v2293 = vsel %vm1980, %v2292, %v2291
    %v2294 = vrot.slane %v1920, 4
    %v2295 = vsel %vm1983, %v2294, %v2293
    %v2296 = vrot.slane %v1921, 3
    %v2297 = vsel %vm1986, %v2296, %v2295
    %v2298 = vrot.slane %v2241, 2
    %v2299 = vsel %vm1989, %v2298, %v2297
    %v2300 = vrot.slane %v1923, 1
    %v2301 = vsel %vm1992, %v2300, %v2299
    %v2302 = vrot.slane %v1925, 7
    %v2303 = vsel %vm1974, %v2302, %v1924
    %v2304 = vrot.slane %v1926, 6
    %v2305 = vsel %vm1977, %v2304, %v2303
    %v2306 = vrot.slane %v1927, 5
    %v2307 = vsel %vm1980, %v2306, %v2305
    %v2308 = vrot.slane %v1928, 4
    %v2309 = vsel %vm1983, %v2308, %v2307
    %v2310 = vrot.slane %v1929, 3
    %v2311 = vsel %vm1986, %v2310, %v2309
    %v2312 = vrot.slane %v1930, 2
    %v2313 = vsel %vm1989, %v2312, %v2311
    %v2314 = vrot.slane %v1931, 1
    %v2315 = vsel %vm1992, %v2314, %v2313
    %v2316 = vrot.slane %v1933, 7
    %v2317 = vsel %vm1974, %v2316, %v2242
    %v2318 = vrot.slane %v1934, 6
    %v2319 = vsel %vm1977, %v2318, %v2317
    %v2320 = vrot.slane %v1935, 5
    %v2321 = vsel %vm1980, %v2320, %v2319
    %v2322 = vrot.slane %v1936, 4
    %v2323 = vsel %vm1983, %v2322, %v2321
    %v2324 = vrot.slane %v1937, 3
    %v2325 = vsel %vm1986, %v2324, %v2323
    %v2326 = vrot.slane %v1938, 2
    %v2327 = vsel %vm1989, %v2326, %v2325
    %v2328 = vrot.slane %v1939, 1
    %v2329 = vsel %vm1992, %v2328, %v2327
    %v2330 = vrot.slane %v1941, 7
    %v2331 = vsel %vm1974, %v2330, %v1940
    %v2332 = vrot.slane %v2243, 6
    %v2333 = vsel %vm1977, %v2332, %v2331
    %v2334 = vrot.slane %v1943, 5
    %v2335 = vsel %vm1980, %v2334, %v2333
    %v2336 = vrot.slane %v1944, 4
    %v2337 = vsel %vm1983, %v2336, %v2335
    %v2338 = vrot.slane %v1945, 3
    %v2339 = vsel %vm1986, %v2338, %v2337
    %v2340 = vrot.slane %v1946, 2
    %v2341 = vsel %vm1989, %v2340, %v2339
    %v2342 = vrot.slane %v1947, 1
    %v2343 = vsel %vm1992, %v2342, %v2341
    %v2344 = vrot.slane %v1949, 7
    %v2345 = vsel %vm1974, %v2344, %v1948
    %v2346 = vrot.slane %v1950, 6
    %v2347 = vsel %vm1977, %v2346, %v2345
    %v2348 = vrot.slane %v1951, 5
    %v2349 = vsel %vm1980, %v2348, %v2347
    %v2350 = vrot.slane %v2244, 4
    %v2351 = vsel %vm1983, %v2350, %v2349
    %v2352 = vrot.slane %v1953, 3
    %v2353 = vsel %vm1986, %v2352, %v2351
    %v2354 = vrot.slane %v1954, 2
    %v2355 = vsel %vm1989, %v2354, %v2353
    %v2356 = vrot.slane %v1955, 1
    %v2357 = vsel %vm1992, %v2356, %v2355
    %v2358 = vrot.slane %v1957, 7
    %v2359 = vsel %vm1974, %v2358, %v1956
    %v2360 = vrot.slane %v1958, 6
    %v2361 = vsel %vm1977, %v2360, %v2359
    %v2362 = vrot.slane %v1959, 5
    %v2363 = vsel %vm1980, %v2362, %v2361
    %v2364 = vrot.slane %v1960, 4
    %v2365 = vsel %vm1983, %v2364, %v2363
    %v2366 = vrot.slane %v1961, 3
    %v2367 = vsel %vm1986, %v2366, %v2365
    %v2368 = vrot.slane %v2245, 2
    %v2369 = vsel %vm1989, %v2368, %v2367
    %v2370 = vrot.slane %v1963, 1
    %v2371 = vsel %vm1992, %v2370, %v2369
    %v2372 = vrot.slane %v1965, 7
    %v2373 = vsel %vm1974, %v2372, %v1964
    %v2374 = vrot.slane %v1966, 6
    %v2375 = vsel %vm1977, %v2374, %v2373
    %v2376 = vrot.slane %v1967, 5
    %v2377 = vsel %vm1980, %v2376, %v2375
    %v2378 = vrot.slane %v1968, 4
    %v2379 = vsel %vm1983, %v2378, %v2377
    %v2380 = vrot.slane %v1969, 3
    %v2381 = vsel %vm1986, %v2380, %v2379
    %v2382 = vrot.slane %v1970, 2
    %v2383 = vsel %vm1989, %v2382, %v2381
    %v2384 = vrot.slane %v1971, 1
    %v2385 = vsel %vm1992, %v2384, %v2383
    %v2386 = vpack.c.b16 %v2273, %v2259
    %v2387 = vpack.c.b16 %v2301, %v2287
    %v2388 = vpack.c.b16 %v2329, %v2315
    %v2389 = vpack.c.b16 %v2357, %v2343
    %v2390 = vpack.c.b16 %v2385, %v2371
    %v2402 = vunpack.c.l.b16 %v1630
    %v2403 = vunpack.c.l.b16 %v1631
    %v2404 = vunpack.c.l.b16 %v1632
    %v2405 = vunpack.c.l.b16 %v1633
    %v2406 = vunpack.c.l.b16 %v1634
    %v2407 = vunpack.c.l.b16 %v1635
    %v2408 = vunpack.c.l.b16 %v1636
    %v2409 = vunpack.c.l.b16 %v1637
    %v2410 = vunpack.c.l.b16 %v1638
    %v2411 = vunpack.c.l.b16 %v1639
    %v2412 = vunpack.c.l.b16 %v1640
    %v2413 = vpack.c.b16 %v2403, %v2402
    %v2414 = vpack.c.b16 %v2405, %v2404
    %v2415 = vpack.c.b16 %v2407, %v2406
    %v2416 = vpack.c.b16 %v2409, %v2408
    %v2417 = vpack.c.b16 %v2411, %v2410
    %v2418 = vpack.c.b16 %v2412, %v2412
    %v2425 = vsel %vm2158, %v2386, 0
    %v2428 = vsel %vm2158, %v2387, 0
    %v2431 = vsel %vm2158, %v2388, 0
    %v2434 = vsel %vm2158, %v2389, 0
    %v2437 = vsel %vm2158, %v2390, 0
    %v2440 = vand.u32 %v2418, %v2176
    %2442 = vmatpush.bf16.msra.mxu0 0
    %2443 = vmatpush.bf16.msra.mxu0 0
    %2444 = vmatpush.bf16.msra.mxu0 %v2440
    %2445 = vmatpush.bf16.msra.mxu0 %v2417
    %2446 = vmatpush.bf16.msra.mxu0 %v2416
    %2447 = vmatpush.bf16.msra.mxu0 %v2415
    %2448 = vmatpush.bf16.msra.mxu0 %v2414
    %2449 = vmatpush.bf16.msra.mxu0 %v2413
    %2450 = vmatmul.bf16.gmra.mxu0 %v2425
    %v2451 = vpop.f32.mrf.mxu0
    %v2452 = vadd.f32 %v2190, %v2451
    %v2453 = vpop.f32.mrf.mxu0
    %v2454 = vadd.f32 %v2192, %v2453
    %2455 = vmatmul.bf16.gmra.mxu0 %v2428
    %v2456 = vpop.f32.mrf.mxu0
    %v2457 = vadd.f32 %v2195, %v2456
    %v2458 = vpop.f32.mrf.mxu0
    %v2459 = vadd.f32 %v2197, %v2458
    %2460 = vmatmul.bf16.gmra.mxu0 %v2431
    %v2461 = vpop.f32.mrf.mxu0
    %v2462 = vadd.f32 %v2200, %v2461
    %v2463 = vpop.f32.mrf.mxu0
    %v2464 = vadd.f32 %v2202, %v2463
    %2465 = vmatmul.bf16.gmra.mxu0 %v2434
    %v2466 = vpop.f32.mrf.mxu0
    %v2467 = vadd.f32 %v2205, %v2466
    %v2468 = vpop.f32.mrf.mxu0
    %v2469 = vadd.f32 %v2207, %v2468
    %2470 = vmatmul.bf16.gmra.mxu0 %v2437
    %v2471 = vpop.f32.mrf.mxu0
    %v2472 = vadd.f32 %v2210, %v2471
    %v2473 = vpop.f32.mrf.mxu0
    %v2474 = vadd.f32 %v2212, %v2473
    %2475 = vdwg.mxu0
    %s2476 = scalar_lea.vmem %s3, 88
    %v2477 = vld [vmem:[%s2476] sm:$0xf]
    %v2478 = vld [vmem:[%s2476 + $0x4] sm:$0xf]
    %v2479 = vld [vmem:[%s2476 + $0x8] sm:$0xf]
    %v2480 = vld [vmem:[%s2476 + $0xc] sm:$0xf]
    %v2481 = vld [vmem:[%s2476 + $0x10] sm:$0xf]
    %v2482 = vld [vmem:[%s2476 + $0x14] sm:$0xf]
    %v2483 = vld [vmem:[%s2476 + $0x18] sm:$0xf]
    %v2484 = vld [vmem:[%s2476 + $0x1c] sm:$0xf]
    %v2485 = vld [vmem:[%s2476 + $0x20] sm:$0xf]
    %v2486 = vld [vmem:[%s2476 + $0x24] sm:$0xf]
    %v2487 = vld [vmem:[%s2476 + $0x28] sm:$0x3]
    %v2496 = vunpack.c.l.b16 %v1529
    %v2497 = vunpack.c.l.b16 %v1543
    %v2498 = vunpack.c.l.b16 %v1557
    %v2499 = vunpack.c.l.b16 %v1571
    %v2500 = vunpack.c.l.b16 %v1585
    %v2501 = vunpack.c.l.b16 %v1599
    %v2502 = vunpack.c.l.b16 %v1613
    %v2503 = vunpack.c.l.b16 %v1627
    %v2504 = vpack.c.b16 %v2496, %v2496
    %v2505 = vpack.c.b16 %v2497, %v2497
    %v2506 = vpack.c.b16 %v2498, %v2498
    %v2507 = vpack.c.b16 %v2499, %v2499
    %v2508 = vpack.c.b16 %v2500, %v2500
    %v2509 = vpack.c.b16 %v2501, %v2501
    %v2510 = vpack.c.b16 %v2502, %v2502
    %v2511 = vpack.c.b16 %v2503, %v2503
    %v2512 = vunpack.c.l.b16 %v2504
    %v2513 = vunpack.c.l.b16 %v2505
    %v2514 = vunpack.c.l.b16 %v2506
    %v2515 = vunpack.c.l.b16 %v2507
    %v2516 = vunpack.c.l.b16 %v2508
    %v2517 = vunpack.c.l.b16 %v2509
    %v2518 = vunpack.c.l.b16 %v2510
    %v2519 = vunpack.c.l.b16 %v2511
    %v2520 = vrot.slane %v1895, 7
    %v2521 = vsel %vm1974, %v2520, %v1894
    %v2522 = vrot.slane %v1896, 6
    %v2523 = vsel %vm1977, %v2522, %v2521
    %v2524 = vrot.slane %v1897, 5
    %v2525 = vsel %vm1980, %v2524, %v2523
    %v2526 = vrot.slane %v1898, 4
    %v2527 = vsel %vm1983, %v2526, %v2525
    %v2528 = vrot.slane %v1899, 3
    %v2529 = vsel %vm1986, %v2528, %v2527
    %v2530 = vrot.slane %v1900, 2
    %v2531 = vsel %vm1989, %v2530, %v2529
    %v2532 = vrot.slane %v1901, 1
    %v2533 = vsel %vm1992, %v2532, %v2531
    %v2534 = vrot.slane %v2512, 7
    %v2535 = vsel %vm1974, %v2534, %v1902
    %v2536 = vrot.slane %v1904, 6
    %v2537 = vsel %vm1977, %v2536, %v2535
    %v2538 = vrot.slane %v1905, 5
    %v2539 = vsel %vm1980, %v2538, %v2537
    %v2540 = vrot.slane %v1906, 4
    %v2541 = vsel %vm1983, %v2540, %v2539
    %v2542 = vrot.slane %v1907, 3
    %v2543 = vsel %vm1986, %v2542, %v2541
    %v2544 = vrot.slane %v1908, 2
    %v2545 = vsel %vm1989, %v2544, %v2543
    %v2546 = vrot.slane %v1909, 1
    %v2547 = vsel %vm1992, %v2546, %v2545
    %v2548 = vrot.slane %v1911, 7
    %v2549 = vsel %vm1974, %v2548, %v1910
    %v2550 = vrot.slane %v1912, 6
    %v2551 = vsel %vm1977, %v2550, %v2549
    %v2552 = vrot.slane %v2513, 5
    %v2553 = vsel %vm1980, %v2552, %v2551
    %v2554 = vrot.slane %v1914, 4
    %v2555 = vsel %vm1983, %v2554, %v2553
    %v2556 = vrot.slane %v1915, 3
    %v2557 = vsel %vm1986, %v2556, %v2555
    %v2558 = vrot.slane %v1916, 2
    %v2559 = vsel %vm1989, %v2558, %v2557
    %v2560 = vrot.slane %v1917, 1
    %v2561 = vsel %vm1992, %v2560, %v2559
    %v2562 = vrot.slane %v1919, 7
    %v2563 = vsel %vm1974, %v2562, %v1918
    %v2564 = vrot.slane %v1920, 6
    %v2565 = vsel %vm1977, %v2564, %v2563
    %v2566 = vrot.slane %v1921, 5
    %v2567 = vsel %vm1980, %v2566, %v2565
    %v2568 = vrot.slane %v1922, 4
    %v2569 = vsel %vm1983, %v2568, %v2567
    %v2570 = vrot.slane %v2514, 3
    %v2571 = vsel %vm1986, %v2570, %v2569
    %v2572 = vrot.slane %v1924, 2
    %v2573 = vsel %vm1989, %v2572, %v2571
    %v2574 = vrot.slane %v1925, 1
    %v2575 = vsel %vm1992, %v2574, %v2573
    %v2576 = vrot.slane %v1927, 7
    %v2577 = vsel %vm1974, %v2576, %v1926
    %v2578 = vrot.slane %v1928, 6
    %v2579 = vsel %vm1977, %v2578, %v2577
    %v2580 = vrot.slane %v1929, 5
    %v2581 = vsel %vm1980, %v2580, %v2579
    %v2582 = vrot.slane %v1930, 4
    %v2583 = vsel %vm1983, %v2582, %v2581
    %v2584 = vrot.slane %v1931, 3
    %v2585 = vsel %vm1986, %v2584, %v2583
    %v2586 = vrot.slane %v1932, 2
    %v2587 = vsel %vm1989, %v2586, %v2585
    %v2588 = vrot.slane %v2515, 1
    %v2589 = vsel %vm1992, %v2588, %v2587
    %v2590 = vrot.slane %v1935, 7
    %v2591 = vsel %vm1974, %v2590, %v1934
    %v2592 = vrot.slane %v1936, 6
    %v2593 = vsel %vm1977, %v2592, %v2591
    %v2594 = vrot.slane %v1937, 5
    %v2595 = vsel %vm1980, %v2594, %v2593
    %v2596 = vrot.slane %v1938, 4
    %v2597 = vsel %vm1983, %v2596, %v2595
    %v2598 = vrot.slane %v1939, 3
    %v2599 = vsel %vm1986, %v2598, %v2597
    %v2600 = vrot.slane %v1940, 2
    %v2601 = vsel %vm1989, %v2600, %v2599
    %v2602 = vrot.slane %v1941, 1
    %v2603 = vsel %vm1992, %v2602, %v2601
    %v2604 = vrot.slane %v2516, 7
    %v2605 = vsel %vm1974, %v2604, %v1942
    %v2606 = vrot.slane %v1944, 6
    %v2607 = vsel %vm1977, %v2606, %v2605
    %v2608 = vrot.slane %v1945, 5
    %v2609 = vsel %vm1980, %v2608, %v2607
    %v2610 = vrot.slane %v1946, 4
    %v2611 = vsel %vm1983, %v2610, %v2609
    %v2612 = vrot.slane %v1947, 3
    %v2613 = vsel %vm1986, %v2612, %v2611
    %v2614 = vrot.slane %v1948, 2
    %v2615 = vsel %vm1989, %v2614, %v2613
    %v2616 = vrot.slane %v1949, 1
    %v2617 = vsel %vm1992, %v2616, %v2615
    %v2618 = vrot.slane %v1951, 7
    %v2619 = vsel %vm1974, %v2618, %v1950
    %v2620 = vrot.slane %v1952, 6
    %v2621 = vsel %vm1977, %v2620, %v2619
    %v2622 = vrot.slane %v2517, 5
    %v2623 = vsel %vm1980, %v2622, %v2621
    %v2624 = vrot.slane %v1954, 4
    %v2625 = vsel %vm1983, %v2624, %v2623
    %v2626 = vrot.slane %v1955, 3
    %v2627 = vsel %vm1986, %v2626, %v2625
    %v2628 = vrot.slane %v1956, 2
    %v2629 = vsel %vm1989, %v2628, %v2627
    %v2630 = vrot.slane %v1957, 1
    %v2631 = vsel %vm1992, %v2630, %v2629
    %v2632 = vrot.slane %v1959, 7
    %v2633 = vsel %vm1974, %v2632, %v1958
    %v2634 = vrot.slane %v1960, 6
    %v2635 = vsel %vm1977, %v2634, %v2633
    %v2636 = vrot.slane %v1961, 5
    %v2637 = vsel %vm1980, %v2636, %v2635
    %v2638 = vrot.slane %v1962, 4
    %v2639 = vsel %vm1983, %v2638, %v2637
    %v2640 = vrot.slane %v2518, 3
    %v2641 = vsel %vm1986, %v2640, %v2639
    %v2642 = vrot.slane %v1964, 2
    %v2643 = vsel %vm1989, %v2642, %v2641
    %v2644 = vrot.slane %v1965, 1
    %v2645 = vsel %vm1992, %v2644, %v2643
    %v2646 = vrot.slane %v1967, 7
    %v2647 = vsel %vm1974, %v2646, %v1966
    %v2648 = vrot.slane %v1968, 6
    %v2649 = vsel %vm1977, %v2648, %v2647
    %v2650 = vrot.slane %v1969, 5
    %v2651 = vsel %vm1980, %v2650, %v2649
    %v2652 = vrot.slane %v1970, 4
    %v2653 = vsel %vm1983, %v2652, %v2651
    %v2654 = vrot.slane %v1971, 3
    %v2655 = vsel %vm1986, %v2654, %v2653
    %v2656 = vrot.slane %v1972, 2
    %v2657 = vsel %vm1989, %v2656, %v2655
    %v2658 = vrot.slane %v2519, 1
    %v2659 = vsel %vm1992, %v2658, %v2657
    %v2660 = vpack.c.b16 %v2547, %v2533
    %v2661 = vpack.c.b16 %v2575, %v2561
    %v2662 = vpack.c.b16 %v2603, %v2589
    %v2663 = vpack.c.b16 %v2631, %v2617
    %v2664 = vpack.c.b16 %v2659, %v2645
    %v2676 = vunpack.c.l.b16 %v2477
    %v2677 = vunpack.c.l.b16 %v2478
    %v2678 = vunpack.c.l.b16 %v2479
    %v2679 = vunpack.c.l.b16 %v2480
    %v2680 = vunpack.c.l.b16 %v2481
    %v2681 = vunpack.c.l.b16 %v2482
    %v2682 = vunpack.c.l.b16 %v2483
    %v2683 = vunpack.c.l.b16 %v2484
    %v2684 = vunpack.c.l.b16 %v2485
    %v2685 = vunpack.c.l.b16 %v2486
    %v2686 = vunpack.c.l.b16 %v2487
    %v2687 = vpack.c.b16 %v2677, %v2676
    %v2688 = vpack.c.b16 %v2679, %v2678
    %v2689 = vpack.c.b16 %v2681, %v2680
    %v2690 = vpack.c.b16 %v2683, %v2682
    %v2691 = vpack.c.b16 %v2685, %v2684
    %v2692 = vpack.c.b16 %v2686, %v2686
    %v2699 = vsel %vm2158, %v2660, 0
    %v2702 = vsel %vm2158, %v2661, 0
    %v2705 = vsel %vm2158, %v2662, 0
    %v2708 = vsel %vm2158, %v2663, 0
    %v2711 = vsel %vm2158, %v2664, 0
    %v2714 = vand.u32 %v2692, %v2176
    %2716 = vmatpush.bf16.msra.mxu0 0
    %2717 = vmatpush.bf16.msra.mxu0 0
    %2718 = vmatpush.bf16.msra.mxu0 %v2714
    %2719 = vmatpush.bf16.msra.mxu0 %v2691
    %2720 = vmatpush.bf16.msra.mxu0 %v2690
    %2721 = vmatpush.bf16.msra.mxu0 %v2689
    %2722 = vmatpush.bf16.msra.mxu0 %v2688
    %2723 = vmatpush.bf16.msra.mxu0 %v2687
    %2724 = vmatmul.bf16.gmra.mxu0 %v2699
    %v2725 = vpop.f32.mrf.mxu0
    %v2726 = vadd.f32 0.0, %v2725
    %v2727 = vpop.f32.mrf.mxu0
    %v2728 = vadd.f32 0.0, %v2727
    %2729 = vmatmul.bf16.gmra.mxu0 %v2702
    %v2730 = vpop.f32.mrf.mxu0
    %v2731 = vadd.f32 0.0, %v2730
    %v2732 = vpop.f32.mrf.mxu0
    %v2733 = vadd.f32 0.0, %v2732
    %2734 = vmatmul.bf16.gmra.mxu0 %v2705
    %v2735 = vpop.f32.mrf.mxu0
    %v2736 = vadd.f32 0.0, %v2735
    %v2737 = vpop.f32.mrf.mxu0
    %v2738 = vadd.f32 0.0, %v2737
    %2739 = vmatmul.bf16.gmra.mxu0 %v2708
    %v2740 = vpop.f32.mrf.mxu0
    %v2741 = vadd.f32 0.0, %v2740
    %v2742 = vpop.f32.mrf.mxu0
    %v2743 = vadd.f32 0.0, %v2742
    %2744 = vmatmul.bf16.gmra.mxu0 %v2711
    %v2745 = vpop.f32.mrf.mxu0
    %v2746 = vadd.f32 0.0, %v2745
    %v2747 = vpop.f32.mrf.mxu0
    %v2748 = vadd.f32 0.0, %v2747
    %2749 = vdwg.mxu0
    %v2750 = vadd.f32 %v2452, %v2726
    %v2751 = vadd.f32 %v2454, %v2728
    %v2752 = vadd.f32 %v2457, %v2731
    %v2753 = vadd.f32 %v2459, %v2733
    %v2754 = vadd.f32 %v2462, %v2736
    %v2755 = vadd.f32 %v2464, %v2738
    %v2756 = vadd.f32 %v2467, %v2741
    %v2757 = vadd.f32 %v2469, %v2743
    %v2758 = vadd.f32 %v2472, %v2746
    %v2759 = vadd.f32 %v2474, %v2748
    %s2760 = scalar_lea.vmem %s3, 132
    %v2761 = vld [vmem:[%s2760] sm:$0xf]
    %v2762 = vld [vmem:[%s2760 + $0x4] sm:$0xf]
    %v2763 = vld [vmem:[%s2760 + $0x8] sm:$0xf]
    %v2764 = vld [vmem:[%s2760 + $0xc] sm:$0xf]
    %v2765 = vld [vmem:[%s2760 + $0x10] sm:$0xf]
    %v2766 = vld [vmem:[%s2760 + $0x14] sm:$0xf]
    %v2767 = vld [vmem:[%s2760 + $0x18] sm:$0xf]
    %v2768 = vld [vmem:[%s2760 + $0x1c] sm:$0xf]
    %v2769 = vld [vmem:[%s2760 + $0x20] sm:$0xf]
    %v2770 = vld [vmem:[%s2760 + $0x24] sm:$0xf]
    %v2771 = vld [vmem:[%s2760 + $0x28] sm:$0x3]
    %v2780 = vunpack.c.l.b16 %v1530
    %v2781 = vunpack.c.l.b16 %v1544
    %v2782 = vunpack.c.l.b16 %v1558
    %v2783 = vunpack.c.l.b16 %v1572
    %v2784 = vunpack.c.l.b16 %v1586
    %v2785 = vunpack.c.l.b16 %v1600
    %v2786 = vunpack.c.l.b16 %v1614
    %v2787 = vunpack.c.l.b16 %v1628
    %v2788 = vpack.c.b16 %v2780, %v2780
    %v2789 = vpack.c.b16 %v2781, %v2781
    %v2790 = vpack.c.b16 %v2782, %v2782
    %v2791 = vpack.c.b16 %v2783, %v2783
    %v2792 = vpack.c.b16 %v2784, %v2784
    %v2793 = vpack.c.b16 %v2785, %v2785
    %v2794 = vpack.c.b16 %v2786, %v2786
    %v2795 = vpack.c.b16 %v2787, %v2787
    %v2796 = vunpack.c.l.b16 %v2788
    %v2797 = vunpack.c.l.b16 %v2789
    %v2798 = vunpack.c.l.b16 %v2790
    %v2799 = vunpack.c.l.b16 %v2791
    %v2800 = vunpack.c.l.b16 %v2792
    %v2801 = vunpack.c.l.b16 %v2793
    %v2802 = vunpack.c.l.b16 %v2794
    %v2803 = vunpack.c.l.b16 %v2795
    %v2804 = vrot.slane %v1896, 7
    %v2805 = vsel %vm1974, %v2804, %v1895
    %v2806 = vrot.slane %v1897, 6
    %v2807 = vsel %vm1977, %v2806, %v2805
    %v2808 = vrot.slane %v1898, 5
    %v2809 = vsel %vm1980, %v2808, %v2807
    %v2810 = vrot.slane %v1899, 4
    %v2811 = vsel %vm1983, %v2810, %v2809
    %v2812 = vrot.slane %v1900, 3
    %v2813 = vsel %vm1986, %v2812, %v2811
    %v2814 = vrot.slane %v1901, 2
    %v2815 = vsel %vm1989, %v2814, %v2813
    %v2816 = vrot.slane %v1902, 1
    %v2817 = vsel %vm1992, %v2816, %v2815
    %v2818 = vrot.slane %v2796, 7
    %v2819 = vsel %vm1974, %v2818, %v2512
    %v2820 = vrot.slane %v1905, 6
    %v2821 = vsel %vm1977, %v2820, %v2819
    %v2822 = vrot.slane %v1906, 5
    %v2823 = vsel %vm1980, %v2822, %v2821
    %v2824 = vrot.slane %v1907, 4
    %v2825 = vsel %vm1983, %v2824, %v2823
    %v2826 = vrot.slane %v1908, 3
    %v2827 = vsel %vm1986, %v2826, %v2825
    %v2828 = vrot.slane %v1909, 2
    %v2829 = vsel %vm1989, %v2828, %v2827
    %v2830 = vrot.slane %v1910, 1
    %v2831 = vsel %vm1992, %v2830, %v2829
    %v2832 = vrot.slane %v1912, 7
    %v2833 = vsel %vm1974, %v2832, %v1911
    %v2834 = vrot.slane %v2513, 6
    %v2835 = vsel %vm1977, %v2834, %v2833
    %v2836 = vrot.slane %v2797, 5
    %v2837 = vsel %vm1980, %v2836, %v2835
    %v2838 = vrot.slane %v1915, 4
    %v2839 = vsel %vm1983, %v2838, %v2837
    %v2840 = vrot.slane %v1916, 3
    %v2841 = vsel %vm1986, %v2840, %v2839
    %v2842 = vrot.slane %v1917, 2
    %v2843 = vsel %vm1989, %v2842, %v2841
    %v2844 = vrot.slane %v1918, 1
    %v2845 = vsel %vm1992, %v2844, %v2843
    %v2846 = vrot.slane %v1920, 7
    %v2847 = vsel %vm1974, %v2846, %v1919
    %v2848 = vrot.slane %v1921, 6
    %v2849 = vsel %vm1977, %v2848, %v2847
    %v2850 = vrot.slane %v1922, 5
    %v2851 = vsel %vm1980, %v2850, %v2849
    %v2852 = vrot.slane %v2514, 4
    %v2853 = vsel %vm1983, %v2852, %v2851
    %v2854 = vrot.slane %v2798, 3
    %v2855 = vsel %vm1986, %v2854, %v2853
    %v2856 = vrot.slane %v1925, 2
    %v2857 = vsel %vm1989, %v2856, %v2855
    %v2858 = vrot.slane %v1926, 1
    %v2859 = vsel %vm1992, %v2858, %v2857
    %v2860 = vrot.slane %v1928, 7
    %v2861 = vsel %vm1974, %v2860, %v1927
    %v2862 = vrot.slane %v1929, 6
    %v2863 = vsel %vm1977, %v2862, %v2861
    %v2864 = vrot.slane %v1930, 5
    %v2865 = vsel %vm1980, %v2864, %v2863
    %v2866 = vrot.slane %v1931, 4
    %v2867 = vsel %vm1983, %v2866, %v2865
    %v2868 = vrot.slane %v1932, 3
    %v2869 = vsel %vm1986, %v2868, %v2867
    %v2870 = vrot.slane %v2515, 2
    %v2871 = vsel %vm1989, %v2870, %v2869
    %v2872 = vrot.slane %v2799, 1
    %v2873 = vsel %vm1992, %v2872, %v2871
    %v2874 = vrot.slane %v1936, 7
    %v2875 = vsel %vm1974, %v2874, %v1935
    %v2876 = vrot.slane %v1937, 6
    %v2877 = vsel %vm1977, %v2876, %v2875
    %v2878 = vrot.slane %v1938, 5
    %v2879 = vsel %vm1980, %v2878, %v2877
    %v2880 = vrot.slane %v1939, 4
    %v2881 = vsel %vm1983, %v2880, %v2879
    %v2882 = vrot.slane %v1940, 3
    %v2883 = vsel %vm1986, %v2882, %v2881
    %v2884 = vrot.slane %v1941, 2
    %v2885 = vsel %vm1989, %v2884, %v2883
    %v2886 = vrot.slane %v1942, 1
    %v2887 = vsel %vm1992, %v2886, %v2885
    %v2888 = vrot.slane %v2800, 7
    %v2889 = vsel %vm1974, %v2888, %v2516
    %v2890 = vrot.slane %v1945, 6
    %v2891 = vsel %vm1977, %v2890, %v2889
    %v2892 = vrot.slane %v1946, 5
    %v2893 = vsel %vm1980, %v2892, %v2891
    %v2894 = vrot.slane %v1947, 4
    %v2895 = vsel %vm1983, %v2894, %v2893
    %v2896 = vrot.slane %v1948, 3
    %v2897 = vsel %vm1986, %v2896, %v2895
    %v2898 = vrot.slane %v1949, 2
    %v2899 = vsel %vm1989, %v2898, %v2897
    %v2900 = vrot.slane %v1950, 1
    %v2901 = vsel %vm1992, %v2900, %v2899
    %v2902 = vrot.slane %v1952, 7
    %v2903 = vsel %vm1974, %v2902, %v1951
    %v2904 = vrot.slane %v2517, 6
    %v2905 = vsel %vm1977, %v2904, %v2903
    %v2906 = vrot.slane %v2801, 5
    %v2907 = vsel %vm1980, %v2906, %v2905
    %v2908 = vrot.slane %v1955, 4
    %v2909 = vsel %vm1983, %v2908, %v2907
    %v2910 = vrot.slane %v1956, 3
    %v2911 = vsel %vm1986, %v2910, %v2909
    %v2912 = vrot.slane %v1957, 2
    %v2913 = vsel %vm1989, %v2912, %v2911
    %v2914 = vrot.slane %v1958, 1
    %v2915 = vsel %vm1992, %v2914, %v2913
    %v2916 = vrot.slane %v1960, 7
    %v2917 = vsel %vm1974, %v2916, %v1959
    %v2918 = vrot.slane %v1961, 6
    %v2919 = vsel %vm1977, %v2918, %v2917
    %v2920 = vrot.slane %v1962, 5
    %v2921 = vsel %vm1980, %v2920, %v2919
    %v2922 = vrot.slane %v2518, 4
    %v2923 = vsel %vm1983, %v2922, %v2921
    %v2924 = vrot.slane %v2802, 3
    %v2925 = vsel %vm1986, %v2924, %v2923
    %v2926 = vrot.slane %v1965, 2
    %v2927 = vsel %vm1989, %v2926, %v2925
    %v2928 = vrot.slane %v1966, 1
    %v2929 = vsel %vm1992, %v2928, %v2927
    %v2930 = vrot.slane %v1968, 7
    %v2931 = vsel %vm1974, %v2930, %v1967
    %v2932 = vrot.slane %v1969, 6
    %v2933 = vsel %vm1977, %v2932, %v2931
    %v2934 = vrot.slane %v1970, 5
    %v2935 = vsel %vm1980, %v2934, %v2933
    %v2936 = vrot.slane %v1971, 4
    %v2937 = vsel %vm1983, %v2936, %v2935
    %v2938 = vrot.slane %v1972, 3
    %v2939 = vsel %vm1986, %v2938, %v2937
    %v2940 = vrot.slane %v2519, 2
    %v2941 = vsel %vm1989, %v2940, %v2939
    %v2942 = vrot.slane %v2803, 1
    %v2943 = vsel %vm1992, %v2942, %v2941
    %v2944 = vpack.c.b16 %v2831, %v2817
    %v2945 = vpack.c.b16 %v2859, %v2845
    %v2946 = vpack.c.b16 %v2887, %v2873
    %v2947 = vpack.c.b16 %v2915, %v2901
    %v2948 = vpack.c.b16 %v2943, %v2929
    %v2960 = vunpack.c.l.b16 %v2761
    %v2961 = vunpack.c.l.b16 %v2762
    %v2962 = vunpack.c.l.b16 %v2763
    %v2963 = vunpack.c.l.b16 %v2764
    %v2964 = vunpack.c.l.b16 %v2765
    %v2965 = vunpack.c.l.b16 %v2766
    %v2966 = vunpack.c.l.b16 %v2767
    %v2967 = vunpack.c.l.b16 %v2768
    %v2968 = vunpack.c.l.b16 %v2769
    %v2969 = vunpack.c.l.b16 %v2770
    %v2970 = vunpack.c.l.b16 %v2771
    %v2971 = vpack.c.b16 %v2961, %v2960
    %v2972 = vpack.c.b16 %v2963, %v2962
    %v2973 = vpack.c.b16 %v2965, %v2964
    %v2974 = vpack.c.b16 %v2967, %v2966
    %v2975 = vpack.c.b16 %v2969, %v2968
    %v2976 = vpack.c.b16 %v2970, %v2970
    %v2983 = vsel %vm2158, %v2944, 0
    %v2986 = vsel %vm2158, %v2945, 0
    %v2989 = vsel %vm2158, %v2946, 0
    %v2992 = vsel %vm2158, %v2947, 0
    %v2995 = vsel %vm2158, %v2948, 0
    %v2998 = vand.u32 %v2976, %v2176
    %3000 = vmatpush.bf16.msra.mxu0 0
    %3001 = vmatpush.bf16.msra.mxu0 0
    %3002 = vmatpush.bf16.msra.mxu0 %v2998
    %3003 = vmatpush.bf16.msra.mxu0 %v2975
    %3004 = vmatpush.bf16.msra.mxu0 %v2974
    %3005 = vmatpush.bf16.msra.mxu0 %v2973
    %3006 = vmatpush.bf16.msra.mxu0 %v2972
    %3007 = vmatpush.bf16.msra.mxu0 %v2971
    %3008 = vmatmul.bf16.gmra.mxu0 %v2983
    %v3009 = vpop.f32.mrf.mxu0
    %v3010 = vadd.f32 0.0, %v3009
    %v3011 = vpop.f32.mrf.mxu0
    %v3012 = vadd.f32 0.0, %v3011
    %3013 = vmatmul.bf16.gmra.mxu0 %v2986
    %v3014 = vpop.f32.mrf.mxu0
    %v3015 = vadd.f32 0.0, %v3014
    %v3016 = vpop.f32.mrf.mxu0
    %v3017 = vadd.f32 0.0, %v3016
    %3018 = vmatmul.bf16.gmra.mxu0 %v2989
    %v3019 = vpop.f32.mrf.mxu0
    %v3020 = vadd.f32 0.0, %v3019
    %v3021 = vpop.f32.mrf.mxu0
    %v3022 = vadd.f32 0.0, %v3021
    %3023 = vmatmul.bf16.gmra.mxu0 %v2992
    %v3024 = vpop.f32.mrf.mxu0
    %v3025 = vadd.f32 0.0, %v3024
    %v3026 = vpop.f32.mrf.mxu0
    %v3027 = vadd.f32 0.0, %v3026
    %3028 = vmatmul.bf16.gmra.mxu0 %v2995
    %v3029 = vpop.f32.mrf.mxu0
    %v3030 = vadd.f32 0.0, %v3029
    %v3031 = vpop.f32.mrf.mxu0
    %v3032 = vadd.f32 0.0, %v3031
    %3033 = vdwg.mxu0
    %v3034 = vadd.f32 %v2750, %v3010
    %v3035 = vadd.f32 %v2751, %v3012
    %v3036 = vadd.f32 %v2752, %v3015
    %v3037 = vadd.f32 %v2753, %v3017
    %v3038 = vadd.f32 %v2754, %v3020
    %v3039 = vadd.f32 %v2755, %v3022
    %v3040 = vadd.f32 %v2756, %v3025
    %v3041 = vadd.f32 %v2757, %v3027
    %v3042 = vadd.f32 %v2758, %v3030
    %v3043 = vadd.f32 %v2759, %v3032
    %s3044 = scalar_lea.vmem %s3, 176
    %v3045 = vld [vmem:[%s3044] sm:$0xf]
    %v3046 = vld [vmem:[%s3044 + $0x4] sm:$0xf]
    %v3047 = vld [vmem:[%s3044 + $0x8] sm:$0xf]
    %v3048 = vld [vmem:[%s3044 + $0xc] sm:$0xf]
    %v3049 = vld [vmem:[%s3044 + $0x10] sm:$0xf]
    %v3050 = vld [vmem:[%s3044 + $0x14] sm:$0xf]
    %v3051 = vld [vmem:[%s3044 + $0x18] sm:$0xf]
    %v3052 = vld [vmem:[%s3044 + $0x1c] sm:$0xf]
    %v3053 = vld [vmem:[%s3044 + $0x20] sm:$0xf]
    %v3054 = vld [vmem:[%s3044 + $0x24] sm:$0xf]
    %v3055 = vld [vmem:[%s3044 + $0x28] sm:$0x3]
    %v3064 = vunpack.c.l.b16 %v1531
    %v3065 = vunpack.c.l.b16 %v1545
    %v3066 = vunpack.c.l.b16 %v1559
    %v3067 = vunpack.c.l.b16 %v1573
    %v3068 = vunpack.c.l.b16 %v1587
    %v3069 = vunpack.c.l.b16 %v1601
    %v3070 = vunpack.c.l.b16 %v1615
    %v3071 = vunpack.c.l.b16 %v1629
    %v3072 = vpack.c.b16 %v3064, %v3064
    %v3073 = vpack.c.b16 %v3065, %v3065
    %v3074 = vpack.c.b16 %v3066, %v3066
    %v3075 = vpack.c.b16 %v3067, %v3067
    %v3076 = vpack.c.b16 %v3068, %v3068
    %v3077 = vpack.c.b16 %v3069, %v3069
    %v3078 = vpack.c.b16 %v3070, %v3070
    %v3079 = vpack.c.b16 %v3071, %v3071
    %v3080 = vunpack.c.l.b16 %v3072
    %v3081 = vunpack.c.l.b16 %v3073
    %v3082 = vunpack.c.l.b16 %v3074
    %v3083 = vunpack.c.l.b16 %v3075
    %v3084 = vunpack.c.l.b16 %v3076
    %v3085 = vunpack.c.l.b16 %v3077
    %v3086 = vunpack.c.l.b16 %v3078
    %v3087 = vunpack.c.l.b16 %v3079
    %v3088 = vrot.slane %v1897, 7
    %v3089 = vsel %vm1974, %v3088, %v1896
    %v3090 = vrot.slane %v1898, 6
    %v3091 = vsel %vm1977, %v3090, %v3089
    %v3092 = vrot.slane %v1899, 5
    %v3093 = vsel %vm1980, %v3092, %v3091
    %v3094 = vrot.slane %v1900, 4
    %v3095 = vsel %vm1983, %v3094, %v3093
    %v3096 = vrot.slane %v1901, 3
    %v3097 = vsel %vm1986, %v3096, %v3095
    %v3098 = vrot.slane %v1902, 2
    %v3099 = vsel %vm1989, %v3098, %v3097
    %v3100 = vrot.slane %v2512, 1
    %v3101 = vsel %vm1992, %v3100, %v3099
    %v3102 = vrot.slane %v3080, 7
    %v3103 = vsel %vm1974, %v3102, %v2796
    %v3104 = vrot.slane %v1906, 6
    %v3105 = vsel %vm1977, %v3104, %v3103
    %v3106 = vrot.slane %v1907, 5
    %v3107 = vsel %vm1980, %v3106, %v3105
    %v3108 = vrot.slane %v1908, 4
    %v3109 = vsel %vm1983, %v3108, %v3107
    %v3110 = vrot.slane %v1909, 3
    %v3111 = vsel %vm1986, %v3110, %v3109
    %v3112 = vrot.slane %v1910, 2
    %v3113 = vsel %vm1989, %v3112, %v3111
    %v3114 = vrot.slane %v1911, 1
    %v3115 = vsel %vm1992, %v3114, %v3113
    %v3116 = vrot.slane %v2513, 7
    %v3117 = vsel %vm1974, %v3116, %v1912
    %v3118 = vrot.slane %v2797, 6
    %v3119 = vsel %vm1977, %v3118, %v3117
    %v3120 = vrot.slane %v3081, 5
    %v3121 = vsel %vm1980, %v3120, %v3119
    %v3122 = vrot.slane %v1916, 4
    %v3123 = vsel %vm1983, %v3122, %v3121
    %v3124 = vrot.slane %v1917, 3
    %v3125 = vsel %vm1986, %v3124, %v3123
    %v3126 = vrot.slane %v1918, 2
    %v3127 = vsel %vm1989, %v3126, %v3125
    %v3128 = vrot.slane %v1919, 1
    %v3129 = vsel %vm1992, %v3128, %v3127
    %v3130 = vrot.slane %v1921, 7
    %v3131 = vsel %vm1974, %v3130, %v1920
    %v3132 = vrot.slane %v1922, 6
    %v3133 = vsel %vm1977, %v3132, %v3131
    %v3134 = vrot.slane %v2514, 5
    %v3135 = vsel %vm1980, %v3134, %v3133
    %v3136 = vrot.slane %v2798, 4
    %v3137 = vsel %vm1983, %v3136, %v3135
    %v3138 = vrot.slane %v3082, 3
    %v3139 = vsel %vm1986, %v3138, %v3137
    %v3140 = vrot.slane %v1926, 2
    %v3141 = vsel %vm1989, %v3140, %v3139
    %v3142 = vrot.slane %v1927, 1
    %v3143 = vsel %vm1992, %v3142, %v3141
    %v3144 = vrot.slane %v1929, 7
    %v3145 = vsel %vm1974, %v3144, %v1928
    %v3146 = vrot.slane %v1930, 6
    %v3147 = vsel %vm1977, %v3146, %v3145
    %v3148 = vrot.slane %v1931, 5
    %v3149 = vsel %vm1980, %v3148, %v3147
    %v3150 = vrot.slane %v1932, 4
    %v3151 = vsel %vm1983, %v3150, %v3149
    %v3152 = vrot.slane %v2515, 3
    %v3153 = vsel %vm1986, %v3152, %v3151
    %v3154 = vrot.slane %v2799, 2
    %v3155 = vsel %vm1989, %v3154, %v3153
    %v3156 = vrot.slane %v3083, 1
    %v3157 = vsel %vm1992, %v3156, %v3155
    %v3158 = vrot.slane %v1937, 7
    %v3159 = vsel %vm1974, %v3158, %v1936
    %v3160 = vrot.slane %v1938, 6
    %v3161 = vsel %vm1977, %v3160, %v3159
    %v3162 = vrot.slane %v1939, 5
    %v3163 = vsel %vm1980, %v3162, %v3161
    %v3164 = vrot.slane %v1940, 4
    %v3165 = vsel %vm1983, %v3164, %v3163
    %v3166 = vrot.slane %v1941, 3
    %v3167 = vsel %vm1986, %v3166, %v3165
    %v3168 = vrot.slane %v1942, 2
    %v3169 = vsel %vm1989, %v3168, %v3167
    %v3170 = vrot.slane %v2516, 1
    %v3171 = vsel %vm1992, %v3170, %v3169
    %v3172 = vrot.slane %v3084, 7
    %v3173 = vsel %vm1974, %v3172, %v2800
    %v3174 = vrot.slane %v1946, 6
    %v3175 = vsel %vm1977, %v3174, %v3173
    %v3176 = vrot.slane %v1947, 5
    %v3177 = vsel %vm1980, %v3176, %v3175
    %v3178 = vrot.slane %v1948, 4
    %v3179 = vsel %vm1983, %v3178, %v3177
    %v3180 = vrot.slane %v1949, 3
    %v3181 = vsel %vm1986, %v3180, %v3179
    %v3182 = vrot.slane %v1950, 2
    %v3183 = vsel %vm1989, %v3182, %v3181
    %v3184 = vrot.slane %v1951, 1
    %v3185 = vsel %vm1992, %v3184, %v3183
    %v3186 = vrot.slane %v2517, 7
    %v3187 = vsel %vm1974, %v3186, %v1952
    %v3188 = vrot.slane %v2801, 6
    %v3189 = vsel %vm1977, %v3188, %v3187
    %v3190 = vrot.slane %v3085, 5
    %v3191 = vsel %vm1980, %v3190, %v3189
    %v3192 = vrot.slane %v1956, 4
    %v3193 = vsel %vm1983, %v3192, %v3191
    %v3194 = vrot.slane %v1957, 3
    %v3195 = vsel %vm1986, %v3194, %v3193
    %v3196 = vrot.slane %v1958, 2
    %v3197 = vsel %vm1989, %v3196, %v3195
    %v3198 = vrot.slane %v1959, 1
    %v3199 = vsel %vm1992, %v3198, %v3197
    %v3200 = vrot.slane %v1961, 7
    %v3201 = vsel %vm1974, %v3200, %v1960
    %v3202 = vrot.slane %v1962, 6
    %v3203 = vsel %vm1977, %v3202, %v3201
    %v3204 = vrot.slane %v2518, 5
    %v3205 = vsel %vm1980, %v3204, %v3203
    %v3206 = vrot.slane %v2802, 4
    %v3207 = vsel %vm1983, %v3206, %v3205
    %v3208 = vrot.slane %v3086, 3
    %v3209 = vsel %vm1986, %v3208, %v3207
    %v3210 = vrot.slane %v1966, 2
    %v3211 = vsel %vm1989, %v3210, %v3209
    %v3212 = vrot.slane %v1967, 1
    %v3213 = vsel %vm1992, %v3212, %v3211
    %v3214 = vrot.slane %v1969, 7
    %v3215 = vsel %vm1974, %v3214, %v1968
    %v3216 = vrot.slane %v1970, 6
    %v3217 = vsel %vm1977, %v3216, %v3215
    %v3218 = vrot.slane %v1971, 5
    %v3219 = vsel %vm1980, %v3218, %v3217
    %v3220 = vrot.slane %v1972, 4
    %v3221 = vsel %vm1983, %v3220, %v3219
    %v3222 = vrot.slane %v2519, 3
    %v3223 = vsel %vm1986, %v3222, %v3221
    %v3224 = vrot.slane %v2803, 2
    %v3225 = vsel %vm1989, %v3224, %v3223
    %v3226 = vrot.slane %v3087, 1
    %v3227 = vsel %vm1992, %v3226, %v3225
    %v3228 = vpack.c.b16 %v3115, %v3101
    %v3229 = vpack.c.b16 %v3143, %v3129
    %v3230 = vpack.c.b16 %v3171, %v3157
    %v3231 = vpack.c.b16 %v3199, %v3185
    %v3232 = vpack.c.b16 %v3227, %v3213
    %v3244 = vunpack.c.l.b16 %v3045
    %v3245 = vunpack.c.l.b16 %v3046
    %v3246 = vunpack.c.l.b16 %v3047
    %v3247 = vunpack.c.l.b16 %v3048
    %v3248 = vunpack.c.l.b16 %v3049
    %v3249 = vunpack.c.l.b16 %v3050
    %v3250 = vunpack.c.l.b16 %v3051
    %v3251 = vunpack.c.l.b16 %v3052
    %v3252 = vunpack.c.l.b16 %v3053
    %v3253 = vunpack.c.l.b16 %v3054
    %v3254 = vunpack.c.l.b16 %v3055
    %v3255 = vpack.c.b16 %v3245, %v3244
    %v3256 = vpack.c.b16 %v3247, %v3246
    %v3257 = vpack.c.b16 %v3249, %v3248
    %v3258 = vpack.c.b16 %v3251, %v3250
    %v3259 = vpack.c.b16 %v3253, %v3252
    %v3260 = vpack.c.b16 %v3254, %v3254
    %v3267 = vsel %vm2158, %v3228, 0
    %v3270 = vsel %vm2158, %v3229, 0
    %v3273 = vsel %vm2158, %v3230, 0
    %v3276 = vsel %vm2158, %v3231, 0
    %v3279 = vsel %vm2158, %v3232, 0
    %v3282 = vand.u32 %v3260, %v2176
    %3284 = vmatpush.bf16.msra.mxu0 0
    %3285 = vmatpush.bf16.msra.mxu0 0
    %3286 = vmatpush.bf16.msra.mxu0 %v3282
    %3287 = vmatpush.bf16.msra.mxu0 %v3259
    %3288 = vmatpush.bf16.msra.mxu0 %v3258
    %3289 = vmatpush.bf16.msra.mxu0 %v3257
    %3290 = vmatpush.bf16.msra.mxu0 %v3256
    %3291 = vmatpush.bf16.msra.mxu0 %v3255
    %3292 = vmatmul.bf16.gmra.mxu0 %v3267
    %v3293 = vpop.f32.mrf.mxu0
    %v3294 = vadd.f32 0.0, %v3293
    %v3295 = vpop.f32.mrf.mxu0
    %v3296 = vadd.f32 0.0, %v3295
    %3297 = vmatmul.bf16.gmra.mxu0 %v3270
    %v3298 = vpop.f32.mrf.mxu0
    %v3299 = vadd.f32 0.0, %v3298
    %v3300 = vpop.f32.mrf.mxu0
    %v3301 = vadd.f32 0.0, %v3300
    %3302 = vmatmul.bf16.gmra.mxu0 %v3273
    %v3303 = vpop.f32.mrf.mxu0
    %v3304 = vadd.f32 0.0, %v3303
    %v3305 = vpop.f32.mrf.mxu0
    %v3306 = vadd.f32 0.0, %v3305
    %3307 = vmatmul.bf16.gmra.mxu0 %v3276
    %v3308 = vpop.f32.mrf.mxu0
    %v3309 = vadd.f32 0.0, %v3308
    %v3310 = vpop.f32.mrf.mxu0
    %v3311 = vadd.f32 0.0, %v3310
    %3312 = vmatmul.bf16.gmra.mxu0 %v3279
    %v3313 = vpop.f32.mrf.mxu0
    %v3314 = vadd.f32 0.0, %v3313
    %v3315 = vpop.f32.mrf.mxu0
    %v3316 = vadd.f32 0.0, %v3315
    %3317 = vdwg.mxu0
    %v3318 = vadd.f32 %v3034, %v3294
    %v3319 = vadd.f32 %v3035, %v3296
    %v3320 = vadd.f32 %v3036, %v3299
    %v3321 = vadd.f32 %v3037, %v3301
    %v3322 = vadd.f32 %v3038, %v3304
    %v3323 = vadd.f32 %v3039, %v3306
    %v3324 = vadd.f32 %v3040, %v3309
    %v3325 = vadd.f32 %v3041, %v3311
    %v3326 = vadd.f32 %v3042, %v3314
    %v3327 = vadd.f32 %v3043, %v3316
    %v3328 = vld [vmem:[%s4] sm:$0x1]
    %v3330 = vperm.slane %v3328, 0
    %v3332 = vadd.f32 %v3318, %v3330
    %v3333 = vadd.f32 %v3319, %v3330
    %v3334 = vadd.f32 %v3320, %v3330
    %v3335 = vadd.f32 %v3321, %v3330
    %v3336 = vadd.f32 %v3322, %v3330
    %v3337 = vadd.f32 %v3323, %v3330
    %v3338 = vadd.f32 %v3324, %v3330
    %v3339 = vadd.f32 %v3325, %v3330
    %v3340 = vadd.f32 %v3326, %v3330
    %v3341 = vadd.f32 %v3327, %v3330
    %v3342 = vmax.f32 %v3332, 0.0
    %v3343 = vmax.f32 %v3333, 0.0
    %v3344 = vmax.f32 %v3334, 0.0
    %v3345 = vmax.f32 %v3335, 0.0
    %v3346 = vmax.f32 %v3336, 0.0
    %v3347 = vmax.f32 %v3337, 0.0
    %v3348 = vmax.f32 %v3338, 0.0
    %v3349 = vmax.f32 %v3339, 0.0
    %v3350 = vmax.f32 %v3340, 0.0
    %v3351 = vmax.f32 %v3341, 0.0
    %3362 = vrot.lane.b32.xlu0 %v3342, 127
    %v3363 = vpop.permute.xlu0 %3362
    %3364 = vrot.lane.b32.xlu0 %v3343, 127
    %v3365 = vpop.permute.xlu0 %3364
    %3366 = vrot.lane.b32.xlu0 %v3344, 127
    %v3367 = vpop.permute.xlu0 %3366
    %3368 = vrot.lane.b32.xlu0 %v3345, 127
    %v3369 = vpop.permute.xlu0 %3368
    %3370 = vrot.lane.b32.xlu0 %v3346, 127
    %v3371 = vpop.permute.xlu0 %3370
    %3372 = vrot.lane.b32.xlu0 %v3347, 127
    %v3373 = vpop.permute.xlu0 %3372
    %3374 = vrot.lane.b32.xlu0 %v3348, 127
    %v3375 = vpop.permute.xlu0 %3374
    %3376 = vrot.lane.b32.xlu0 %v3349, 127
    %v3377 = vpop.permute.xlu0 %3376
    %3378 = vrot.lane.b32.xlu0 %v3350, 127
    %v3379 = vpop.permute.xlu0 %3378
    %3380 = vrot.lane.b32.xlu0 %v3351, 127
    %v3381 = vpop.permute.xlu0 %3380
    %v3392 = vmax.f32 %v3342, %v3363
    %v3393 = vmax.f32 %v3343, %v3365
    %v3394 = vmax.f32 %v3344, %v3367
    %v3395 = vmax.f32 %v3345, %v3369
    %v3396 = vmax.f32 %v3346, %v3371
    %v3397 = vmax.f32 %v3347, %v3373
    %v3398 = vmax.f32 %v3348, %v3375
    %v3399 = vmax.f32 %v3349, %v3377
    %v3400 = vmax.f32 %v3350, %v3379
    %v3401 = vmax.f32 %v3351, %v3381
    %v3412 = vrot.slane %v3392, 2
    %v3413 = vrot.slane %v3392, 4
    %v3414 = vrot.slane %v3392, 6
    %v3415 = vrot.slane %v3393, 2
    %v3416 = vrot.slane %v3393, 4
    %v3417 = vrot.slane %v3393, 6
    %v3418 = vrot.slane %v3394, 2
    %v3419 = vrot.slane %v3394, 4
    %v3420 = vrot.slane %v3394, 6
    %v3421 = vrot.slane %v3395, 2
    %v3422 = vrot.slane %v3395, 4
    %v3423 = vrot.slane %v3395, 6
    %v3424 = vrot.slane %v3396, 2
    %v3425 = vrot.slane %v3396, 4
    %v3426 = vrot.slane %v3396, 6
    %v3427 = vrot.slane %v3397, 2
    %v3428 = vrot.slane %v3397, 4
    %v3429 = vrot.slane %v3397, 6
    %v3430 = vrot.slane %v3398, 2
    %v3431 = vrot.slane %v3398, 4
    %v3432 = vrot.slane %v3398, 6
    %v3433 = vrot.slane %v3399, 2
    %v3434 = vrot.slane %v3399, 4
    %v3435 = vrot.slane %v3399, 6
    %v3436 = vrot.slane %v3400, 2
    %v3437 = vrot.slane %v3400, 4
    %v3438 = vrot.slane %v3400, 6
    %v3439 = vrot.slane %v3401, 2
    %v3440 = vrot.slane %v3401, 4
    %v3441 = vrot.slane %v3401, 6
    %v3472 = vrot.slane %v3392, 7
    %v3473 = vrot.slane %v3472, 2
    %v3474 = vrot.slane %v3412, 7
    %v3475 = vrot.slane %v3474, 2
    %v3476 = vrot.slane %v3413, 7
    %v3477 = vrot.slane %v3476, 2
    %v3478 = vrot.slane %v3414, 7
    %v3479 = vrot.slane %v3478, 2
    %v3480 = vrot.slane %v3393, 7
    %v3481 = vrot.slane %v3480, 2
    %v3482 = vrot.slane %v3415, 7
    %v3483 = vrot.slane %v3482, 2
    %v3484 = vrot.slane %v3416, 7
    %v3485 = vrot.slane %v3484, 2
    %v3486 = vrot.slane %v3417, 7
    %v3487 = vrot.slane %v3486, 2
    %v3488 = vrot.slane %v3394, 7
    %v3489 = vrot.slane %v3488, 2
    %v3490 = vrot.slane %v3418, 7
    %v3491 = vrot.slane %v3490, 2
    %v3492 = vrot.slane %v3419, 7
    %v3493 = vrot.slane %v3492, 2
    %v3494 = vrot.slane %v3420, 7
    %v3495 = vrot.slane %v3494, 2
    %v3496 = vrot.slane %v3395, 7
    %v3497 = vrot.slane %v3496, 2
    %v3498 = vrot.slane %v3421, 7
    %v3499 = vrot.slane %v3498, 2
    %v3500 = vrot.slane %v3422, 7
    %v3501 = vrot.slane %v3500, 2
    %v3502 = vrot.slane %v3423, 7
    %v3503 = vrot.slane %v3502, 2
    %v3504 = vrot.slane %v3396, 7
    %v3505 = vrot.slane %v3504, 2
    %v3506 = vrot.slane %v3424, 7
    %v3507 = vrot.slane %v3506, 2
    %v3508 = vrot.slane %v3425, 7
    %v3509 = vrot.slane %v3508, 2
    %v3510 = vrot.slane %v3426, 7
    %v3511 = vrot.slane %v3510, 2
    %v3512 = vrot.slane %v3397, 7
    %v3513 = vrot.slane %v3512, 2
    %v3514 = vrot.slane %v3427, 7
    %v3515 = vrot.slane %v3514, 2
    %v3516 = vrot.slane %v3428, 7
    %v3517 = vrot.slane %v3516, 2
    %v3518 = vrot.slane %v3429, 7
    %v3519 = vrot.slane %v3518, 2
    %v3520 = vrot.slane %v3398, 7
    %v3521 = vrot.slane %v3520, 2
    %v3522 = vrot.slane %v3430, 7
    %v3523 = vrot.slane %v3522, 2
    %v3524 = vrot.slane %v3431, 7
    %v3525 = vrot.slane %v3524, 2
    %v3526 = vrot.slane %v3432, 7
    %v3527 = vrot.slane %v3526, 2
    %v3528 = vrot.slane %v3399, 7
    %v3529 = vrot.slane %v3528, 2
    %v3530 = vrot.slane %v3433, 7
    %v3531 = vrot.slane %v3530, 2
    %v3532 = vrot.slane %v3434, 7
    %v3533 = vrot.slane %v3532, 2
    %v3534 = vrot.slane %v3435, 7
    %v3535 = vrot.slane %v3534, 2
    %v3536 = vrot.slane %v3400, 7
    %v3537 = vrot.slane %v3536, 2
    %v3538 = vrot.slane %v3436, 7
    %v3539 = vrot.slane %v3538, 2
    %v3540 = vrot.slane %v3437, 7
    %v3541 = vrot.slane %v3540, 2
    %v3542 = vrot.slane %v3438, 7
    %v3543 = vrot.slane %v3542, 2
    %v3544 = vrot.slane %v3401, 7
    %v3545 = vrot.slane %v3544, 2
    %v3546 = vrot.slane %v3439, 7
    %v3547 = vrot.slane %v3546, 2
    %v3548 = vrot.slane %v3440, 7
    %v3549 = vrot.slane %v3548, 2
    %v3550 = vrot.slane %v3441, 7
    %v3551 = vrot.slane %v3550, 2
    %v3592 = vmax.f32 %v3392, %v3473
    %v3593 = vmax.f32 %v3412, %v3475
    %v3594 = vmax.f32 %v3413, %v3477
    %v3595 = vmax.f32 %v3414, %v3479
    %v3596 = vmax.f32 %v3393, %v3481
    %v3597 = vmax.f32 %v3415, %v3483
    %v3598 = vmax.f32 %v3416, %v3485
    %v3599 = vmax.f32 %v3417, %v3487
    %v3600 = vmax.f32 %v3394, %v3489
    %v3601 = vmax.f32 %v3418, %v3491
    %v3602 = vmax.f32 %v3419, %v3493
    %v3603 = vmax.f32 %v3420, %v3495
    %v3604 = vmax.f32 %v3395, %v3497
    %v3605 = vmax.f32 %v3421, %v3499
    %v3606 = vmax.f32 %v3422, %v3501
    %v3607 = vmax.f32 %v3423, %v3503
    %v3608 = vmax.f32 %v3396, %v3505
    %v3609 = vmax.f32 %v3424, %v3507
    %v3610 = vmax.f32 %v3425, %v3509
    %v3611 = vmax.f32 %v3426, %v3511
    %v3612 = vmax.f32 %v3397, %v3513
    %v3613 = vmax.f32 %v3427, %v3515
    %v3614 = vmax.f32 %v3428, %v3517
    %v3615 = vmax.f32 %v3429, %v3519
    %v3616 = vmax.f32 %v3398, %v3521
    %v3617 = vmax.f32 %v3430, %v3523
    %v3618 = vmax.f32 %v3431, %v3525
    %v3619 = vmax.f32 %v3432, %v3527
    %v3620 = vmax.f32 %v3399, %v3529
    %v3621 = vmax.f32 %v3433, %v3531
    %v3622 = vmax.f32 %v3434, %v3533
    %v3623 = vmax.f32 %v3435, %v3535
    %v3624 = vmax.f32 %v3400, %v3537
    %v3625 = vmax.f32 %v3436, %v3539
    %v3626 = vmax.f32 %v3437, %v3541
    %v3627 = vmax.f32 %v3438, %v3543
    %v3628 = vmax.f32 %v3401, %v3545
    %v3629 = vmax.f32 %v3439, %v3547
    %v3630 = vmax.f32 %v3440, %v3549
    %v3631 = vmax.f32 %v3441, %v3551
    %v3632 = vpack.c.bf16 %v3592, %v3592
    %v3633 = vpack.c.bf16 %v3593, %v3593
    %v3634 = vpack.c.bf16 %v3594, %v3594
    %v3635 = vpack.c.bf16 %v3595, %v3595
    %v3636 = vpack.c.bf16 %v3596, %v3596
    %v3637 = vpack.c.bf16 %v3597, %v3597
    %v3638 = vpack.c.bf16 %v3598, %v3598
    %v3639 = vpack.c.bf16 %v3599, %v3599
    %v3640 = vpack.c.bf16 %v3600, %v3600
    %v3641 = vpack.c.bf16 %v3601, %v3601
    %v3642 = vpack.c.bf16 %v3602, %v3602
    %v3643 = vpack.c.bf16 %v3603, %v3603
    %v3644 = vpack.c.bf16 %v3604, %v3604
    %v3645 = vpack.c.bf16 %v3605, %v3605
    %v3646 = vpack.c.bf16 %v3606, %v3606
    %v3647 = vpack.c.bf16 %v3607, %v3607
    %v3648 = vpack.c.bf16 %v3608, %v3608
    %v3649 = vpack.c.bf16 %v3609, %v3609
    %v3650 = vpack.c.bf16 %v3610, %v3610
    %v3651 = vpack.c.bf16 %v3611, %v3611
    %v3652 = vpack.c.bf16 %v3612, %v3612
    %v3653 = vpack.c.bf16 %v3613, %v3613
    %v3654 = vpack.c.bf16 %v3614, %v3614
    %v3655 = vpack.c.bf16 %v3615, %v3615
    %v3656 = vpack.c.bf16 %v3616, %v3616
    %v3657 = vpack.c.bf16 %v3617, %v3617
    %v3658 = vpack.c.bf16 %v3618, %v3618
    %v3659 = vpack.c.bf16 %v3619, %v3619
    %v3660 = vpack.c.bf16 %v3620, %v3620
    %v3661 = vpack.c.bf16 %v3621, %v3621
    %v3662 = vpack.c.bf16 %v3622, %v3622
    %v3663 = vpack.c.bf16 %v3623, %v3623
    %v3664 = vpack.c.bf16 %v3624, %v3624
    %v3665 = vpack.c.bf16 %v3625, %v3625
    %v3666 = vpack.c.bf16 %v3626, %v3626
    %v3667 = vpack.c.bf16 %v3627, %v3627
    %v3668 = vpack.c.bf16 %v3628, %v3628
    %v3669 = vpack.c.bf16 %v3629, %v3629
    %v3670 = vpack.c.bf16 %v3630, %v3630
    %v3671 = vpack.c.bf16 %v3631, %v3631
    %v3672 = vld [vmem:[%s5] sm:$0xf]
    %v3673 = vld [vmem:[%s5 + $0x4] sm:$0xf]
    %v3674 = vld [vmem:[%s5 + $0x8] sm:$0xf]
    %v3675 = vld [vmem:[%s5 + $0xc] sm:$0xf]
    %v3676 = vld [vmem:[%s5 + $0x10] sm:$0xf]
    %v3677 = vld [vmem:[%s5 + $0x14] sm:$0xf]
    %v3678 = vld [vmem:[%s5 + $0x18] sm:$0xf]
    %v3679 = vld [vmem:[%s5 + $0x1c] sm:$0xf]
    %v3680 = vld [vmem:[%s5 + $0x20] sm:$0xf]
    %v3681 = vld [vmem:[%s5 + $0x24] sm:$0xf]
    %s3682 = scalar_lea.vmem %s5, 40
    %v3683 = vld [vmem:[%s3682] sm:$0xf]
    %v3684 = vld [vmem:[%s3682 + $0x4] sm:$0xf]
    %v3685 = vld [vmem:[%s3682 + $0x8] sm:$0xf]
    %v3686 = vld [vmem:[%s3682 + $0xc] sm:$0xf]
    %v3687 = vld [vmem:[%s3682 + $0x10] sm:$0xf]
    %v3688 = vld [vmem:[%s3682 + $0x14] sm:$0xf]
    %v3689 = vld [vmem:[%s3682 + $0x18] sm:$0xf]
    %v3690 = vld [vmem:[%s3682 + $0x1c] sm:$0xf]
    %v3691 = vld [vmem:[%s3682 + $0x20] sm:$0xf]
    %v3692 = vld [vmem:[%s3682 + $0x24] sm:$0xf]
    %v3701 = vunpack.c.l.b16 %v3633
    %v3702 = vunpack.c.l.b16 %v3638
    %v3703 = vunpack.c.l.b16 %v3643
    %v3704 = vunpack.c.l.b16 %v3648
    %v3705 = vunpack.c.l.b16 %v3653
    %v3706 = vunpack.c.l.b16 %v3658
    %v3707 = vunpack.c.l.b16 %v3663
    %v3708 = vunpack.c.l.b16 %v3668
    %v3709 = vpack.c.b16 %v3701, %v3701
    %v3710 = vpack.c.b16 %v3702, %v3702
    %v3711 = vpack.c.b16 %v3703, %v3703
    %v3712 = vpack.c.b16 %v3704, %v3704
    %v3713 = vpack.c.b16 %v3705, %v3705
    %v3714 = vpack.c.b16 %v3706, %v3706
    %v3715 = vpack.c.b16 %v3707, %v3707
    %v3716 = vpack.c.b16 %v3708, %v3708
    %v3717 = vunpack.c.l.b16 %v3709
    %v3718 = vunpack.c.l.b16 %v3710
    %v3719 = vunpack.c.l.b16 %v3711
    %v3720 = vunpack.c.l.b16 %v3712
    %v3721 = vunpack.c.l.b16 %v3713
    %v3722 = vunpack.c.l.b16 %v3714
    %v3723 = vunpack.c.l.b16 %v3715
    %v3724 = vunpack.c.l.b16 %v3716
    %v3725 = vrot.slane %v3718, 7
    %v3726 = vsel %vm1974, %v3725, %v3717
    %v3727 = vrot.slane %v3719, 6
    %v3728 = vsel %vm1977, %v3727, %v3726
    %v3729 = vrot.slane %v3720, 5
    %v3730 = vsel %vm1980, %v3729, %v3728
    %v3731 = vrot.slane %v3721, 4
    %v3732 = vsel %vm1983, %v3731, %v3730
    %v3733 = vrot.slane %v3722, 3
    %v3734 = vsel %vm1986, %v3733, %v3732
    %v3735 = vrot.slane %v3723, 2
    %v3736 = vsel %vm1989, %v3735, %v3734
    %v3737 = vrot.slane %v3724, 1
    %v3738 = vsel %vm1992, %v3737, %v3736
    %v3739 = vpack.c.b16 %v3738, %v3738
    %v3750 = vunpack.c.l.b16 %v3683
    %v3751 = vunpack.c.l.b16 %v3684
    %v3752 = vunpack.c.l.b16 %v3685
    %v3753 = vunpack.c.l.b16 %v3686
    %v3754 = vunpack.c.l.b16 %v3687
    %v3755 = vunpack.c.l.b16 %v3688
    %v3756 = vunpack.c.l.b16 %v3689
    %v3757 = vunpack.c.l.b16 %v3690
    %v3758 = vunpack.c.l.b16 %v3691
    %v3759 = vunpack.c.l.b16 %v3692
    %v3760 = vpack.c.b16 %v3751, %v3750
    %v3761 = vpack.c.b16 %v3753, %v3752
    %v3762 = vpack.c.b16 %v3755, %v3754
    %v3763 = vpack.c.b16 %v3757, %v3756
    %v3764 = vpack.c.b16 %v3759, %v3758
    %vm3769 = vcmask 646144
    %v3771 = vsel %vm3769, %v3739, 0
    %vm3773 = vcmask 1046528
    %vm3774 = vcmask 1047552
    %v3775 = vsel %vm3773, 4294967295, 65535
    %v3776 = vsel %vm3774, %v3775, 0
    %v3778 = vand.u32 %v3764, %v3776
    %3780 = vmatpush.bf16.msra.mxu0 0
    %3781 = vmatpush.bf16.msra.mxu0 0
    %3782 = vmatpush.bf16.msra.mxu0 0
    %3783 = vmatpush.bf16.msra.mxu0 %v3778
    %3784 = vmatpush.bf16.msra.mxu0 %v3763
    %3785 = vmatpush.bf16.msra.mxu0 %v3762
    %3786 = vmatpush.bf16.msra.mxu0 %v3761
    %3787 = vmatpush.bf16.msra.mxu0 %v3760
    %3788 = vmatmul.bf16.gmra.mxu0 %v3771
    %v3789 = vpop.f32.mrf.mxu0
    %v3790 = vadd.f32 0.0, %v3789
    %v3791 = vpop.f32.mrf.mxu0
    %3792 = vdwg.mxu0
    %v3801 = vunpack.c.l.b16 %v3632
    %v3802 = vunpack.c.l.b16 %v3637
    %v3803 = vunpack.c.l.b16 %v3642
    %v3804 = vunpack.c.l.b16 %v3647
    %v3805 = vunpack.c.l.b16 %v3652
    %v3806 = vunpack.c.l.b16 %v3657
    %v3807 = vunpack.c.l.b16 %v3662
    %v3808 = vunpack.c.l.b16 %v3667
    %v3809 = vpack.c.b16 %v3801, %v3801
    %v3810 = vpack.c.b16 %v3802, %v3802
    %v3811 = vpack.c.b16 %v3803, %v3803
    %v3812 = vpack.c.b16 %v3804, %v3804
    %v3813 = vpack.c.b16 %v3805, %v3805
    %v3814 = vpack.c.b16 %v3806, %v3806
    %v3815 = vpack.c.b16 %v3807, %v3807
    %v3816 = vpack.c.b16 %v3808, %v3808
    %v3817 = vunpack.c.l.b16 %v3809
    %v3818 = vunpack.c.l.b16 %v3810
    %v3819 = vunpack.c.l.b16 %v3811
    %v3820 = vunpack.c.l.b16 %v3812
    %v3821 = vunpack.c.l.b16 %v3813
    %v3822 = vunpack.c.l.b16 %v3814
    %v3823 = vunpack.c.l.b16 %v3815
    %v3824 = vunpack.c.l.b16 %v3816
    %v3825 = vrot.slane %v3818, 7
    %v3826 = vsel %vm1974, %v3825, %v3817
    %v3827 = vrot.slane %v3819, 6
    %v3828 = vsel %vm1977, %v3827, %v3826
    %v3829 = vrot.slane %v3820, 5
    %v3830 = vsel %vm1980, %v3829, %v3828
    %v3831 = vrot.slane %v3821, 4
    %v3832 = vsel %vm1983, %v3831, %v3830
    %v3833 = vrot.slane %v3822, 3
    %v3834 = vsel %vm1986, %v3833, %v3832
    %v3835 = vrot.slane %v3823, 2
    %v3836 = vsel %vm1989, %v3835, %v3834
    %v3837 = vrot.slane %v3824, 1
    %v3838 = vsel %vm1992, %v3837, %v3836
    %v3839 = vpack.c.b16 %v3838, %v3838
    %v3850 = vunpack.c.l.b16 %v3672
    %v3851 = vunpack.c.l.b16 %v3673
    %v3852 = vunpack.c.l.b16 %v3674
    %v3853 = vunpack.c.l.b16 %v3675
    %v3854 = vunpack.c.l.b16 %v3676
    %v3855 = vunpack.c.l.b16 %v3677
    %v3856 = vunpack.c.l.b16 %v3678
    %v3857 = vunpack.c.l.b16 %v3679
    %v3858 = vunpack.c.l.b16 %v3680
    %v3859 = vunpack.c.l.b16 %v3681
    %v3860 = vpack.c.b16 %v3851, %v3850
    %v3861 = vpack.c.b16 %v3853, %v3852
    %v3862 = vpack.c.b16 %v3855, %v3854
    %v3863 = vpack.c.b16 %v3857, %v3856
    %v3864 = vpack.c.b16 %v3859, %v3858
    %v3870 = vsel %vm3769, %v3839, 0
    %v3873 = vand.u32 %v3864, %v3776
    %3875 = vmatpush.bf16.msra.mxu0 0
    %3876 = vmatpush.bf16.msra.mxu0 0
    %3877 = vmatpush.bf16.msra.mxu0 0
    %3878 = vmatpush.bf16.msra.mxu0 %v3873
    %3879 = vmatpush.bf16.msra.mxu0 %v3863
    %3880 = vmatpush.bf16.msra.mxu0 %v3862
    %3881 = vmatpush.bf16.msra.mxu0 %v3861
    %3882 = vmatpush.bf16.msra.mxu0 %v3860
    %3883 = vmatmul.bf16.gmra.mxu0 %v3870
    %v3884 = vpop.f32.mrf.mxu0
    %v3885 = vadd.f32 %v3790, %v3884
    %v3886 = vpop.f32.mrf.mxu0
    %3887 = vdwg.mxu0
    %s3888 = scalar_lea.vmem %s5, 80
    %v3889 = vld [vmem:[%s3888] sm:$0xf]
    %v3890 = vld [vmem:[%s3888 + $0x4] sm:$0xf]
    %v3891 = vld [vmem:[%s3888 + $0x8] sm:$0xf]
    %v3892 = vld [vmem:[%s3888 + $0xc] sm:$0xf]
    %v3893 = vld [vmem:[%s3888 + $0x10] sm:$0xf]
    %v3894 = vld [vmem:[%s3888 + $0x14] sm:$0xf]
    %v3895 = vld [vmem:[%s3888 + $0x18] sm:$0xf]
    %v3896 = vld [vmem:[%s3888 + $0x1c] sm:$0xf]
    %v3897 = vld [vmem:[%s3888 + $0x20] sm:$0xf]
    %v3898 = vld [vmem:[%s3888 + $0x24] sm:$0xf]
    %v3907 = vunpack.c.l.b16 %v3634
    %v3908 = vunpack.c.l.b16 %v3639
    %v3909 = vunpack.c.l.b16 %v3644
    %v3910 = vunpack.c.l.b16 %v3649
    %v3911 = vunpack.c.l.b16 %v3654
    %v3912 = vunpack.c.l.b16 %v3659
    %v3913 = vunpack.c.l.b16 %v3664
    %v3914 = vunpack.c.l.b16 %v3669
    %v3915 = vpack.c.b16 %v3907, %v3907
    %v3916 = vpack.c.b16 %v3908, %v3908
    %v3917 = vpack.c.b16 %v3909, %v3909
    %v3918 = vpack.c.b16 %v3910, %v3910
    %v3919 = vpack.c.b16 %v3911, %v3911
    %v3920 = vpack.c.b16 %v3912, %v3912
    %v3921 = vpack.c.b16 %v3913, %v3913
    %v3922 = vpack.c.b16 %v3914, %v3914
    %v3923 = vunpack.c.l.b16 %v3915
    %v3924 = vunpack.c.l.b16 %v3916
    %v3925 = vunpack.c.l.b16 %v3917
    %v3926 = vunpack.c.l.b16 %v3918
    %v3927 = vunpack.c.l.b16 %v3919
    %v3928 = vunpack.c.l.b16 %v3920
    %v3929 = vunpack.c.l.b16 %v3921
    %v3930 = vunpack.c.l.b16 %v3922
    %v3931 = vrot.slane %v3924, 7
    %v3932 = vsel %vm1974, %v3931, %v3923
    %v3933 = vrot.slane %v3925, 6
    %v3934 = vsel %vm1977, %v3933, %v3932
    %v3935 = vrot.slane %v3926, 5
    %v3936 = vsel %vm1980, %v3935, %v3934
    %v3937 = vrot.slane %v3927, 4
    %v3938 = vsel %vm1983, %v3937, %v3936
    %v3939 = vrot.slane %v3928, 3
    %v3940 = vsel %vm1986, %v3939, %v3938
    %v3941 = vrot.slane %v3929, 2
    %v3942 = vsel %vm1989, %v3941, %v3940
    %v3943 = vrot.slane %v3930, 1
    %v3944 = vsel %vm1992, %v3943, %v3942
    %v3945 = vpack.c.b16 %v3944, %v3944
    %v3956 = vunpack.c.l.b16 %v3889
    %v3957 = vunpack.c.l.b16 %v3890
    %v3958 = vunpack.c.l.b16 %v3891
    %v3959 = vunpack.c.l.b16 %v3892
    %v3960 = vunpack.c.l.b16 %v3893
    %v3961 = vunpack.c.l.b16 %v3894
    %v3962 = vunpack.c.l.b16 %v3895
    %v3963 = vunpack.c.l.b16 %v3896
    %v3964 = vunpack.c.l.b16 %v3897
    %v3965 = vunpack.c.l.b16 %v3898
    %v3966 = vpack.c.b16 %v3957, %v3956
    %v3967 = vpack.c.b16 %v3959, %v3958
    %v3968 = vpack.c.b16 %v3961, %v3960
    %v3969 = vpack.c.b16 %v3963, %v3962
    %v3970 = vpack.c.b16 %v3965, %v3964
    %v3976 = vsel %vm3769, %v3945, 0
    %v3979 = vand.u32 %v3970, %v3776
    %3981 = vmatpush.bf16.msra.mxu0 0
    %3982 = vmatpush.bf16.msra.mxu0 0
    %3983 = vmatpush.bf16.msra.mxu0 0
    %3984 = vmatpush.bf16.msra.mxu0 %v3979
    %3985 = vmatpush.bf16.msra.mxu0 %v3969
    %3986 = vmatpush.bf16.msra.mxu0 %v3968
    %3987 = vmatpush.bf16.msra.mxu0 %v3967
    %3988 = vmatpush.bf16.msra.mxu0 %v3966
    %3989 = vmatmul.bf16.gmra.mxu0 %v3976
    %v3990 = vpop.f32.mrf.mxu0
    %v3991 = vadd.f32 0.0, %v3990
    %v3992 = vpop.f32.mrf.mxu0
    %3993 = vdwg.mxu0
    %v3994 = vadd.f32 %v3885, %v3991
    %s3995 = scalar_lea.vmem %s5, 120
    %v3996 = vld [vmem:[%s3995] sm:$0xf]
    %v3997 = vld [vmem:[%s3995 + $0x4] sm:$0xf]
    %v3998 = vld [vmem:[%s3995 + $0x8] sm:$0xf]
    %v3999 = vld [vmem:[%s3995 + $0xc] sm:$0xf]
    %v4000 = vld [vmem:[%s3995 + $0x10] sm:$0xf]
    %v4001 = vld [vmem:[%s3995 + $0x14] sm:$0xf]
    %v4002 = vld [vmem:[%s3995 + $0x18] sm:$0xf]
    %v4003 = vld [vmem:[%s3995 + $0x1c] sm:$0xf]
    %v4004 = vld [vmem:[%s3995 + $0x20] sm:$0xf]
    %v4005 = vld [vmem:[%s3995 + $0x24] sm:$0xf]
    %v4014 = vunpack.c.l.b16 %v3635
    %v4015 = vunpack.c.l.b16 %v3640
    %v4016 = vunpack.c.l.b16 %v3645
    %v4017 = vunpack.c.l.b16 %v3650
    %v4018 = vunpack.c.l.b16 %v3655
    %v4019 = vunpack.c.l.b16 %v3660
    %v4020 = vunpack.c.l.b16 %v3665
    %v4021 = vunpack.c.l.b16 %v3670
    %v4022 = vpack.c.b16 %v4014, %v4014
    %v4023 = vpack.c.b16 %v4015, %v4015
    %v4024 = vpack.c.b16 %v4016, %v4016
    %v4025 = vpack.c.b16 %v4017, %v4017
    %v4026 = vpack.c.b16 %v4018, %v4018
    %v4027 = vpack.c.b16 %v4019, %v4019
    %v4028 = vpack.c.b16 %v4020, %v4020
    %v4029 = vpack.c.b16 %v4021, %v4021
    %v4030 = vunpack.c.l.b16 %v4022
    %v4031 = vunpack.c.l.b16 %v4023
    %v4032 = vunpack.c.l.b16 %v4024
    %v4033 = vunpack.c.l.b16 %v4025
    %v4034 = vunpack.c.l.b16 %v4026
    %v4035 = vunpack.c.l.b16 %v4027
    %v4036 = vunpack.c.l.b16 %v4028
    %v4037 = vunpack.c.l.b16 %v4029
    %v4038 = vrot.slane %v4031, 7
    %v4039 = vsel %vm1974, %v4038, %v4030
    %v4040 = vrot.slane %v4032, 6
    %v4041 = vsel %vm1977, %v4040, %v4039
    %v4042 = vrot.slane %v4033, 5
    %v4043 = vsel %vm1980, %v4042, %v4041
    %v4044 = vrot.slane %v4034, 4
    %v4045 = vsel %vm1983, %v4044, %v4043
    %v4046 = vrot.slane %v4035, 3
    %v4047 = vsel %vm1986, %v4046, %v4045
    %v4048 = vrot.slane %v4036, 2
    %v4049 = vsel %vm1989, %v4048, %v4047
    %v4050 = vrot.slane %v4037, 1
    %v4051 = vsel %vm1992, %v4050, %v4049
    %v4052 = vpack.c.b16 %v4051, %v4051
    %v4063 = vunpack.c.l.b16 %v3996
    %v4064 = vunpack.c.l.b16 %v3997
    %v4065 = vunpack.c.l.b16 %v3998
    %v4066 = vunpack.c.l.b16 %v3999
    %v4067 = vunpack.c.l.b16 %v4000
    %v4068 = vunpack.c.l.b16 %v4001
    %v4069 = vunpack.c.l.b16 %v4002
    %v4070 = vunpack.c.l.b16 %v4003
    %v4071 = vunpack.c.l.b16 %v4004
    %v4072 = vunpack.c.l.b16 %v4005
    %v4073 = vpack.c.b16 %v4064, %v4063
    %v4074 = vpack.c.b16 %v4066, %v4065
    %v4075 = vpack.c.b16 %v4068, %v4067
    %v4076 = vpack.c.b16 %v4070, %v4069
    %v4077 = vpack.c.b16 %v4072, %v4071
    %v4083 = vsel %vm3769, %v4052, 0
    %v4086 = vand.u32 %v4077, %v3776
    %4088 = vmatpush.bf16.msra.mxu0 0
    %4089 = vmatpush.bf16.msra.mxu0 0
    %4090 = vmatpush.bf16.msra.mxu0 0
    %4091 = vmatpush.bf16.msra.mxu0 %v4086
    %4092 = vmatpush.bf16.msra.mxu0 %v4076
    %4093 = vmatpush.bf16.msra.mxu0 %v4075
    %4094 = vmatpush.bf16.msra.mxu0 %v4074
    %4095 = vmatpush.bf16.msra.mxu0 %v4073
    %4096 = vmatmul.bf16.gmra.mxu0 %v4083
    %v4097 = vpop.f32.mrf.mxu0
    %v4098 = vadd.f32 0.0, %v4097
    %v4099 = vpop.f32.mrf.mxu0
    %4100 = vdwg.mxu0
    %v4101 = vadd.f32 %v3994, %v4098
    %s4102 = scalar_lea.vmem %s5, 160
    %v4103 = vld [vmem:[%s4102] sm:$0xf]
    %v4104 = vld [vmem:[%s4102 + $0x4] sm:$0xf]
    %v4105 = vld [vmem:[%s4102 + $0x8] sm:$0xf]
    %v4106 = vld [vmem:[%s4102 + $0xc] sm:$0xf]
    %v4107 = vld [vmem:[%s4102 + $0x10] sm:$0xf]
    %v4108 = vld [vmem:[%s4102 + $0x14] sm:$0xf]
    %v4109 = vld [vmem:[%s4102 + $0x18] sm:$0xf]
    %v4110 = vld [vmem:[%s4102 + $0x1c] sm:$0xf]
    %v4111 = vld [vmem:[%s4102 + $0x20] sm:$0xf]
    %v4112 = vld [vmem:[%s4102 + $0x24] sm:$0xf]
    %v4121 = vunpack.c.l.b16 %v3636
    %v4122 = vunpack.c.l.b16 %v3641
    %v4123 = vunpack.c.l.b16 %v3646
    %v4124 = vunpack.c.l.b16 %v3651
    %v4125 = vunpack.c.l.b16 %v3656
    %v4126 = vunpack.c.l.b16 %v3661
    %v4127 = vunpack.c.l.b16 %v3666
    %v4128 = vunpack.c.l.b16 %v3671
    %v4129 = vpack.c.b16 %v4121, %v4121
    %v4130 = vpack.c.b16 %v4122, %v4122
    %v4131 = vpack.c.b16 %v4123, %v4123
    %v4132 = vpack.c.b16 %v4124, %v4124
    %v4133 = vpack.c.b16 %v4125, %v4125
    %v4134 = vpack.c.b16 %v4126, %v4126
    %v4135 = vpack.c.b16 %v4127, %v4127
    %v4136 = vpack.c.b16 %v4128, %v4128
    %v4137 = vunpack.c.l.b16 %v4129
    %v4138 = vunpack.c.l.b16 %v4130
    %v4139 = vunpack.c.l.b16 %v4131
    %v4140 = vunpack.c.l.b16 %v4132
    %v4141 = vunpack.c.l.b16 %v4133
    %v4142 = vunpack.c.l.b16 %v4134
    %v4143 = vunpack.c.l.b16 %v4135
    %v4144 = vunpack.c.l.b16 %v4136
    %v4145 = vrot.slane %v4138, 7
    %v4146 = vsel %vm1974, %v4145, %v4137
    %v4147 = vrot.slane %v4139, 6
    %v4148 = vsel %vm1977, %v4147, %v4146
    %v4149 = vrot.slane %v4140, 5
    %v4150 = vsel %vm1980, %v4149, %v4148
    %v4151 = vrot.slane %v4141, 4
    %v4152 = vsel %vm1983, %v4151, %v4150
    %v4153 = vrot.slane %v4142, 3
    %v4154 = vsel %vm1986, %v4153, %v4152
    %v4155 = vrot.slane %v4143, 2
    %v4156 = vsel %vm1989, %v4155, %v4154
    %v4157 = vrot.slane %v4144, 1
    %v4158 = vsel %vm1992, %v4157, %v4156
    %v4159 = vpack.c.b16 %v4158, %v4158
    %v4170 = vunpack.c.l.b16 %v4103
    %v4171 = vunpack.c.l.b16 %v4104
    %v4172 = vunpack.c.l.b16 %v4105
    %v4173 = vunpack.c.l.b16 %v4106
    %v4174 = vunpack.c.l.b16 %v4107
    %v4175 = vunpack.c.l.b16 %v4108
    %v4176 = vunpack.c.l.b16 %v4109
    %v4177 = vunpack.c.l.b16 %v4110
    %v4178 = vunpack.c.l.b16 %v4111
    %v4179 = vunpack.c.l.b16 %v4112
    %v4180 = vpack.c.b16 %v4171, %v4170
    %v4181 = vpack.c.b16 %v4173, %v4172
    %v4182 = vpack.c.b16 %v4175, %v4174
    %v4183 = vpack.c.b16 %v4177, %v4176
    %v4184 = vpack.c.b16 %v4179, %v4178
    %v4190 = vsel %vm3769, %v4159, 0
    %v4193 = vand.u32 %v4184, %v3776
    %4195 = vmatpush.bf16.msra.mxu0 0
    %4196 = vmatpush.bf16.msra.mxu0 0
    %4197 = vmatpush.bf16.msra.mxu0 0
    %4198 = vmatpush.bf16.msra.mxu0 %v4193
    %4199 = vmatpush.bf16.msra.mxu0 %v4183
    %4200 = vmatpush.bf16.msra.mxu0 %v4182
    %4201 = vmatpush.bf16.msra.mxu0 %v4181
    %4202 = vmatpush.bf16.msra.mxu0 %v4180
    %4203 = vmatmul.bf16.gmra.mxu0 %v4190
    %v4204 = vpop.f32.mrf.mxu0
    %v4205 = vadd.f32 0.0, %v4204
    %v4206 = vpop.f32.mrf.mxu0
    %4207 = vdwg.mxu0
    %v4208 = vadd.f32 %v4101, %v4205
    %v4209 = vld [vmem:[%s6] sm:$0x1]
    %v4211 = vperm.slane %v4209, 0
    %v4213 = vadd.f32 %v4208, %v4211
    %v4214 = vmax.f32 %v4213, 0.0
    %v4215 = vpack.c.bf16 %v4214, %v4214
    %v4216 = vld [vmem:[%s7] sm:$0xf]
    %v4217 = vld [vmem:[%s7 + $0x4] sm:$0xf]
    %v4218 = vld [vmem:[%s7 + $0x8] sm:$0xf]
    %v4219 = vld [vmem:[%s7 + $0xc] sm:$0xf]
    %v4220 = vld [vmem:[%s7 + $0x10] sm:$0xf]
    %v4221 = vld [vmem:[%s7 + $0x14] sm:$0xf]
    %v4222 = vld [vmem:[%s7 + $0x18] sm:$0xf]
    %v4223 = vld [vmem:[%s7 + $0x1c] sm:$0xf]
    %v4224 = vld [vmem:[%s7 + $0x20] sm:$0xf]
    %v4225 = vld [vmem:[%s7 + $0x24] sm:$0xf]
    %v4226 = vld [vmem:[%s7 + $0x28] sm:$0xf]
    %v4227 = vld [vmem:[%s7 + $0x2c] sm:$0xf]
    %v4228 = vld [vmem:[%s7 + $0x30] sm:$0xf]
    %v4229 = vld [vmem:[%s7 + $0x34] sm:$0xf]
    %v4230 = vld [vmem:[%s7 + $0x38] sm:$0xf]
    %v4231 = vld [vmem:[%s7 + $0x3c] sm:$0xf]
    %v4232 = vld [vmem:[%s8] sm:$0x1]
    %v4234 = vperm.slane %v4232, 0
    %v4252 = vunpack.c.l.b16 %v4216
    %v4253 = vunpack.c.l.b16 %v4217
    %v4254 = vunpack.c.l.b16 %v4218
    %v4255 = vunpack.c.l.b16 %v4219
    %v4256 = vunpack.c.l.b16 %v4220
    %v4257 = vunpack.c.l.b16 %v4221
    %v4258 = vunpack.c.l.b16 %v4222
    %v4259 = vunpack.c.l.b16 %v4223
    %v4260 = vunpack.c.l.b16 %v4224
    %v4261 = vunpack.c.l.b16 %v4225
    %v4262 = vunpack.c.l.b16 %v4226
    %v4263 = vunpack.c.l.b16 %v4227
    %v4264 = vunpack.c.l.b16 %v4228
    %v4265 = vunpack.c.l.b16 %v4229
    %v4266 = vunpack.c.l.b16 %v4230
    %v4267 = vunpack.c.l.b16 %v4231
    %v4268 = vpack.c.b16 %v4253, %v4252
    %v4269 = vpack.c.b16 %v4255, %v4254
    %v4270 = vpack.c.b16 %v4257, %v4256
    %v4271 = vpack.c.b16 %v4259, %v4258
    %v4272 = vpack.c.b16 %v4261, %v4260
    %v4273 = vpack.c.b16 %v4263, %v4262
    %v4274 = vpack.c.b16 %v4265, %v4264
    %v4275 = vpack.c.b16 %v4267, %v4266
    %4284 = vmatpush.bf16.msra.mxu0 %v4275
    %4285 = vmatpush.bf16.msra.mxu0 %v4274
    %4286 = vmatpush.bf16.msra.mxu0 %v4273
    %4287 = vmatpush.bf16.msra.mxu0 %v4272
    %4288 = vmatpush.bf16.msra.mxu0 %v4271
    %4289 = vmatpush.bf16.msra.mxu0 %v4270
    %4290 = vmatpush.bf16.msra.mxu0 %v4269
    %4291 = vmatpush.bf16.msra.mxu0 %v4268
    %4292 = vmatmul.bf16.gmra.mxu0 %v4215
    %v4293 = vpop.f32.mrf.mxu0
    %v4294 = vadd.f32 %v4234, %v4293
    %v4295 = vpop.f32.mrf.mxu0
    %4296 = vdwg.mxu0
    %v4297 = vmax.f32 %v4294, 0.0
    %v4298 = vpack.c.bf16 %v4297, %v4297
    %v4299 = vld [vmem:[%s9] sm:$0xf]
    %v4300 = vld [vmem:[%s9 + $0x4] sm:$0xf]
    %v4301 = vld [vmem:[%s9 + $0x8] sm:$0xf]
    %v4302 = vld [vmem:[%s9 + $0xc] sm:$0xf]
    %v4303 = vld [vmem:[%s9 + $0x10] sm:$0xf]
    %v4304 = vld [vmem:[%s9 + $0x14] sm:$0xf]
    %v4305 = vld [vmem:[%s9 + $0x18] sm:$0xf]
    %v4306 = vld [vmem:[%s9 + $0x1c] sm:$0xf]
    %v4307 = vld [vmem:[%s9 + $0x20] sm:$0xf]
    %v4308 = vld [vmem:[%s9 + $0x24] sm:$0xf]
    %v4309 = vld [vmem:[%s9 + $0x28] sm:$0xf]
    %v4310 = vld [vmem:[%s9 + $0x2c] sm:$0xf]
    %v4311 = vld [vmem:[%s9 + $0x30] sm:$0xf]
    %v4312 = vld [vmem:[%s9 + $0x34] sm:$0xf]
    %v4313 = vld [vmem:[%s9 + $0x38] sm:$0xf]
    %v4314 = vld [vmem:[%s9 + $0x3c] sm:$0xf]
    %v4315 = vld [vmem:[%s10] sm:$0x1]
    %v4317 = vperm.slane %v4315, 0
    %v4335 = vunpack.c.l.b16 %v4299
    %v4336 = vunpack.c.l.b16 %v4300
    %v4337 = vunpack.c.l.b16 %v4301
    %v4338 = vunpack.c.l.b16 %v4302
    %v4339 = vunpack.c.l.b16 %v4303
    %v4340 = vunpack.c.l.b16 %v4304
    %v4341 = vunpack.c.l.b16 %v4305
    %v4342 = vunpack.c.l.b16 %v4306
    %v4343 = vunpack.c.l.b16 %v4307
    %v4344 = vunpack.c.l.b16 %v4308
    %v4345 = vunpack.c.l.b16 %v4309
    %v4346 = vunpack.c.l.b16 %v4310
    %v4347 = vunpack.c.l.b16 %v4311
    %v4348 = vunpack.c.l.b16 %v4312
    %v4349 = vunpack.c.l.b16 %v4313
    %v4350 = vunpack.c.l.b16 %v4314
    %v4351 = vpack.c.b16 %v4336, %v4335
    %v4352 = vpack.c.b16 %v4338, %v4337
    %v4353 = vpack.c.b16 %v4340, %v4339
    %v4354 = vpack.c.b16 %v4342, %v4341
    %v4355 = vpack.c.b16 %v4344, %v4343
    %v4356 = vpack.c.b16 %v4346, %v4345
    %v4357 = vpack.c.b16 %v4348, %v4347
    %v4358 = vpack.c.b16 %v4350, %v4349
    %4367 = vmatpush.bf16.msra.mxu0 %v4358
    %4368 = vmatpush.bf16.msra.mxu0 %v4357
    %4369 = vmatpush.bf16.msra.mxu0 %v4356
    %4370 = vmatpush.bf16.msra.mxu0 %v4355
    %4371 = vmatpush.bf16.msra.mxu0 %v4354
    %4372 = vmatpush.bf16.msra.mxu0 %v4353
    %4373 = vmatpush.bf16.msra.mxu0 %v4352
    %4374 = vmatpush.bf16.msra.mxu0 %v4351
    %4375 = vmatmul.bf16.gmra.mxu0 %v4298
    %v4376 = vpop.f32.mrf.mxu0
    %v4377 = vadd.f32 %v4317, %v4376
    %v4378 = vpop.f32.mrf.mxu0
    %4379 = vdwg.mxu0
    %4380 = vst [vmem:[#allocation2] sm:$0xff] %v4377
    // Predicated region
    $region46: #{tpu_custom_call.1} parent=1 // pred_check
      _
    $region47: #{tpu_custom_call.1} parent=1 // pred_check_branch
      %4382 = sbr.rel (0) target = $region49
    $region48: #{tpu_custom_call.1} parent=1 // pred_region
      %4384 = vsyncadd [#allocation3], 0
      %s4386 = sshll.u32 [#allocation2], 4
      %s4387 = int_to_ptr.vmem [resolvable:$true] %s4386
      %s4388 = sshll.u32 %s11, 4
      %s4389 = int_to_ptr.hbm [resolvable:$true] %s4388
      %4391 = dma.vmem_to_hbm [thread:$0]  %s4387, 128, %s4389, [#allocation3]
    $region49: #{tpu_custom_call.1} parent=1 // pred_fallthru
      _
    // Predicated region
    $region50: #{tpu_custom_call.1} parent=1 // pred_check
      _
    $region51: #{tpu_custom_call.1} parent=1 // pred_check_branch
      %4393 = sbr.rel (0) target = $region53
    $region52: #{tpu_custom_call.1} parent=1 // pred_region
      %4395 = dma.done [#allocation3], 128
    $region53: #{tpu_custom_call.1} parent=1 // pred_fallthru
      _
    %4396 = vsyncpa [#allocation3], 1

</llo_original>
